<compile_context>
chip_gen: v5e
topology: v5e:2x2
jax: 0.10.0
libtpu: 0.0.40
codegen_flags: <defaults>
</compile_context>

<pallas_src>
import math
import numpy as np
import jax
import jax.numpy as jnp
from jax.experimental import pallas as pl
from jax.experimental.pallas import tpu as pltpu

# ---------------- small config consistent with the module ----------------
SEQ = 8           # cur_seq
BATCH = 2
INPUT_DIM = 16
EMBED_DIM = 32    # embedding_dim (must be even)
HEAD_DIM = 16
HEAD_NUM = 2
MLP_NUM = 2       # -> fc(D,D,ReLU) ; fc(D,D,ReLU)   (hidden_dim == embedding_dim)
LAYER_NUM = 2
MEMORY_LEN = 8
LN_EPS = 1e-5
GRU_BIAS = 2.0
NEG_INF = -1e30


def _full_spec(shape):
    nd = len(shape)
    return pl.BlockSpec(shape, lambda i, nd=nd: (0,) * nd)


# ============================ fused Pallas kernel ============================

def _gtrxl_fwd_kernel(x_ref, mem_ref, posmask_ref, maskt_ref,
                      embw_ref, embb_ref, ln_ref,
                      wq_ref, bqu_ref, bqv_ref, wkv_ref, bkv_ref,
                      rbig_ref, summat_ref, wo_ref, bo_ref,
                      gwy_ref, gwx_ref, gwg_ref, gb_ref,
                      mw_ref, mb_ref, o_ref):
    BT, Din = x_ref.shape
    L, B, M, De = mem_ref.shape
    T = BT // B
    F = T + M
    HHd = wq_ref.shape[-1]
    H = HEAD_NUM
    Hd = HHd // H
    BF = B * F
    f32, bf16 = jnp.float32, jnp.bfloat16

    def dot(a_bf, w_bf):                 # bf16 operands, f32 accumulation on the MXU
        return jnp.dot(a_bf, w_bf, preferred_element_type=f32)

    def layer_norm(z, g, b):
        mu = jnp.mean(z, axis=-1, keepdims=True)
        var = jnp.mean(jnp.square(z - mu), axis=-1, keepdims=True)
        return (z - mu) * jax.lax.rsqrt(var + LN_EPS) * g + b

    def gru_gate(l, g, x_f32, x_bf, y_bf):
        # packed weights: gwy = [Wr|Wz|Wg] applied to y, gwx = [Ur|Uz] applied to x
        ty = dot(y_bf, gwy_ref[l, g])                           # [BT, 3*De]
        tx = dot(x_bf, gwx_ref[l, g])                           # [BT, 2*De]
        r_ = jax.nn.sigmoid(ty[:, :De] + tx[:, :De])
        z_ = jax.nn.sigmoid(ty[:, De:2 * De] + tx[:, De:] - gb_ref[l, g])
        h_ = jnp.tanh(ty[:, 2 * De:] + dot((r_ * x_f32).astype(bf16), gwg_ref[l, g]))
        return (1.0 - z_) * x_f32 + z_ * h_

    # ---- embedding fc_block (Linear + ReLU), fused into the same kernel ----
    cur = jnp.maximum(dot(x_ref[...].astype(bf16), embw_ref[...]) + embb_ref[...], 0.0)

    posmask = posmask_ref[...]           # [BT, H*F]   additive -inf mask (tiled)
    maskt = maskt_ref[...]               # [BT, T*H*F] 0/1 "pick matching query row t"
    summat = summat_ref[...]             # [T*H*F, H*F] block summation (0/1)

    for l in range(L):                   # static unrolled layer loop (toy L)
        ln = ln_ref[l]                                          # [4, De]
        cur_bf = cur.astype(bf16)
        cur3 = cur.reshape(B, T, De)

        # concat(memory, x) along the sequence axis, in-register (sublane concat)
        full = jnp.concatenate([mem_ref[l], cur3], axis=1)      # [B, F, De]
        x1 = layer_norm(full, ln[0:1], ln[1:2])
        x1_bf = x1.reshape(BF, De).astype(bf16)

        # fused, lane-packed projections (scale + biases folded host-side)
        q = dot(cur_bf, wq_ref[l])                              # [BT, HHd] (pre-scaled)
        kv = dot(x1_bf, wkv_ref[l]) + bkv_ref[l]                # [BF, 2*HHd]
        kv_bf = kv.astype(bf16)
        qu_bf = (q + bqu_ref[l]).astype(bf16)                   # content query (+bq+u)
        qv_bf = (q + bqv_ref[l]).astype(bf16)                   # positional query (+bq+v)

        # Transformer-XL rel_shift: positional projection was pre-shifted on the host
        # (Rbig[l][(h,d),(t',h,f)] = rproj[(f+T-1-t') mod F, h, d], block-diag over h);
        # wrapped entries land only in masked (f > t+M) positions.  Select the row's
        # own t' with a 0/1 mask and block-sum on the MXU.  -inf mask folded in.
        pos_all = dot(qv_bf, rbig_ref[l])                       # [BT, T*H*F]
        pos2 = jnp.dot(pos_all * maskt, summat,
                       preferred_element_type=f32) + posmask    # [BT, H*F]

        a1 = bo_ref[l]                                          # output proj bias
        for h in range(H):               # static head loop (H = 2)
            lo = h * Hd
            qh = qu_bf[:, lo:lo + Hd].reshape(B, T, Hd)
            kh = kv_bf[:, lo:lo + Hd].reshape(B, F, Hd)
            vh = kv_bf[:, HHd + lo:HHd + lo + Hd].reshape(B, F, Hd)
            content = jnp.einsum('btd,bfd->btf', qh, kh,
                                 preferred_element_type=f32)    # [B, T, F]
            s = content + pos2[:, h * F:(h + 1) * F].reshape(B, T, F)
            m = jnp.max(s, axis=-1, keepdims=True)
            e = jnp.exp(s - m)
            p = e * pl.reciprocal(jnp.sum(e, axis=-1, keepdims=True), approx=True)
            avh = jnp.einsum('btf,bfd->btd', p.astype(bf16), vh,
                             preferred_element_type=f32)        # [B, T, Hd]
            # head concat folded into the output projection as per-head K-blocks of Wo
            a1 = a1 + dot(avh.reshape(BT, Hd).astype(bf16), wo_ref[l][lo:lo + Hd, :])

        a1 = jnp.maximum(a1, 0.0)                               # self.activation

        o1 = gru_gate(l, 0, cur, cur_bf, a1.astype(bf16))       # GRU gate 1
        x2 = layer_norm(o1, ln[2:3], ln[3:4])
        h1 = jnp.maximum(dot(x2.astype(bf16), mw_ref[l, 0]) + mb_ref[l, 0], 0.0)
        m2 = jnp.maximum(dot(h1.astype(bf16), mw_ref[l, 1]) + mb_ref[l, 1], 0.0)
        cur = gru_gate(l, 1, o1, o1.astype(bf16), m2.astype(bf16))   # GRU gate 2

    o_ref[...] = cur                                            # [B*T, De]


# ============================ host-side glue ============================

def positional_embedding(full_seq, embed_dim):
    pos_ips = jnp.arange(full_seq - 1, -1, -1.0, dtype=jnp.float32)
    inv_freq = 1.0 / (10000.0 ** (jnp.arange(0.0, embed_dim, 2.0, dtype=jnp.float32) / embed_dim))
    sinusoid = jnp.outer(pos_ips, inv_freq)
    return jnp.concatenate([jnp.sin(sinusoid), jnp.cos(sinusoid)], axis=-1)   # [F, De]


def pack_params(params, T, B):
    """Pack / fuse / pre-shift / cast parameters + constants for the fused kernel."""
    bf16 = jnp.bfloat16
    De, M, H, Hd = EMBED_DIM, MEMORY_LEN, HEAD_NUM, HEAD_DIM
    HHd, F = H * Hd, T + MEMORY_LEN
    scale = 1.0 / math.sqrt(Hd)

    pe = positional_embedding(F, De)                          # [F, De]
    u_flat = (params['u'] * scale).reshape(1, HHd)
    v_flat = (params['v'] * scale).reshape(1, HHd)

    # rel_shift index table.  For every UNMASKED (t, f) (i.e. f <= t+M) the shifted
    # index f+T-1-t is in [0, F); wrapped (mod F) entries land only in masked slots.
    t_i = np.arange(T)[:, None]
    f_i = np.arange(F)[None, :]
    raw_idx = f_i + (T - 1) - t_i
    unmasked = f_i <= (t_i + M)
    assert raw_idx[unmasked].min() >= 0 and raw_idx[unmasked].max() < F, \
        "rel_shift wrap must only touch masked positions"
    shift_idx = raw_idx % F                                    # [T, F]

    eye_h = jnp.eye(H, dtype=jnp.float32)
    ln, wq, bqu, bqv, wkv, bkv, rbig, wo, bo = [], [], [], [], [], [], [], [], []
    gwy, gwx, gwg, gb, mw, mb = [], [], [], [], [], []
    for lp in params['layers']:
        w, b = lp['wqkvp'], lp['bqkvp']                        # [4, De, HHd], [4, HHd]
        ln.append(lp['ln'])
        wq.append(w[0] * scale)                                # fold 1/sqrt(Hd) into Wq
        bqu.append(b[0][None, :] * scale + u_flat)             # fold bq + u (scaled)
        bqv.append(b[0][None, :] * scale + v_flat)             # fold bq + v (scaled)
        wkv.append(jnp.concatenate([w[1], w[2]], axis=1))      # K|V fused -> [De, 2*HHd]
        bkv.append(jnp.concatenate([b[1], b[2]])[None, :])
        # hoisted positional projection, pre-shifted and head-block-diagonalised
        rproj = (pe @ w[3] + b[3][None, :]).reshape(F, H, Hd)  # [F, H, Hd]
        rsh = rproj[shift_idx]                                 # [T, F, H, Hd]
        rbig.append(jnp.einsum('tfhd,gh->gdthf', rsh, eye_h).reshape(HHd, T * H * F))
        wo.append(lp['wo']); bo.append(lp['bo'])
        g = lp['gw']                                           # [2,6,De,De] Wr,Ur,Wz,Uz,Wg,Ug
        gwy.append(jnp.stack([jnp.concatenate([g[i, 0], g[i, 2], g[i, 4]], axis=1)
                              for i in range(2)]))             # [2, De, 3*De]
        gwx.append(jnp.stack([jnp.concatenate([g[i, 1], g[i, 3]], axis=1)
                              for i in range(2)]))             # [2, De, 2*De]
        gwg.append(jnp.stack([g[i, 5] for i in range(2)]))     # [2, De, De]
        gb.append(lp['gb'][:, None, :])
        mw.append(lp['mw'])
        mb.append(lp['mb'][:, None, :])

    # additive -inf mask, tiled over (b, h); and the 0/1 "select my own t" matrix
    mask_add = jnp.where(jnp.asarray(f_i > (t_i + M)), NEG_INF, 0.0).astype(jnp.float32)
    posmask = jnp.broadcast_to(mask_add[None, :, None, :], (B, T, H, F)).reshape(B * T, H * F)
    tt = (np.arange(T)[:, None] == np.arange(T)[None, :]).astype(np.float32)
    maskt = jnp.asarray(np.broadcast_to(tt[None, :, :, None],
                                        (B, T, T, H * F)).reshape(B * T, T * H * F))
    summat = jnp.broadcast_to(jnp.eye(H * F, dtype=jnp.float32)[None],
                              (T, H * F, H * F)).reshape(T * H * F, H * F)

    st = jnp.stack
    return {
        'emb_w': params['emb_w'].astype(bf16), 'emb_b': params['emb_b'],
        'ln': st(ln),
        'wq': st(wq).astype(bf16), 'bqu': st(bqu), 'bqv': st(bqv),
        'wkv': st(wkv).astype(bf16), 'bkv': st(bkv),
        'rbig': st(rbig).astype(bf16), 'summat': summat,
        'wo': st(wo).astype(bf16), 'bo': st(bo),
        'gwy': st(gwy).astype(bf16), 'gwx': st(gwx).astype(bf16),
        'gwg': st(gwg).astype(bf16), 'gb': st(gb),
        'mw': st(mw).astype(bf16), 'mb': st(mb),
        'posmask': posmask, 'maskt': maskt,
    }


@jax.jit
def gtrxl_forward(x_tbd, params):
    """x_tbd: [T, B, input_dim] (batch_first=False).  Returns logit [T, B, embedding_dim]."""
    T, B, Din = x_tbd.shape
    De, M, L = EMBED_DIM, MEMORY_LEN, LAYER_NUM
    kp = pack_params(params, T, B)

    # TODO(synk): stateful Memory cache (self.memory.update) kept as zero-init state.
    memory = jnp.zeros((L, B, M, De), jnp.float32)
    x2d = jnp.transpose(x_tbd, (1, 0, 2)).reshape(B * T, Din)   # batch-major rows

    args = (x2d, memory, kp['posmask'], kp['maskt'],
            kp['emb_w'], kp['emb_b'], kp['ln'],
            kp['wq'], kp['bqu'], kp['bqv'], kp['wkv'], kp['bkv'],
            kp['rbig'], kp['summat'], kp['wo'], kp['bo'],
            kp['gwy'], kp['gwx'], kp['gwg'], kp['gb'],
            kp['mw'], kp['mb'])

    out2d = pl.pallas_call(
        _gtrxl_fwd_kernel,
        out_shape=jax.ShapeDtypeStruct((B * T, De), jnp.float32),
        grid=(1,),
        in_specs=[_full_spec(a.shape) for a in args],
        out_specs=_full_spec((B * T, De)),
        compiler_params=pltpu.CompilerParams(dimension_semantics=("arbitrary",)),
    )(*args)
    return jnp.transpose(out2d.reshape(B, T, De), (1, 0, 2))    # back to [T, B, De]


# ------------------------ deterministic parameter init ------------------------

def init_params(key):
    De, Din, H, Hd, L = EMBED_DIM, INPUT_DIM, HEAD_NUM, HEAD_DIM, LAYER_NUM
    HHd = H * Hd
    keys = jax.random.split(key, 4 + L)

    def rnd(k, shape, scale=0.1):
        return scale * jax.random.normal(k, shape, jnp.float32)

    params = {
        'emb_w': rnd(keys[0], (Din, De)),
        'emb_b': rnd(keys[1], (1, De), 0.05),
        'u': rnd(keys[2], (H, Hd)),          # synthetic init (module uses zeros)
        'v': rnd(keys[3], (H, Hd)),
        'layers': [],
    }
    for i in range(L):
        lk = jax.random.split(keys[4 + i], 8)
        ln = jnp.stack([jnp.ones(De), jnp.zeros(De), jnp.ones(De), jnp.zeros(De)]
                       ).astype(jnp.float32) + 0.05 * jax.random.normal(lk[0], (4, De), jnp.float32)
        params['layers'].append({
            'ln': ln,
            'wqkvp': rnd(lk[1], (4, De, HHd)),      # q, k, v, pos projections ([in, out])
            'bqkvp': rnd(lk[2], (4, HHd), 0.05),
            'wo': rnd(lk[3], (HHd, De)),
            'bo': rnd(lk[4], (1, De), 0.05),
            'gw': rnd(lk[5], (2, 6, De, De)),        # 2 GRU gates x (Wr,Ur,Wz,Uz,Wg,Ug)
            'gb': jnp.full((2, De), GRU_BIAS, jnp.float32),
            'mw': rnd(lk[6], (2, De, De)),
            'mb': rnd(lk[7], (2, De), 0.05),
        })
    return params


# ------------------------ pure-JAX reference (mirrors PyTorch) ------------------------

def _rel_shift(x):  # x: [B, H, T, F] -- exact PyTorch pad/view trick
    B_, H_, T_, F_ = x.shape
    xp = jnp.pad(x, ((0, 0), (0, 0), (0, 0), (1, 0)))
    xp = xp.reshape(B_, H_, F_ + 1, T_)
    return xp[:, :, 1:, :].reshape(B_, H_, T_, F_)


def reference_forward(x_tbd, params):
    T, B, Din = x_tbd.shape
    De, M, L, H, Hd = EMBED_DIM, MEMORY_LEN, LAYER_NUM, HEAD_NUM, HEAD_DIM
    HHd = H * Hd
    F = T + M

    out = jnp.maximum(x_tbd.reshape(T * B, Din) @ params['emb_w'] + params['emb_b'],
                      0.0).reshape(T, B, De)
    pe = positional_embedding(F, De)                                    # [F, De]
    mask = jnp.arange(F)[None, :] > (jnp.arange(T)[:, None] + M)        # [T, F] bool
    memory = jnp.zeros((L + 1, M, B, De), jnp.float32)
    u, v = params['u'], params['v']
    scale = 1.0 / math.sqrt(Hd)

    def layer_norm(z, g, b):
        mu = jnp.mean(z, axis=-1, keepdims=True)
        var = jnp.mean(jnp.square(z - mu), axis=-1, keepdims=True)
        return (z - mu) * jax.lax.rsqrt(var + LN_EPS) * g + b

    for i in range(L):
        lp = params['layers'][i]
        ln, wqkvp, bqkvp = lp['ln'], lp['wqkvp'], lp['bqkvp']
        full = jnp.concatenate([memory[i], out], axis=0)                # [F, B, De]
        x1 = layer_norm(full, ln[0], ln[1])
        qry = (out @ wqkvp[0] + bqkvp[0]).reshape(T, B, H, Hd)
        key = (x1 @ wqkvp[1] + bqkvp[1]).reshape(F, B, H, Hd)
        val = (x1 @ wqkvp[2] + bqkvp[2]).reshape(F, B, H, Hd)
        r = (pe @ wqkvp[3] + bqkvp[3]).reshape(F, H, Hd)
        content = jnp.einsum('tbhd,fbhd->bhtf', qry + u, key)
        posattn = _rel_shift(jnp.einsum('tbhd,fhd->bhtf', qry + v, r))
        attn = (content + posattn) * scale
        attn = jnp.where(mask[None, None], NEG_INF, attn)
        attn = jax.nn.softmax(attn, axis=-1)
        attn_vec = jnp.einsum('bhtf,fbhd->tbhd', attn, val).reshape(T, B, HHd)
        a1 = jnp.maximum(attn_vec @ lp['wo'] + lp['bo'], 0.0)

        def gru(idx, xin, yin):
            gw, gb = lp['gw'][idx], lp['gb'][idx]
            r_ = jax.nn.sigmoid(yin @ gw[0] + xin @ gw[1])
            z_ = jax.nn.sigmoid(yin @ gw[2] + xin @ gw[3] - gb)
            h_ = jnp.tanh(yin @ gw[4] + (r_ * xin) @ gw[5])
            return (1.0 - z_) * xin + z_ * h_

        o1 = gru(0, out, a1)
        x2 = layer_norm(o1, ln[2], ln[3])
        m2 = jnp.maximum(x2 @ lp['mw'][0] + lp['mb'][0], 0.0)
        m2 = jnp.maximum(m2 @ lp['mw'][1] + lp['mb'][1], 0.0)
        out = gru(1, o1, m2)
    return out


# ============================ main ============================

if __name__ == "__main__":
    key = jax.random.PRNGKey(0)
    pkey, xkey = jax.random.split(key)
    params = init_params(pkey)
    x = jax.random.normal(xkey, (SEQ, BATCH, INPUT_DIM), jnp.float32)

    logit = jax.block_until_ready(gtrxl_forward(x, params))
    ref = jax.block_until_ready(reference_forward(x, params))

    assert logit.shape == (SEQ, BATCH, EMBED_DIM)
    assert bool(jnp.all(jnp.isfinite(logit)))
    np.testing.assert_allclose(np.asarray(logit), np.asarray(ref), rtol=2e-2, atol=2e-2)
    print("KERNEL_OK")
</pallas_src>

<mosaic_0001>
module attributes {stable_mosaic.version = 11 : i64} {
  func.func @_gtrxl_fwd_kernel(%arg0: i32, %arg1: memref<16x16xf32, #tpu.memory_space<vmem>>, %arg2: memref<2x2x8x32xf32, #tpu.memory_space<vmem>>, %arg3: memref<16x32xf32, #tpu.memory_space<vmem>>, %arg4: memref<16x256xf32, #tpu.memory_space<vmem>>, %arg5: memref<16x32xbf16, #tpu.memory_space<vmem>>, %arg6: memref<1x32xf32, #tpu.memory_space<vmem>>, %arg7: memref<2x4x32xf32, #tpu.memory_space<vmem>>, %arg8: memref<2x32x32xbf16, #tpu.memory_space<vmem>>, %arg9: memref<2x1x32xf32, #tpu.memory_space<vmem>>, %arg10: memref<2x1x32xf32, #tpu.memory_space<vmem>>, %arg11: memref<2x32x64xbf16, #tpu.memory_space<vmem>>, %arg12: memref<2x1x64xf32, #tpu.memory_space<vmem>>, %arg13: memref<2x32x256xbf16, #tpu.memory_space<vmem>>, %arg14: memref<256x32xf32, #tpu.memory_space<vmem>>, %arg15: memref<2x32x32xbf16, #tpu.memory_space<vmem>>, %arg16: memref<2x1x32xf32, #tpu.memory_space<vmem>>, %arg17: memref<2x2x32x96xbf16, #tpu.memory_space<vmem>>, %arg18: memref<2x2x32x64xbf16, #tpu.memory_space<vmem>>, %arg19: memref<2x2x32x32xbf16, #tpu.memory_space<vmem>>, %arg20: memref<2x2x1x32xf32, #tpu.memory_space<vmem>>, %arg21: memref<2x2x32x32xbf16, #tpu.memory_space<vmem>>, %arg22: memref<2x2x1x32xf32, #tpu.memory_space<vmem>>, %arg23: memref<16x32xf32, #tpu.memory_space<vmem>>) attributes {dimension_semantics = [#tpu.dimension_semantics<arbitrary>], iteration_bounds = array<i64: 1>, scalar_prefetch = 0 : i64, scratch_operands = 0 : i64, tpu.core_type = #tpu.core_type<tc>, window_params = [{pipeline_mode = #tpu.pipeline_mode<synchronous>, transform_indices = @transform_0, window_bounds = array<i64: 16, 16>}, {pipeline_mode = #tpu.pipeline_mode<synchronous>, transform_indices = @transform_1, window_bounds = array<i64: 2, 2, 8, 32>}, {pipeline_mode = #tpu.pipeline_mode<synchronous>, transform_indices = @transform_2, window_bounds = array<i64: 16, 32>}, {pipeline_mode = #tpu.pipeline_mode<synchronous>, transform_indices = @transform_3, window_bounds = array<i64: 16, 256>}, {pipeline_mode = #tpu.pipeline_mode<synchronous>, transform_indices = @transform_4, window_bounds = array<i64: 16, 32>}, {pipeline_mode = #tpu.pipeline_mode<synchronous>, transform_indices = @transform_5, window_bounds = array<i64: 1, 32>}, {pipeline_mode = #tpu.pipeline_mode<synchronous>, transform_indices = @transform_6, window_bounds = array<i64: 2, 4, 32>}, {pipeline_mode = #tpu.pipeline_mode<synchronous>, transform_indices = @transform_7, window_bounds = array<i64: 2, 32, 32>}, {pipeline_mode = #tpu.pipeline_mode<synchronous>, transform_indices = @transform_8, window_bounds = array<i64: 2, 1, 32>}, {pipeline_mode = #tpu.pipeline_mode<synchronous>, transform_indices = @transform_9, window_bounds = array<i64: 2, 1, 32>}, {pipeline_mode = #tpu.pipeline_mode<synchronous>, transform_indices = @transform_10, window_bounds = array<i64: 2, 32, 64>}, {pipeline_mode = #tpu.pipeline_mode<synchronous>, transform_indices = @transform_11, window_bounds = array<i64: 2, 1, 64>}, {pipeline_mode = #tpu.pipeline_mode<synchronous>, transform_indices = @transform_12, window_bounds = array<i64: 2, 32, 256>}, {pipeline_mode = #tpu.pipeline_mode<synchronous>, transform_indices = @transform_13, window_bounds = array<i64: 256, 32>}, {pipeline_mode = #tpu.pipeline_mode<synchronous>, transform_indices = @transform_14, window_bounds = array<i64: 2, 32, 32>}, {pipeline_mode = #tpu.pipeline_mode<synchronous>, transform_indices = @transform_15, window_bounds = array<i64: 2, 1, 32>}, {pipeline_mode = #tpu.pipeline_mode<synchronous>, transform_indices = @transform_16, window_bounds = array<i64: 2, 2, 32, 96>}, {pipeline_mode = #tpu.pipeline_mode<synchronous>, transform_indices = @transform_17, window_bounds = array<i64: 2, 2, 32, 64>}, {pipeline_mode = #tpu.pipeline_mode<synchronous>, transform_indices = @transform_18, window_bounds = array<i64: 2, 2, 32, 32>}, {pipeline_mode = #tpu.pipeline_mode<synchronous>, transform_indices = @transform_19, window_bounds = array<i64: 2, 2, 1, 32>}, {pipeline_mode = #tpu.pipeline_mode<synchronous>, transform_indices = @transform_20, window_bounds = array<i64: 2, 2, 32, 32>}, {pipeline_mode = #tpu.pipeline_mode<synchronous>, transform_indices = @transform_21, window_bounds = array<i64: 2, 2, 1, 32>}, {pipeline_mode = #tpu.pipeline_mode<synchronous>, transform_indices = @transform_22, window_bounds = array<i64: 16, 32>}]} {
    %c0 = arith.constant 0 : index
    %c0_0 = arith.constant 0 : index
    %0 = vector.load %arg1[%c0, %c0_0] : memref<16x16xf32, #tpu.memory_space<vmem>>, vector<16x16xf32>
    %1 = arith.truncf %0 : vector<16x16xf32> to vector<16x16xbf16>
    %c0_1 = arith.constant 0 : index
    %c0_2 = arith.constant 0 : index
    %2 = vector.load %arg5[%c0_1, %c0_2] : memref<16x32xbf16, #tpu.memory_space<vmem>>, vector<16x32xbf16>
    %cst = arith.constant dense<0.000000e+00> : vector<16x32xf32>
    %3 = tpu.matmul %1, %2, %cst {dimension_numbers = #tpu.dot_dimension_numbers<[1], [0], [0], [1], [0, 0, 1, 1], [], []>} : vector<16x16xbf16>, vector<16x32xbf16>, vector<16x32xf32> -> vector<16x32xf32>
    %c0_3 = arith.constant 0 : index
    %c0_4 = arith.constant 0 : index
    %4 = vector.load %arg6[%c0_3, %c0_4] : memref<1x32xf32, #tpu.memory_space<vmem>>, vector<1x32xf32>
    %5 = vector.broadcast %4 : vector<1x32xf32> to vector<16x32xf32>
    %6 = arith.addf %3, %5 : vector<16x32xf32>
    %cst_5 = arith.constant 0.000000e+00 : f32
    %7 = vector.broadcast %cst_5 : f32 to vector<16x32xf32>
    %8 = arith.maximumf %6, %7 : vector<16x32xf32>
    %c0_6 = arith.constant 0 : index
    %c0_7 = arith.constant 0 : index
    %9 = vector.load %arg3[%c0_6, %c0_7] : memref<16x32xf32, #tpu.memory_space<vmem>>, vector<16x32xf32>
    %c0_8 = arith.constant 0 : index
    %c0_9 = arith.constant 0 : index
    %10 = vector.load %arg4[%c0_8, %c0_9] : memref<16x256xf32, #tpu.memory_space<vmem>>, vector<16x256xf32>
    %c0_10 = arith.constant 0 : index
    %c0_11 = arith.constant 0 : index
    %11 = vector.load %arg14[%c0_10, %c0_11] : memref<256x32xf32, #tpu.memory_space<vmem>>, vector<256x32xf32>
    %c0_12 = arith.constant 0 : index
    %c0_13 = arith.constant 0 : index
    %c0_14 = arith.constant 0 : index
    %12 = vector.load %arg7[%c0_12, %c0_13, %c0_14] : memref<2x4x32xf32, #tpu.memory_space<vmem>>, vector<1x4x32xf32>
    %13 = vector.shape_cast %12 : vector<1x4x32xf32> to vector<4x32xf32>
    %14 = arith.truncf %8 : vector<16x32xf32> to vector<16x32xbf16>
    %15 = vector.shape_cast %8 : vector<16x32xf32> to vector<2x8x32xf32>
    %c0_15 = arith.constant 0 : index
    %c0_16 = arith.constant 0 : index
    %c0_17 = arith.constant 0 : index
    %c0_18 = arith.constant 0 : index
    %16 = vector.load %arg2[%c0_15, %c0_16, %c0_17, %c0_18] : memref<2x2x8x32xf32, #tpu.memory_space<vmem>>, vector<1x2x8x32xf32>
    %17 = vector.shape_cast %16 : vector<1x2x8x32xf32> to vector<2x8x32xf32>
    %18 = tpu.concatenate %17, %15 in 1 : vector<2x8x32xf32>, vector<2x8x32xf32> -> vector<2x16x32xf32>
    %19 = vector.extract_strided_slice %13 {offsets = [0, 0], sizes = [1, 32], strides = [1, 1]} : vector<4x32xf32> to vector<1x32xf32>
    %20 = vector.extract_strided_slice %13 {offsets = [1, 0], sizes = [1, 32], strides = [1, 1]} : vector<4x32xf32> to vector<1x32xf32>
    %cst_19 = arith.constant dense<0.000000e+00> : vector<2x16xf32>
    %21 = vector.multi_reduction <add>, %18, %cst_19 [2] : vector<2x16x32xf32> to vector<2x16xf32>
    %22 = vector.shape_cast %21 : vector<2x16xf32> to vector<2x16x1xf32>
    %cst_20 = arith.constant 3.200000e+01 : f32
    %23 = vector.broadcast %cst_20 : f32 to vector<2x16x1xf32>
    %24 = arith.divf %22, %23 : vector<2x16x1xf32>
    %25 = vector.broadcast %24 : vector<2x16x1xf32> to vector<2x16x32xf32>
    %26 = arith.subf %18, %25 : vector<2x16x32xf32>
    %27 = arith.mulf %26, %26 : vector<2x16x32xf32>
    %cst_21 = arith.constant dense<0.000000e+00> : vector<2x16xf32>
    %28 = vector.multi_reduction <add>, %27, %cst_21 [2] : vector<2x16x32xf32> to vector<2x16xf32>
    %29 = vector.shape_cast %28 : vector<2x16xf32> to vector<2x16x1xf32>
    %cst_22 = arith.constant 3.200000e+01 : f32
    %30 = vector.broadcast %cst_22 : f32 to vector<2x16x1xf32>
    %31 = arith.divf %29, %30 : vector<2x16x1xf32>
    %32 = vector.broadcast %24 : vector<2x16x1xf32> to vector<2x16x32xf32>
    %33 = arith.subf %18, %32 : vector<2x16x32xf32>
    %cst_23 = arith.constant 9.99999974E-6 : f32
    %34 = vector.broadcast %cst_23 : f32 to vector<2x16x1xf32>
    %35 = arith.addf %31, %34 : vector<2x16x1xf32>
    %36 = math.rsqrt %35 : vector<2x16x1xf32>
    %37 = vector.broadcast %36 : vector<2x16x1xf32> to vector<2x16x32xf32>
    %38 = arith.mulf %33, %37 : vector<2x16x32xf32>
    %39 = vector.shape_cast %19 : vector<1x32xf32> to vector<1x1x32xf32>
    %40 = vector.broadcast %39 : vector<1x1x32xf32> to vector<2x16x32xf32>
    %41 = arith.mulf %38, %40 : vector<2x16x32xf32>
    %42 = vector.shape_cast %20 : vector<1x32xf32> to vector<1x1x32xf32>
    %43 = vector.broadcast %42 : vector<1x1x32xf32> to vector<2x16x32xf32>
    %44 = arith.addf %41, %43 : vector<2x16x32xf32>
    %45 = vector.shape_cast %44 : vector<2x16x32xf32> to vector<32x32xf32>
    %46 = arith.truncf %45 : vector<32x32xf32> to vector<32x32xbf16>
    %c0_24 = arith.constant 0 : index
    %c0_25 = arith.constant 0 : index
    %c0_26 = arith.constant 0 : index
    %47 = vector.load %arg8[%c0_24, %c0_25, %c0_26] : memref<2x32x32xbf16, #tpu.memory_space<vmem>>, vector<1x32x32xbf16>
    %48 = vector.shape_cast %47 : vector<1x32x32xbf16> to vector<32x32xbf16>
    %cst_27 = arith.constant dense<0.000000e+00> : vector<16x32xf32>
    %49 = tpu.matmul %14, %48, %cst_27 {dimension_numbers = #tpu.dot_dimension_numbers<[1], [0], [0], [1], [0, 0, 1, 1], [], []>} : vector<16x32xbf16>, vector<32x32xbf16>, vector<16x32xf32> -> vector<16x32xf32>
    %c0_28 = arith.constant 0 : index
    %c0_29 = arith.constant 0 : index
    %c0_30 = arith.constant 0 : index
    %50 = vector.load %arg11[%c0_28, %c0_29, %c0_30] : memref<2x32x64xbf16, #tpu.memory_space<vmem>>, vector<1x32x64xbf16>
    %51 = vector.shape_cast %50 : vector<1x32x64xbf16> to vector<32x64xbf16>
    %cst_31 = arith.constant dense<0.000000e+00> : vector<32x64xf32>
    %52 = tpu.matmul %46, %51, %cst_31 {dimension_numbers = #tpu.dot_dimension_numbers<[1], [0], [0], [1], [0, 0, 1, 1], [], []>} : vector<32x32xbf16>, vector<32x64xbf16>, vector<32x64xf32> -> vector<32x64xf32>
    %c0_32 = arith.constant 0 : index
    %c0_33 = arith.constant 0 : index
    %c0_34 = arith.constant 0 : index
    %53 = vector.load %arg12[%c0_32, %c0_33, %c0_34] : memref<2x1x64xf32, #tpu.memory_space<vmem>>, vector<1x1x64xf32>
    %54 = vector.shape_cast %53 : vector<1x1x64xf32> to vector<1x64xf32>
    %55 = vector.broadcast %54 : vector<1x64xf32> to vector<32x64xf32>
    %56 = arith.addf %52, %55 : vector<32x64xf32>
    %57 = arith.truncf %56 : vector<32x64xf32> to vector<32x64xbf16>
    %c0_35 = arith.constant 0 : index
    %c0_36 = arith.constant 0 : index
    %c0_37 = arith.constant 0 : index
    %58 = vector.load %arg9[%c0_35, %c0_36, %c0_37] : memref<2x1x32xf32, #tpu.memory_space<vmem>>, vector<1x1x32xf32>
    %59 = vector.shape_cast %58 : vector<1x1x32xf32> to vector<1x32xf32>
    %60 = vector.broadcast %59 : vector<1x32xf32> to vector<16x32xf32>
    %61 = arith.addf %49, %60 : vector<16x32xf32>
    %62 = arith.truncf %61 : vector<16x32xf32> to vector<16x32xbf16>
    %c0_38 = arith.constant 0 : index
    %c0_39 = arith.constant 0 : index
    %c0_40 = arith.constant 0 : index
    %63 = vector.load %arg10[%c0_38, %c0_39, %c0_40] : memref<2x1x32xf32, #tpu.memory_space<vmem>>, vector<1x1x32xf32>
    %64 = vector.shape_cast %63 : vector<1x1x32xf32> to vector<1x32xf32>
    %65 = vector.broadcast %64 : vector<1x32xf32> to vector<16x32xf32>
    %66 = arith.addf %49, %65 : vector<16x32xf32>
    %67 = arith.truncf %66 : vector<16x32xf32> to vector<16x32xbf16>
    %c0_41 = arith.constant 0 : index
    %c0_42 = arith.constant 0 : index
    %c0_43 = arith.constant 0 : index
    %68 = vector.load %arg13[%c0_41, %c0_42, %c0_43] : memref<2x32x256xbf16, #tpu.memory_space<vmem>>, vector<1x32x256xbf16>
    %69 = vector.shape_cast %68 : vector<1x32x256xbf16> to vector<32x256xbf16>
    %cst_44 = arith.constant dense<0.000000e+00> : vector<16x256xf32>
    %70 = tpu.matmul %67, %69, %cst_44 {dimension_numbers = #tpu.dot_dimension_numbers<[1], [0], [0], [1], [0, 0, 1, 1], [], []>} : vector<16x32xbf16>, vector<32x256xbf16>, vector<16x256xf32> -> vector<16x256xf32>
    %71 = arith.mulf %70, %10 : vector<16x256xf32>
    %cst_45 = arith.constant dense<0.000000e+00> : vector<16x32xf32>
    %72 = tpu.matmul %71, %11, %cst_45 {dimension_numbers = #tpu.dot_dimension_numbers<[1], [0], [0], [1], [0, 0, 1, 1], [], []>} : vector<16x256xf32>, vector<256x32xf32>, vector<16x32xf32> -> vector<16x32xf32>
    %73 = arith.addf %72, %9 : vector<16x32xf32>
    %c0_46 = arith.constant 0 : index
    %c0_47 = arith.constant 0 : index
    %c0_48 = arith.constant 0 : index
    %74 = vector.load %arg16[%c0_46, %c0_47, %c0_48] : memref<2x1x32xf32, #tpu.memory_space<vmem>>, vector<1x1x32xf32>
    %75 = vector.shape_cast %74 : vector<1x1x32xf32> to vector<1x32xf32>
    %76 = vector.extract_strided_slice %62 {offsets = [0, 0], sizes = [16, 16], strides = [1, 1]} : vector<16x32xbf16> to vector<16x16xbf16>
    %77 = vector.shape_cast %76 : vector<16x16xbf16> to vector<2x8x16xbf16>
    %78 = vector.extract_strided_slice %57 {offsets = [0, 0], sizes = [32, 16], strides = [1, 1]} : vector<32x64xbf16> to vector<32x16xbf16>
    %79 = vector.shape_cast %78 : vector<32x16xbf16> to vector<2x16x16xbf16>
    %80 = vector.extract_strided_slice %57 {offsets = [0, 32], sizes = [32, 16], strides = [1, 1]} : vector<32x64xbf16> to vector<32x16xbf16>
    %81 = vector.shape_cast %80 : vector<32x16xbf16> to vector<2x16x16xbf16>
    "tpu.trace_start"() <{level = 10 : i32, message = "btd,bfd->btf"}> : () -> ()
    %cst_49 = arith.constant dense<0.000000e+00> : vector<2x8x16xf32>
    %82 = tpu.matmul %77, %79, %cst_49 {dimension_numbers = #tpu.dot_dimension_numbers<[2], [2], [1], [1], [0, 0, 0, 1, 1, 1], [0], [0]>} : vector<2x8x16xbf16>, vector<2x16x16xbf16>, vector<2x8x16xf32> -> vector<2x8x16xf32>
    "tpu.trace_stop"() : () -> ()
    %83 = vector.extract_strided_slice %73 {offsets = [0, 0], sizes = [16, 16], strides = [1, 1]} : vector<16x32xf32> to vector<16x16xf32>
    %84 = vector.shape_cast %83 : vector<16x16xf32> to vector<2x8x16xf32>
    %85 = arith.addf %82, %84 : vector<2x8x16xf32>
    %cst_50 = arith.constant dense<0xFF800000> : vector<2x8xf32>
    %86 = vector.multi_reduction <maximumf>, %85, %cst_50 [2] : vector<2x8x16xf32> to vector<2x8xf32>
    %87 = vector.shape_cast %86 : vector<2x8xf32> to vector<2x8x1xf32>
    %88 = vector.broadcast %87 : vector<2x8x1xf32> to vector<2x8x16xf32>
    %89 = arith.subf %85, %88 : vector<2x8x16xf32>
    %90 = math.exp %89 : vector<2x8x16xf32>
    %cst_51 = arith.constant dense<0.000000e+00> : vector<2x8xf32>
    %91 = vector.multi_reduction <add>, %90, %cst_51 [2] : vector<2x8x16xf32> to vector<2x8xf32>
    %92 = vector.shape_cast %91 : vector<2x8xf32> to vector<2x8x1xf32>
    %93 = tpu.reciprocal %92 {approx = true} : vector<2x8x1xf32> -> vector<2x8x1xf32>
    %94 = vector.broadcast %93 : vector<2x8x1xf32> to vector<2x8x16xf32>
    %95 = arith.mulf %90, %94 : vector<2x8x16xf32>
    %96 = arith.truncf %95 : vector<2x8x16xf32> to vector<2x8x16xbf16>
    "tpu.trace_start"() <{level = 10 : i32, message = "btf,bfd->btd"}> : () -> ()
    %cst_52 = arith.constant dense<0.000000e+00> : vector<2x8x16xf32>
    %97 = tpu.matmul %96, %81, %cst_52 {dimension_numbers = #tpu.dot_dimension_numbers<[2], [1], [1], [2], [0, 0, 0, 1, 1, 2], [0], [0]>} : vector<2x8x16xbf16>, vector<2x16x16xbf16>, vector<2x8x16xf32> -> vector<2x8x16xf32>
    "tpu.trace_stop"() : () -> ()
    %98 = vector.shape_cast %97 : vector<2x8x16xf32> to vector<16x16xf32>
    %99 = arith.truncf %98 : vector<16x16xf32> to vector<16x16xbf16>
    %c0_53 = arith.constant 0 : index
    %c0_54 = arith.constant 0 : index
    %c0_55 = arith.constant 0 : index
    %100 = vector.load %arg15[%c0_53, %c0_54, %c0_55] : memref<2x32x32xbf16, #tpu.memory_space<vmem>>, vector<1x32x32xbf16>
    %101 = vector.shape_cast %100 : vector<1x32x32xbf16> to vector<32x32xbf16>
    %102 = vector.extract_strided_slice %101 {offsets = [0, 0], sizes = [16, 32], strides = [1, 1]} : vector<32x32xbf16> to vector<16x32xbf16>
    %cst_56 = arith.constant dense<0.000000e+00> : vector<16x32xf32>
    %103 = tpu.matmul %99, %102, %cst_56 {dimension_numbers = #tpu.dot_dimension_numbers<[1], [0], [0], [1], [0, 0, 1, 1], [], []>} : vector<16x16xbf16>, vector<16x32xbf16>, vector<16x32xf32> -> vector<16x32xf32>
    %104 = vector.broadcast %75 : vector<1x32xf32> to vector<16x32xf32>
    %105 = arith.addf %104, %103 : vector<16x32xf32>
    %106 = vector.extract_strided_slice %62 {offsets = [0, 16], sizes = [16, 16], strides = [1, 1]} : vector<16x32xbf16> to vector<16x16xbf16>
    %107 = vector.shape_cast %106 : vector<16x16xbf16> to vector<2x8x16xbf16>
    %108 = vector.extract_strided_slice %57 {offsets = [0, 16], sizes = [32, 16], strides = [1, 1]} : vector<32x64xbf16> to vector<32x16xbf16>
    %109 = vector.shape_cast %108 : vector<32x16xbf16> to vector<2x16x16xbf16>
    %110 = vector.extract_strided_slice %57 {offsets = [0, 48], sizes = [32, 16], strides = [1, 1]} : vector<32x64xbf16> to vector<32x16xbf16>
    %111 = vector.shape_cast %110 : vector<32x16xbf16> to vector<2x16x16xbf16>
    "tpu.trace_start"() <{level = 10 : i32, message = "btd,bfd->btf"}> : () -> ()
    %cst_57 = arith.constant dense<0.000000e+00> : vector<2x8x16xf32>
    %112 = tpu.matmul %107, %109, %cst_57 {dimension_numbers = #tpu.dot_dimension_numbers<[2], [2], [1], [1], [0, 0, 0, 1, 1, 1], [0], [0]>} : vector<2x8x16xbf16>, vector<2x16x16xbf16>, vector<2x8x16xf32> -> vector<2x8x16xf32>
    "tpu.trace_stop"() : () -> ()
    %113 = vector.extract_strided_slice %73 {offsets = [0, 16], sizes = [16, 16], strides = [1, 1]} : vector<16x32xf32> to vector<16x16xf32>
    %114 = vector.shape_cast %113 : vector<16x16xf32> to vector<2x8x16xf32>
    %115 = arith.addf %112, %114 : vector<2x8x16xf32>
    %cst_58 = arith.constant dense<0xFF800000> : vector<2x8xf32>
    %116 = vector.multi_reduction <maximumf>, %115, %cst_58 [2] : vector<2x8x16xf32> to vector<2x8xf32>
    %117 = vector.shape_cast %116 : vector<2x8xf32> to vector<2x8x1xf32>
    %118 = vector.broadcast %117 : vector<2x8x1xf32> to vector<2x8x16xf32>
    %119 = arith.subf %115, %118 : vector<2x8x16xf32>
    %120 = math.exp %119 : vector<2x8x16xf32>
    %cst_59 = arith.constant dense<0.000000e+00> : vector<2x8xf32>
    %121 = vector.multi_reduction <add>, %120, %cst_59 [2] : vector<2x8x16xf32> to vector<2x8xf32>
    %122 = vector.shape_cast %121 : vector<2x8xf32> to vector<2x8x1xf32>
    %123 = tpu.reciprocal %122 {approx = true} : vector<2x8x1xf32> -> vector<2x8x1xf32>
    %124 = vector.broadcast %123 : vector<2x8x1xf32> to vector<2x8x16xf32>
    %125 = arith.mulf %120, %124 : vector<2x8x16xf32>
    %126 = arith.truncf %125 : vector<2x8x16xf32> to vector<2x8x16xbf16>
    "tpu.trace_start"() <{level = 10 : i32, message = "btf,bfd->btd"}> : () -> ()
    %cst_60 = arith.constant dense<0.000000e+00> : vector<2x8x16xf32>
    %127 = tpu.matmul %126, %111, %cst_60 {dimension_numbers = #tpu.dot_dimension_numbers<[2], [1], [1], [2], [0, 0, 0, 1, 1, 2], [0], [0]>} : vector<2x8x16xbf16>, vector<2x16x16xbf16>, vector<2x8x16xf32> -> vector<2x8x16xf32>
    "tpu.trace_stop"() : () -> ()
    %128 = vector.shape_cast %127 : vector<2x8x16xf32> to vector<16x16xf32>
    %129 = arith.truncf %128 : vector<16x16xf32> to vector<16x16xbf16>
    %c0_61 = arith.constant 0 : index
    %c0_62 = arith.constant 0 : index
    %c0_63 = arith.constant 0 : index
    %130 = vector.load %arg15[%c0_61, %c0_62, %c0_63] : memref<2x32x32xbf16, #tpu.memory_space<vmem>>, vector<1x32x32xbf16>
    %131 = vector.shape_cast %130 : vector<1x32x32xbf16> to vector<32x32xbf16>
    %132 = vector.extract_strided_slice %131 {offsets = [16, 0], sizes = [16, 32], strides = [1, 1]} : vector<32x32xbf16> to vector<16x32xbf16>
    %cst_64 = arith.constant dense<0.000000e+00> : vector<16x32xf32>
    %133 = tpu.matmul %129, %132, %cst_64 {dimension_numbers = #tpu.dot_dimension_numbers<[1], [0], [0], [1], [0, 0, 1, 1], [], []>} : vector<16x16xbf16>, vector<16x32xbf16>, vector<16x32xf32> -> vector<16x32xf32>
    %134 = arith.addf %105, %133 : vector<16x32xf32>
    %cst_65 = arith.constant 0.000000e+00 : f32
    %135 = vector.broadcast %cst_65 : f32 to vector<16x32xf32>
    %136 = arith.maximumf %134, %135 : vector<16x32xf32>
    %137 = arith.truncf %136 : vector<16x32xf32> to vector<16x32xbf16>
    %c0_66 = arith.constant 0 : index
    %c0_67 = arith.constant 0 : index
    %c0_68 = arith.constant 0 : index
    %c0_69 = arith.constant 0 : index
    %138 = vector.load %arg17[%c0_66, %c0_67, %c0_68, %c0_69] : memref<2x2x32x96xbf16, #tpu.memory_space<vmem>>, vector<1x1x32x96xbf16>
    %139 = vector.shape_cast %138 : vector<1x1x32x96xbf16> to vector<32x96xbf16>
    %cst_70 = arith.constant dense<0.000000e+00> : vector<16x96xf32>
    %140 = tpu.matmul %137, %139, %cst_70 {dimension_numbers = #tpu.dot_dimension_numbers<[1], [0], [0], [1], [0, 0, 1, 1], [], []>} : vector<16x32xbf16>, vector<32x96xbf16>, vector<16x96xf32> -> vector<16x96xf32>
    %c0_71 = arith.constant 0 : index
    %c0_72 = arith.constant 0 : index
    %c0_73 = arith.constant 0 : index
    %c0_74 = arith.constant 0 : index
    %141 = vector.load %arg18[%c0_71, %c0_72, %c0_73, %c0_74] : memref<2x2x32x64xbf16, #tpu.memory_space<vmem>>, vector<1x1x32x64xbf16>
    %142 = vector.shape_cast %141 : vector<1x1x32x64xbf16> to vector<32x64xbf16>
    %cst_75 = arith.constant dense<0.000000e+00> : vector<16x64xf32>
    %143 = tpu.matmul %14, %142, %cst_75 {dimension_numbers = #tpu.dot_dimension_numbers<[1], [0], [0], [1], [0, 0, 1, 1], [], []>} : vector<16x32xbf16>, vector<32x64xbf16>, vector<16x64xf32> -> vector<16x64xf32>
    %144 = vector.extract_strided_slice %140 {offsets = [0, 0], sizes = [16, 32], strides = [1, 1]} : vector<16x96xf32> to vector<16x32xf32>
    %145 = vector.extract_strided_slice %143 {offsets = [0, 0], sizes = [16, 32], strides = [1, 1]} : vector<16x64xf32> to vector<16x32xf32>
    %146 = arith.addf %144, %145 : vector<16x32xf32>
    %147 = arith.negf %146 : vector<16x32xf32>
    %148 = math.exp %147 : vector<16x32xf32>
    %cst_76 = arith.constant 1.000000e+00 : f32
    %149 = vector.broadcast %cst_76 : f32 to vector<16x32xf32>
    %150 = arith.addf %149, %148 : vector<16x32xf32>
    %151 = arith.divf %149, %150 : vector<16x32xf32>
    %152 = vector.extract_strided_slice %140 {offsets = [0, 32], sizes = [16, 32], strides = [1, 1]} : vector<16x96xf32> to vector<16x32xf32>
    %153 = vector.extract_strided_slice %143 {offsets = [0, 32], sizes = [16, 32], strides = [1, 1]} : vector<16x64xf32> to vector<16x32xf32>
    %154 = arith.addf %152, %153 : vector<16x32xf32>
    %c0_77 = arith.constant 0 : index
    %c0_78 = arith.constant 0 : index
    %c0_79 = arith.constant 0 : index
    %c0_80 = arith.constant 0 : index
    %155 = vector.load %arg20[%c0_77, %c0_78, %c0_79, %c0_80] : memref<2x2x1x32xf32, #tpu.memory_space<vmem>>, vector<1x1x1x32xf32>
    %156 = vector.shape_cast %155 : vector<1x1x1x32xf32> to vector<1x32xf32>
    %157 = vector.broadcast %156 : vector<1x32xf32> to vector<16x32xf32>
    %158 = arith.subf %154, %157 : vector<16x32xf32>
    %159 = arith.negf %158 : vector<16x32xf32>
    %160 = math.exp %159 : vector<16x32xf32>
    %cst_81 = arith.constant 1.000000e+00 : f32
    %161 = vector.broadcast %cst_81 : f32 to vector<16x32xf32>
    %162 = arith.addf %161, %160 : vector<16x32xf32>
    %163 = arith.divf %161, %162 : vector<16x32xf32>
    %164 = vector.extract_strided_slice %140 {offsets = [0, 64], sizes = [16, 32], strides = [1, 1]} : vector<16x96xf32> to vector<16x32xf32>
    %165 = arith.mulf %151, %8 : vector<16x32xf32>
    %166 = arith.truncf %165 : vector<16x32xf32> to vector<16x32xbf16>
    %c0_82 = arith.constant 0 : index
    %c0_83 = arith.constant 0 : index
    %c0_84 = arith.constant 0 : index
    %c0_85 = arith.constant 0 : index
    %167 = vector.load %arg19[%c0_82, %c0_83, %c0_84, %c0_85] : memref<2x2x32x32xbf16, #tpu.memory_space<vmem>>, vector<1x1x32x32xbf16>
    %168 = vector.shape_cast %167 : vector<1x1x32x32xbf16> to vector<32x32xbf16>
    %cst_86 = arith.constant dense<0.000000e+00> : vector<16x32xf32>
    %169 = tpu.matmul %166, %168, %cst_86 {dimension_numbers = #tpu.dot_dimension_numbers<[1], [0], [0], [1], [0, 0, 1, 1], [], []>} : vector<16x32xbf16>, vector<32x32xbf16>, vector<16x32xf32> -> vector<16x32xf32>
    %170 = arith.addf %164, %169 : vector<16x32xf32>
    %171 = math.tanh %170 : vector<16x32xf32>
    %cst_87 = arith.constant 1.000000e+00 : f32
    %172 = vector.broadcast %cst_87 : f32 to vector<16x32xf32>
    %173 = arith.subf %172, %163 : vector<16x32xf32>
    %174 = arith.mulf %173, %8 : vector<16x32xf32>
    %175 = arith.mulf %163, %171 : vector<16x32xf32>
    %176 = arith.addf %174, %175 : vector<16x32xf32>
    %177 = vector.extract_strided_slice %13 {offsets = [2, 0], sizes = [1, 32], strides = [1, 1]} : vector<4x32xf32> to vector<1x32xf32>
    %178 = vector.extract_strided_slice %13 {offsets = [3, 0], sizes = [1, 32], strides = [1, 1]} : vector<4x32xf32> to vector<1x32xf32>
    %cst_88 = arith.constant dense<0.000000e+00> : vector<16xf32>
    %179 = vector.multi_reduction <add>, %176, %cst_88 [1] : vector<16x32xf32> to vector<16xf32>
    %180 = vector.shape_cast %179 : vector<16xf32> to vector<16x1xf32>
    %cst_89 = arith.constant 3.200000e+01 : f32
    %181 = vector.broadcast %cst_89 : f32 to vector<16x1xf32>
    %182 = arith.divf %180, %181 : vector<16x1xf32>
    %183 = vector.broadcast %182 : vector<16x1xf32> to vector<16x32xf32>
    %184 = arith.subf %176, %183 : vector<16x32xf32>
    %185 = arith.mulf %184, %184 : vector<16x32xf32>
    %cst_90 = arith.constant dense<0.000000e+00> : vector<16xf32>
    %186 = vector.multi_reduction <add>, %185, %cst_90 [1] : vector<16x32xf32> to vector<16xf32>
    %187 = vector.shape_cast %186 : vector<16xf32> to vector<16x1xf32>
    %cst_91 = arith.constant 3.200000e+01 : f32
    %188 = vector.broadcast %cst_91 : f32 to vector<16x1xf32>
    %189 = arith.divf %187, %188 : vector<16x1xf32>
    %190 = vector.broadcast %182 : vector<16x1xf32> to vector<16x32xf32>
    %191 = arith.subf %176, %190 : vector<16x32xf32>
    %cst_92 = arith.constant 9.99999974E-6 : f32
    %192 = vector.broadcast %cst_92 : f32 to vector<16x1xf32>
    %193 = arith.addf %189, %192 : vector<16x1xf32>
    %194 = math.rsqrt %193 : vector<16x1xf32>
    %195 = vector.broadcast %194 : vector<16x1xf32> to vector<16x32xf32>
    %196 = arith.mulf %191, %195 : vector<16x32xf32>
    %197 = vector.broadcast %177 : vector<1x32xf32> to vector<16x32xf32>
    %198 = arith.mulf %196, %197 : vector<16x32xf32>
    %199 = vector.broadcast %178 : vector<1x32xf32> to vector<16x32xf32>
    %200 = arith.addf %198, %199 : vector<16x32xf32>
    %201 = arith.truncf %200 : vector<16x32xf32> to vector<16x32xbf16>
    %c0_93 = arith.constant 0 : index
    %c0_94 = arith.constant 0 : index
    %c0_95 = arith.constant 0 : index
    %c0_96 = arith.constant 0 : index
    %202 = vector.load %arg21[%c0_93, %c0_94, %c0_95, %c0_96] : memref<2x2x32x32xbf16, #tpu.memory_space<vmem>>, vector<1x1x32x32xbf16>
    %203 = vector.shape_cast %202 : vector<1x1x32x32xbf16> to vector<32x32xbf16>
    %cst_97 = arith.constant dense<0.000000e+00> : vector<16x32xf32>
    %204 = tpu.matmul %201, %203, %cst_97 {dimension_numbers = #tpu.dot_dimension_numbers<[1], [0], [0], [1], [0, 0, 1, 1], [], []>} : vector<16x32xbf16>, vector<32x32xbf16>, vector<16x32xf32> -> vector<16x32xf32>
    %c0_98 = arith.constant 0 : index
    %c0_99 = arith.constant 0 : index
    %c0_100 = arith.constant 0 : index
    %c0_101 = arith.constant 0 : index
    %205 = vector.load %arg22[%c0_98, %c0_99, %c0_100, %c0_101] : memref<2x2x1x32xf32, #tpu.memory_space<vmem>>, vector<1x1x1x32xf32>
    %206 = vector.shape_cast %205 : vector<1x1x1x32xf32> to vector<1x32xf32>
    %207 = vector.broadcast %206 : vector<1x32xf32> to vector<16x32xf32>
    %208 = arith.addf %204, %207 : vector<16x32xf32>
    %cst_102 = arith.constant 0.000000e+00 : f32
    %209 = vector.broadcast %cst_102 : f32 to vector<16x32xf32>
    %210 = arith.maximumf %208, %209 : vector<16x32xf32>
    %211 = arith.truncf %210 : vector<16x32xf32> to vector<16x32xbf16>
    %c0_103 = arith.constant 0 : index
    %c1 = arith.constant 1 : index
    %c0_104 = arith.constant 0 : index
    %c0_105 = arith.constant 0 : index
    %212 = vector.load %arg21[%c0_103, %c1, %c0_104, %c0_105] : memref<2x2x32x32xbf16, #tpu.memory_space<vmem>>, vector<1x1x32x32xbf16>
    %213 = vector.shape_cast %212 : vector<1x1x32x32xbf16> to vector<32x32xbf16>
    %cst_106 = arith.constant dense<0.000000e+00> : vector<16x32xf32>
    %214 = tpu.matmul %211, %213, %cst_106 {dimension_numbers = #tpu.dot_dimension_numbers<[1], [0], [0], [1], [0, 0, 1, 1], [], []>} : vector<16x32xbf16>, vector<32x32xbf16>, vector<16x32xf32> -> vector<16x32xf32>
    %c0_107 = arith.constant 0 : index
    %c1_108 = arith.constant 1 : index
    %c0_109 = arith.constant 0 : index
    %c0_110 = arith.constant 0 : index
    %215 = vector.load %arg22[%c0_107, %c1_108, %c0_109, %c0_110] : memref<2x2x1x32xf32, #tpu.memory_space<vmem>>, vector<1x1x1x32xf32>
    %216 = vector.shape_cast %215 : vector<1x1x1x32xf32> to vector<1x32xf32>
    %217 = vector.broadcast %216 : vector<1x32xf32> to vector<16x32xf32>
    %218 = arith.addf %214, %217 : vector<16x32xf32>
    %cst_111 = arith.constant 0.000000e+00 : f32
    %219 = vector.broadcast %cst_111 : f32 to vector<16x32xf32>
    %220 = arith.maximumf %218, %219 : vector<16x32xf32>
    %221 = arith.truncf %176 : vector<16x32xf32> to vector<16x32xbf16>
    %222 = arith.truncf %220 : vector<16x32xf32> to vector<16x32xbf16>
    %c0_112 = arith.constant 0 : index
    %c1_113 = arith.constant 1 : index
    %c0_114 = arith.constant 0 : index
    %c0_115 = arith.constant 0 : index
    %223 = vector.load %arg17[%c0_112, %c1_113, %c0_114, %c0_115] : memref<2x2x32x96xbf16, #tpu.memory_space<vmem>>, vector<1x1x32x96xbf16>
    %224 = vector.shape_cast %223 : vector<1x1x32x96xbf16> to vector<32x96xbf16>
    %cst_116 = arith.constant dense<0.000000e+00> : vector<16x96xf32>
    %225 = tpu.matmul %222, %224, %cst_116 {dimension_numbers = #tpu.dot_dimension_numbers<[1], [0], [0], [1], [0, 0, 1, 1], [], []>} : vector<16x32xbf16>, vector<32x96xbf16>, vector<16x96xf32> -> vector<16x96xf32>
    %c0_117 = arith.constant 0 : index
    %c1_118 = arith.constant 1 : index
    %c0_119 = arith.constant 0 : index
    %c0_120 = arith.constant 0 : index
    %226 = vector.load %arg18[%c0_117, %c1_118, %c0_119, %c0_120] : memref<2x2x32x64xbf16, #tpu.memory_space<vmem>>, vector<1x1x32x64xbf16>
    %227 = vector.shape_cast %226 : vector<1x1x32x64xbf16> to vector<32x64xbf16>
    %cst_121 = arith.constant dense<0.000000e+00> : vector<16x64xf32>
    %228 = tpu.matmul %221, %227, %cst_121 {dimension_numbers = #tpu.dot_dimension_numbers<[1], [0], [0], [1], [0, 0, 1, 1], [], []>} : vector<16x32xbf16>, vector<32x64xbf16>, vector<16x64xf32> -> vector<16x64xf32>
    %229 = vector.extract_strided_slice %225 {offsets = [0, 0], sizes = [16, 32], strides = [1, 1]} : vector<16x96xf32> to vector<16x32xf32>
    %230 = vector.extract_strided_slice %228 {offsets = [0, 0], sizes = [16, 32], strides = [1, 1]} : vector<16x64xf32> to vector<16x32xf32>
    %231 = arith.addf %229, %230 : vector<16x32xf32>
    %232 = arith.negf %231 : vector<16x32xf32>
    %233 = math.exp %232 : vector<16x32xf32>
    %cst_122 = arith.constant 1.000000e+00 : f32
    %234 = vector.broadcast %cst_122 : f32 to vector<16x32xf32>
    %235 = arith.addf %234, %233 : vector<16x32xf32>
    %236 = arith.divf %234, %235 : vector<16x32xf32>
    %237 = vector.extract_strided_slice %225 {offsets = [0, 32], sizes = [16, 32], strides = [1, 1]} : vector<16x96xf32> to vector<16x32xf32>
    %238 = vector.extract_strided_slice %228 {offsets = [0, 32], sizes = [16, 32], strides = [1, 1]} : vector<16x64xf32> to vector<16x32xf32>
    %239 = arith.addf %237, %238 : vector<16x32xf32>
    %c0_123 = arith.constant 0 : index
    %c1_124 = arith.constant 1 : index
    %c0_125 = arith.constant 0 : index
    %c0_126 = arith.constant 0 : index
    %240 = vector.load %arg20[%c0_123, %c1_124, %c0_125, %c0_126] : memref<2x2x1x32xf32, #tpu.memory_space<vmem>>, vector<1x1x1x32xf32>
    %241 = vector.shape_cast %240 : vector<1x1x1x32xf32> to vector<1x32xf32>
    %242 = vector.broadcast %241 : vector<1x32xf32> to vector<16x32xf32>
    %243 = arith.subf %239, %242 : vector<16x32xf32>
    %244 = arith.negf %243 : vector<16x32xf32>
    %245 = math.exp %244 : vector<16x32xf32>
    %cst_127 = arith.constant 1.000000e+00 : f32
    %246 = vector.broadcast %cst_127 : f32 to vector<16x32xf32>
    %247 = arith.addf %246, %245 : vector<16x32xf32>
    %248 = arith.divf %246, %247 : vector<16x32xf32>
    %249 = vector.extract_strided_slice %225 {offsets = [0, 64], sizes = [16, 32], strides = [1, 1]} : vector<16x96xf32> to vector<16x32xf32>
    %250 = arith.mulf %236, %176 : vector<16x32xf32>
    %251 = arith.truncf %250 : vector<16x32xf32> to vector<16x32xbf16>
    %c0_128 = arith.constant 0 : index
    %c1_129 = arith.constant 1 : index
    %c0_130 = arith.constant 0 : index
    %c0_131 = arith.constant 0 : index
    %252 = vector.load %arg19[%c0_128, %c1_129, %c0_130, %c0_131] : memref<2x2x32x32xbf16, #tpu.memory_space<vmem>>, vector<1x1x32x32xbf16>
    %253 = vector.shape_cast %252 : vector<1x1x32x32xbf16> to vector<32x32xbf16>
    %cst_132 = arith.constant dense<0.000000e+00> : vector<16x32xf32>
    %254 = tpu.matmul %251, %253, %cst_132 {dimension_numbers = #tpu.dot_dimension_numbers<[1], [0], [0], [1], [0, 0, 1, 1], [], []>} : vector<16x32xbf16>, vector<32x32xbf16>, vector<16x32xf32> -> vector<16x32xf32>
    %255 = arith.addf %249, %254 : vector<16x32xf32>
    %256 = math.tanh %255 : vector<16x32xf32>
    %cst_133 = arith.constant 1.000000e+00 : f32
    %257 = vector.broadcast %cst_133 : f32 to vector<16x32xf32>
    %258 = arith.subf %257, %248 : vector<16x32xf32>
    %259 = arith.mulf %258, %176 : vector<16x32xf32>
    %260 = arith.mulf %248, %256 : vector<16x32xf32>
    %261 = arith.addf %259, %260 : vector<16x32xf32>
    %c1_134 = arith.constant 1 : index
    %c0_135 = arith.constant 0 : index
    %c0_136 = arith.constant 0 : index
    %262 = vector.load %arg7[%c1_134, %c0_135, %c0_136] : memref<2x4x32xf32, #tpu.memory_space<vmem>>, vector<1x4x32xf32>
    %263 = vector.shape_cast %262 : vector<1x4x32xf32> to vector<4x32xf32>
    %264 = arith.truncf %261 : vector<16x32xf32> to vector<16x32xbf16>
    %265 = vector.shape_cast %261 : vector<16x32xf32> to vector<2x8x32xf32>
    %c1_137 = arith.constant 1 : index
    %c0_138 = arith.constant 0 : index
    %c0_139 = arith.constant 0 : index
    %c0_140 = arith.constant 0 : index
    %266 = vector.load %arg2[%c1_137, %c0_138, %c0_139, %c0_140] : memref<2x2x8x32xf32, #tpu.memory_space<vmem>>, vector<1x2x8x32xf32>
    %267 = vector.shape_cast %266 : vector<1x2x8x32xf32> to vector<2x8x32xf32>
    %268 = tpu.concatenate %267, %265 in 1 : vector<2x8x32xf32>, vector<2x8x32xf32> -> vector<2x16x32xf32>
    %269 = vector.extract_strided_slice %263 {offsets = [0, 0], sizes = [1, 32], strides = [1, 1]} : vector<4x32xf32> to vector<1x32xf32>
    %270 = vector.extract_strided_slice %263 {offsets = [1, 0], sizes = [1, 32], strides = [1, 1]} : vector<4x32xf32> to vector<1x32xf32>
    %cst_141 = arith.constant dense<0.000000e+00> : vector<2x16xf32>
    %271 = vector.multi_reduction <add>, %268, %cst_141 [2] : vector<2x16x32xf32> to vector<2x16xf32>
    %272 = vector.shape_cast %271 : vector<2x16xf32> to vector<2x16x1xf32>
    %cst_142 = arith.constant 3.200000e+01 : f32
    %273 = vector.broadcast %cst_142 : f32 to vector<2x16x1xf32>
    %274 = arith.divf %272, %273 : vector<2x16x1xf32>
    %275 = vector.broadcast %274 : vector<2x16x1xf32> to vector<2x16x32xf32>
    %276 = arith.subf %268, %275 : vector<2x16x32xf32>
    %277 = arith.mulf %276, %276 : vector<2x16x32xf32>
    %cst_143 = arith.constant dense<0.000000e+00> : vector<2x16xf32>
    %278 = vector.multi_reduction <add>, %277, %cst_143 [2] : vector<2x16x32xf32> to vector<2x16xf32>
    %279 = vector.shape_cast %278 : vector<2x16xf32> to vector<2x16x1xf32>
    %cst_144 = arith.constant 3.200000e+01 : f32
    %280 = vector.broadcast %cst_144 : f32 to vector<2x16x1xf32>
    %281 = arith.divf %279, %280 : vector<2x16x1xf32>
    %282 = vector.broadcast %274 : vector<2x16x1xf32> to vector<2x16x32xf32>
    %283 = arith.subf %268, %282 : vector<2x16x32xf32>
    %cst_145 = arith.constant 9.99999974E-6 : f32
    %284 = vector.broadcast %cst_145 : f32 to vector<2x16x1xf32>
    %285 = arith.addf %281, %284 : vector<2x16x1xf32>
    %286 = math.rsqrt %285 : vector<2x16x1xf32>
    %287 = vector.broadcast %286 : vector<2x16x1xf32> to vector<2x16x32xf32>
    %288 = arith.mulf %283, %287 : vector<2x16x32xf32>
    %289 = vector.shape_cast %269 : vector<1x32xf32> to vector<1x1x32xf32>
    %290 = vector.broadcast %289 : vector<1x1x32xf32> to vector<2x16x32xf32>
    %291 = arith.mulf %288, %290 : vector<2x16x32xf32>
    %292 = vector.shape_cast %270 : vector<1x32xf32> to vector<1x1x32xf32>
    %293 = vector.broadcast %292 : vector<1x1x32xf32> to vector<2x16x32xf32>
    %294 = arith.addf %291, %293 : vector<2x16x32xf32>
    %295 = vector.shape_cast %294 : vector<2x16x32xf32> to vector<32x32xf32>
    %296 = arith.truncf %295 : vector<32x32xf32> to vector<32x32xbf16>
    %c1_146 = arith.constant 1 : index
    %c0_147 = arith.constant 0 : index
    %c0_148 = arith.constant 0 : index
    %297 = vector.load %arg8[%c1_146, %c0_147, %c0_148] : memref<2x32x32xbf16, #tpu.memory_space<vmem>>, vector<1x32x32xbf16>
    %298 = vector.shape_cast %297 : vector<1x32x32xbf16> to vector<32x32xbf16>
    %cst_149 = arith.constant dense<0.000000e+00> : vector<16x32xf32>
    %299 = tpu.matmul %264, %298, %cst_149 {dimension_numbers = #tpu.dot_dimension_numbers<[1], [0], [0], [1], [0, 0, 1, 1], [], []>} : vector<16x32xbf16>, vector<32x32xbf16>, vector<16x32xf32> -> vector<16x32xf32>
    %c1_150 = arith.constant 1 : index
    %c0_151 = arith.constant 0 : index
    %c0_152 = arith.constant 0 : index
    %300 = vector.load %arg11[%c1_150, %c0_151, %c0_152] : memref<2x32x64xbf16, #tpu.memory_space<vmem>>, vector<1x32x64xbf16>
    %301 = vector.shape_cast %300 : vector<1x32x64xbf16> to vector<32x64xbf16>
    %cst_153 = arith.constant dense<0.000000e+00> : vector<32x64xf32>
    %302 = tpu.matmul %296, %301, %cst_153 {dimension_numbers = #tpu.dot_dimension_numbers<[1], [0], [0], [1], [0, 0, 1, 1], [], []>} : vector<32x32xbf16>, vector<32x64xbf16>, vector<32x64xf32> -> vector<32x64xf32>
    %c1_154 = arith.constant 1 : index
    %c0_155 = arith.constant 0 : index
    %c0_156 = arith.constant 0 : index
    %303 = vector.load %arg12[%c1_154, %c0_155, %c0_156] : memref<2x1x64xf32, #tpu.memory_space<vmem>>, vector<1x1x64xf32>
    %304 = vector.shape_cast %303 : vector<1x1x64xf32> to vector<1x64xf32>
    %305 = vector.broadcast %304 : vector<1x64xf32> to vector<32x64xf32>
    %306 = arith.addf %302, %305 : vector<32x64xf32>
    %307 = arith.truncf %306 : vector<32x64xf32> to vector<32x64xbf16>
    %c1_157 = arith.constant 1 : index
    %c0_158 = arith.constant 0 : index
    %c0_159 = arith.constant 0 : index
    %308 = vector.load %arg9[%c1_157, %c0_158, %c0_159] : memref<2x1x32xf32, #tpu.memory_space<vmem>>, vector<1x1x32xf32>
    %309 = vector.shape_cast %308 : vector<1x1x32xf32> to vector<1x32xf32>
    %310 = vector.broadcast %309 : vector<1x32xf32> to vector<16x32xf32>
    %311 = arith.addf %299, %310 : vector<16x32xf32>
    %312 = arith.truncf %311 : vector<16x32xf32> to vector<16x32xbf16>
    %c1_160 = arith.constant 1 : index
    %c0_161 = arith.constant 0 : index
    %c0_162 = arith.constant 0 : index
    %313 = vector.load %arg10[%c1_160, %c0_161, %c0_162] : memref<2x1x32xf32, #tpu.memory_space<vmem>>, vector<1x1x32xf32>
    %314 = vector.shape_cast %313 : vector<1x1x32xf32> to vector<1x32xf32>
    %315 = vector.broadcast %314 : vector<1x32xf32> to vector<16x32xf32>
    %316 = arith.addf %299, %315 : vector<16x32xf32>
    %317 = arith.truncf %316 : vector<16x32xf32> to vector<16x32xbf16>
    %c1_163 = arith.constant 1 : index
    %c0_164 = arith.constant 0 : index
    %c0_165 = arith.constant 0 : index
    %318 = vector.load %arg13[%c1_163, %c0_164, %c0_165] : memref<2x32x256xbf16, #tpu.memory_space<vmem>>, vector<1x32x256xbf16>
    %319 = vector.shape_cast %318 : vector<1x32x256xbf16> to vector<32x256xbf16>
    %cst_166 = arith.constant dense<0.000000e+00> : vector<16x256xf32>
    %320 = tpu.matmul %317, %319, %cst_166 {dimension_numbers = #tpu.dot_dimension_numbers<[1], [0], [0], [1], [0, 0, 1, 1], [], []>} : vector<16x32xbf16>, vector<32x256xbf16>, vector<16x256xf32> -> vector<16x256xf32>
    %321 = arith.mulf %320, %10 : vector<16x256xf32>
    %cst_167 = arith.constant dense<0.000000e+00> : vector<16x32xf32>
    %322 = tpu.matmul %321, %11, %cst_167 {dimension_numbers = #tpu.dot_dimension_numbers<[1], [0], [0], [1], [0, 0, 1, 1], [], []>} : vector<16x256xf32>, vector<256x32xf32>, vector<16x32xf32> -> vector<16x32xf32>
    %323 = arith.addf %322, %9 : vector<16x32xf32>
    %c1_168 = arith.constant 1 : index
    %c0_169 = arith.constant 0 : index
    %c0_170 = arith.constant 0 : index
    %324 = vector.load %arg16[%c1_168, %c0_169, %c0_170] : memref<2x1x32xf32, #tpu.memory_space<vmem>>, vector<1x1x32xf32>
    %325 = vector.shape_cast %324 : vector<1x1x32xf32> to vector<1x32xf32>
    %326 = vector.extract_strided_slice %312 {offsets = [0, 0], sizes = [16, 16], strides = [1, 1]} : vector<16x32xbf16> to vector<16x16xbf16>
    %327 = vector.shape_cast %326 : vector<16x16xbf16> to vector<2x8x16xbf16>
    %328 = vector.extract_strided_slice %307 {offsets = [0, 0], sizes = [32, 16], strides = [1, 1]} : vector<32x64xbf16> to vector<32x16xbf16>
    %329 = vector.shape_cast %328 : vector<32x16xbf16> to vector<2x16x16xbf16>
    %330 = vector.extract_strided_slice %307 {offsets = [0, 32], sizes = [32, 16], strides = [1, 1]} : vector<32x64xbf16> to vector<32x16xbf16>
    %331 = vector.shape_cast %330 : vector<32x16xbf16> to vector<2x16x16xbf16>
    "tpu.trace_start"() <{level = 10 : i32, message = "btd,bfd->btf"}> : () -> ()
    %cst_171 = arith.constant dense<0.000000e+00> : vector<2x8x16xf32>
    %332 = tpu.matmul %327, %329, %cst_171 {dimension_numbers = #tpu.dot_dimension_numbers<[2], [2], [1], [1], [0, 0, 0, 1, 1, 1], [0], [0]>} : vector<2x8x16xbf16>, vector<2x16x16xbf16>, vector<2x8x16xf32> -> vector<2x8x16xf32>
    "tpu.trace_stop"() : () -> ()
    %333 = vector.extract_strided_slice %323 {offsets = [0, 0], sizes = [16, 16], strides = [1, 1]} : vector<16x32xf32> to vector<16x16xf32>
    %334 = vector.shape_cast %333 : vector<16x16xf32> to vector<2x8x16xf32>
    %335 = arith.addf %332, %334 : vector<2x8x16xf32>
    %cst_172 = arith.constant dense<0xFF800000> : vector<2x8xf32>
    %336 = vector.multi_reduction <maximumf>, %335, %cst_172 [2] : vector<2x8x16xf32> to vector<2x8xf32>
    %337 = vector.shape_cast %336 : vector<2x8xf32> to vector<2x8x1xf32>
    %338 = vector.broadcast %337 : vector<2x8x1xf32> to vector<2x8x16xf32>
    %339 = arith.subf %335, %338 : vector<2x8x16xf32>
    %340 = math.exp %339 : vector<2x8x16xf32>
    %cst_173 = arith.constant dense<0.000000e+00> : vector<2x8xf32>
    %341 = vector.multi_reduction <add>, %340, %cst_173 [2] : vector<2x8x16xf32> to vector<2x8xf32>
    %342 = vector.shape_cast %341 : vector<2x8xf32> to vector<2x8x1xf32>
    %343 = tpu.reciprocal %342 {approx = true} : vector<2x8x1xf32> -> vector<2x8x1xf32>
    %344 = vector.broadcast %343 : vector<2x8x1xf32> to vector<2x8x16xf32>
    %345 = arith.mulf %340, %344 : vector<2x8x16xf32>
    %346 = arith.truncf %345 : vector<2x8x16xf32> to vector<2x8x16xbf16>
    "tpu.trace_start"() <{level = 10 : i32, message = "btf,bfd->btd"}> : () -> ()
    %cst_174 = arith.constant dense<0.000000e+00> : vector<2x8x16xf32>
    %347 = tpu.matmul %346, %331, %cst_174 {dimension_numbers = #tpu.dot_dimension_numbers<[2], [1], [1], [2], [0, 0, 0, 1, 1, 2], [0], [0]>} : vector<2x8x16xbf16>, vector<2x16x16xbf16>, vector<2x8x16xf32> -> vector<2x8x16xf32>
    "tpu.trace_stop"() : () -> ()
    %348 = vector.shape_cast %347 : vector<2x8x16xf32> to vector<16x16xf32>
    %349 = arith.truncf %348 : vector<16x16xf32> to vector<16x16xbf16>
    %c1_175 = arith.constant 1 : index
    %c0_176 = arith.constant 0 : index
    %c0_177 = arith.constant 0 : index
    %350 = vector.load %arg15[%c1_175, %c0_176, %c0_177] : memref<2x32x32xbf16, #tpu.memory_space<vmem>>, vector<1x32x32xbf16>
    %351 = vector.shape_cast %350 : vector<1x32x32xbf16> to vector<32x32xbf16>
    %352 = vector.extract_strided_slice %351 {offsets = [0, 0], sizes = [16, 32], strides = [1, 1]} : vector<32x32xbf16> to vector<16x32xbf16>
    %cst_178 = arith.constant dense<0.000000e+00> : vector<16x32xf32>
    %353 = tpu.matmul %349, %352, %cst_178 {dimension_numbers = #tpu.dot_dimension_numbers<[1], [0], [0], [1], [0, 0, 1, 1], [], []>} : vector<16x16xbf16>, vector<16x32xbf16>, vector<16x32xf32> -> vector<16x32xf32>
    %354 = vector.broadcast %325 : vector<1x32xf32> to vector<16x32xf32>
    %355 = arith.addf %354, %353 : vector<16x32xf32>
    %356 = vector.extract_strided_slice %312 {offsets = [0, 16], sizes = [16, 16], strides = [1, 1]} : vector<16x32xbf16> to vector<16x16xbf16>
    %357 = vector.shape_cast %356 : vector<16x16xbf16> to vector<2x8x16xbf16>
    %358 = vector.extract_strided_slice %307 {offsets = [0, 16], sizes = [32, 16], strides = [1, 1]} : vector<32x64xbf16> to vector<32x16xbf16>
    %359 = vector.shape_cast %358 : vector<32x16xbf16> to vector<2x16x16xbf16>
    %360 = vector.extract_strided_slice %307 {offsets = [0, 48], sizes = [32, 16], strides = [1, 1]} : vector<32x64xbf16> to vector<32x16xbf16>
    %361 = vector.shape_cast %360 : vector<32x16xbf16> to vector<2x16x16xbf16>
    "tpu.trace_start"() <{level = 10 : i32, message = "btd,bfd->btf"}> : () -> ()
    %cst_179 = arith.constant dense<0.000000e+00> : vector<2x8x16xf32>
    %362 = tpu.matmul %357, %359, %cst_179 {dimension_numbers = #tpu.dot_dimension_numbers<[2], [2], [1], [1], [0, 0, 0, 1, 1, 1], [0], [0]>} : vector<2x8x16xbf16>, vector<2x16x16xbf16>, vector<2x8x16xf32> -> vector<2x8x16xf32>
    "tpu.trace_stop"() : () -> ()
    %363 = vector.extract_strided_slice %323 {offsets = [0, 16], sizes = [16, 16], strides = [1, 1]} : vector<16x32xf32> to vector<16x16xf32>
    %364 = vector.shape_cast %363 : vector<16x16xf32> to vector<2x8x16xf32>
    %365 = arith.addf %362, %364 : vector<2x8x16xf32>
    %cst_180 = arith.constant dense<0xFF800000> : vector<2x8xf32>
    %366 = vector.multi_reduction <maximumf>, %365, %cst_180 [2] : vector<2x8x16xf32> to vector<2x8xf32>
    %367 = vector.shape_cast %366 : vector<2x8xf32> to vector<2x8x1xf32>
    %368 = vector.broadcast %367 : vector<2x8x1xf32> to vector<2x8x16xf32>
    %369 = arith.subf %365, %368 : vector<2x8x16xf32>
    %370 = math.exp %369 : vector<2x8x16xf32>
    %cst_181 = arith.constant dense<0.000000e+00> : vector<2x8xf32>
    %371 = vector.multi_reduction <add>, %370, %cst_181 [2] : vector<2x8x16xf32> to vector<2x8xf32>
    %372 = vector.shape_cast %371 : vector<2x8xf32> to vector<2x8x1xf32>
    %373 = tpu.reciprocal %372 {approx = true} : vector<2x8x1xf32> -> vector<2x8x1xf32>
    %374 = vector.broadcast %373 : vector<2x8x1xf32> to vector<2x8x16xf32>
    %375 = arith.mulf %370, %374 : vector<2x8x16xf32>
    %376 = arith.truncf %375 : vector<2x8x16xf32> to vector<2x8x16xbf16>
    "tpu.trace_start"() <{level = 10 : i32, message = "btf,bfd->btd"}> : () -> ()
    %cst_182 = arith.constant dense<0.000000e+00> : vector<2x8x16xf32>
    %377 = tpu.matmul %376, %361, %cst_182 {dimension_numbers = #tpu.dot_dimension_numbers<[2], [1], [1], [2], [0, 0, 0, 1, 1, 2], [0], [0]>} : vector<2x8x16xbf16>, vector<2x16x16xbf16>, vector<2x8x16xf32> -> vector<2x8x16xf32>
    "tpu.trace_stop"() : () -> ()
    %378 = vector.shape_cast %377 : vector<2x8x16xf32> to vector<16x16xf32>
    %379 = arith.truncf %378 : vector<16x16xf32> to vector<16x16xbf16>
    %c1_183 = arith.constant 1 : index
    %c0_184 = arith.constant 0 : index
    %c0_185 = arith.constant 0 : index
    %380 = vector.load %arg15[%c1_183, %c0_184, %c0_185] : memref<2x32x32xbf16, #tpu.memory_space<vmem>>, vector<1x32x32xbf16>
    %381 = vector.shape_cast %380 : vector<1x32x32xbf16> to vector<32x32xbf16>
    %382 = vector.extract_strided_slice %381 {offsets = [16, 0], sizes = [16, 32], strides = [1, 1]} : vector<32x32xbf16> to vector<16x32xbf16>
    %cst_186 = arith.constant dense<0.000000e+00> : vector<16x32xf32>
    %383 = tpu.matmul %379, %382, %cst_186 {dimension_numbers = #tpu.dot_dimension_numbers<[1], [0], [0], [1], [0, 0, 1, 1], [], []>} : vector<16x16xbf16>, vector<16x32xbf16>, vector<16x32xf32> -> vector<16x32xf32>
    %384 = arith.addf %355, %383 : vector<16x32xf32>
    %cst_187 = arith.constant 0.000000e+00 : f32
    %385 = vector.broadcast %cst_187 : f32 to vector<16x32xf32>
    %386 = arith.maximumf %384, %385 : vector<16x32xf32>
    %387 = arith.truncf %386 : vector<16x32xf32> to vector<16x32xbf16>
    %c1_188 = arith.constant 1 : index
    %c0_189 = arith.constant 0 : index
    %c0_190 = arith.constant 0 : index
    %c0_191 = arith.constant 0 : index
    %388 = vector.load %arg17[%c1_188, %c0_189, %c0_190, %c0_191] : memref<2x2x32x96xbf16, #tpu.memory_space<vmem>>, vector<1x1x32x96xbf16>
    %389 = vector.shape_cast %388 : vector<1x1x32x96xbf16> to vector<32x96xbf16>
    %cst_192 = arith.constant dense<0.000000e+00> : vector<16x96xf32>
    %390 = tpu.matmul %387, %389, %cst_192 {dimension_numbers = #tpu.dot_dimension_numbers<[1], [0], [0], [1], [0, 0, 1, 1], [], []>} : vector<16x32xbf16>, vector<32x96xbf16>, vector<16x96xf32> -> vector<16x96xf32>
    %c1_193 = arith.constant 1 : index
    %c0_194 = arith.constant 0 : index
    %c0_195 = arith.constant 0 : index
    %c0_196 = arith.constant 0 : index
    %391 = vector.load %arg18[%c1_193, %c0_194, %c0_195, %c0_196] : memref<2x2x32x64xbf16, #tpu.memory_space<vmem>>, vector<1x1x32x64xbf16>
    %392 = vector.shape_cast %391 : vector<1x1x32x64xbf16> to vector<32x64xbf16>
    %cst_197 = arith.constant dense<0.000000e+00> : vector<16x64xf32>
    %393 = tpu.matmul %264, %392, %cst_197 {dimension_numbers = #tpu.dot_dimension_numbers<[1], [0], [0], [1], [0, 0, 1, 1], [], []>} : vector<16x32xbf16>, vector<32x64xbf16>, vector<16x64xf32> -> vector<16x64xf32>
    %394 = vector.extract_strided_slice %390 {offsets = [0, 0], sizes = [16, 32], strides = [1, 1]} : vector<16x96xf32> to vector<16x32xf32>
    %395 = vector.extract_strided_slice %393 {offsets = [0, 0], sizes = [16, 32], strides = [1, 1]} : vector<16x64xf32> to vector<16x32xf32>
    %396 = arith.addf %394, %395 : vector<16x32xf32>
    %397 = arith.negf %396 : vector<16x32xf32>
    %398 = math.exp %397 : vector<16x32xf32>
    %cst_198 = arith.constant 1.000000e+00 : f32
    %399 = vector.broadcast %cst_198 : f32 to vector<16x32xf32>
    %400 = arith.addf %399, %398 : vector<16x32xf32>
    %401 = arith.divf %399, %400 : vector<16x32xf32>
    %402 = vector.extract_strided_slice %390 {offsets = [0, 32], sizes = [16, 32], strides = [1, 1]} : vector<16x96xf32> to vector<16x32xf32>
    %403 = vector.extract_strided_slice %393 {offsets = [0, 32], sizes = [16, 32], strides = [1, 1]} : vector<16x64xf32> to vector<16x32xf32>
    %404 = arith.addf %402, %403 : vector<16x32xf32>
    %c1_199 = arith.constant 1 : index
    %c0_200 = arith.constant 0 : index
    %c0_201 = arith.constant 0 : index
    %c0_202 = arith.constant 0 : index
    %405 = vector.load %arg20[%c1_199, %c0_200, %c0_201, %c0_202] : memref<2x2x1x32xf32, #tpu.memory_space<vmem>>, vector<1x1x1x32xf32>
    %406 = vector.shape_cast %405 : vector<1x1x1x32xf32> to vector<1x32xf32>
    %407 = vector.broadcast %406 : vector<1x32xf32> to vector<16x32xf32>
    %408 = arith.subf %404, %407 : vector<16x32xf32>
    %409 = arith.negf %408 : vector<16x32xf32>
    %410 = math.exp %409 : vector<16x32xf32>
    %cst_203 = arith.constant 1.000000e+00 : f32
    %411 = vector.broadcast %cst_203 : f32 to vector<16x32xf32>
    %412 = arith.addf %411, %410 : vector<16x32xf32>
    %413 = arith.divf %411, %412 : vector<16x32xf32>
    %414 = vector.extract_strided_slice %390 {offsets = [0, 64], sizes = [16, 32], strides = [1, 1]} : vector<16x96xf32> to vector<16x32xf32>
    %415 = arith.mulf %401, %261 : vector<16x32xf32>
    %416 = arith.truncf %415 : vector<16x32xf32> to vector<16x32xbf16>
    %c1_204 = arith.constant 1 : index
    %c0_205 = arith.constant 0 : index
    %c0_206 = arith.constant 0 : index
    %c0_207 = arith.constant 0 : index
    %417 = vector.load %arg19[%c1_204, %c0_205, %c0_206, %c0_207] : memref<2x2x32x32xbf16, #tpu.memory_space<vmem>>, vector<1x1x32x32xbf16>
    %418 = vector.shape_cast %417 : vector<1x1x32x32xbf16> to vector<32x32xbf16>
    %cst_208 = arith.constant dense<0.000000e+00> : vector<16x32xf32>
    %419 = tpu.matmul %416, %418, %cst_208 {dimension_numbers = #tpu.dot_dimension_numbers<[1], [0], [0], [1], [0, 0, 1, 1], [], []>} : vector<16x32xbf16>, vector<32x32xbf16>, vector<16x32xf32> -> vector<16x32xf32>
    %420 = arith.addf %414, %419 : vector<16x32xf32>
    %421 = math.tanh %420 : vector<16x32xf32>
    %cst_209 = arith.constant 1.000000e+00 : f32
    %422 = vector.broadcast %cst_209 : f32 to vector<16x32xf32>
    %423 = arith.subf %422, %413 : vector<16x32xf32>
    %424 = arith.mulf %423, %261 : vector<16x32xf32>
    %425 = arith.mulf %413, %421 : vector<16x32xf32>
    %426 = arith.addf %424, %425 : vector<16x32xf32>
    %427 = vector.extract_strided_slice %263 {offsets = [2, 0], sizes = [1, 32], strides = [1, 1]} : vector<4x32xf32> to vector<1x32xf32>
    %428 = vector.extract_strided_slice %263 {offsets = [3, 0], sizes = [1, 32], strides = [1, 1]} : vector<4x32xf32> to vector<1x32xf32>
    %cst_210 = arith.constant dense<0.000000e+00> : vector<16xf32>
    %429 = vector.multi_reduction <add>, %426, %cst_210 [1] : vector<16x32xf32> to vector<16xf32>
    %430 = vector.shape_cast %429 : vector<16xf32> to vector<16x1xf32>
    %cst_211 = arith.constant 3.200000e+01 : f32
    %431 = vector.broadcast %cst_211 : f32 to vector<16x1xf32>
    %432 = arith.divf %430, %431 : vector<16x1xf32>
    %433 = vector.broadcast %432 : vector<16x1xf32> to vector<16x32xf32>
    %434 = arith.subf %426, %433 : vector<16x32xf32>
    %435 = arith.mulf %434, %434 : vector<16x32xf32>
    %cst_212 = arith.constant dense<0.000000e+00> : vector<16xf32>
    %436 = vector.multi_reduction <add>, %435, %cst_212 [1] : vector<16x32xf32> to vector<16xf32>
    %437 = vector.shape_cast %436 : vector<16xf32> to vector<16x1xf32>
    %cst_213 = arith.constant 3.200000e+01 : f32
    %438 = vector.broadcast %cst_213 : f32 to vector<16x1xf32>
    %439 = arith.divf %437, %438 : vector<16x1xf32>
    %440 = vector.broadcast %432 : vector<16x1xf32> to vector<16x32xf32>
    %441 = arith.subf %426, %440 : vector<16x32xf32>
    %cst_214 = arith.constant 9.99999974E-6 : f32
    %442 = vector.broadcast %cst_214 : f32 to vector<16x1xf32>
    %443 = arith.addf %439, %442 : vector<16x1xf32>
    %444 = math.rsqrt %443 : vector<16x1xf32>
    %445 = vector.broadcast %444 : vector<16x1xf32> to vector<16x32xf32>
    %446 = arith.mulf %441, %445 : vector<16x32xf32>
    %447 = vector.broadcast %427 : vector<1x32xf32> to vector<16x32xf32>
    %448 = arith.mulf %446, %447 : vector<16x32xf32>
    %449 = vector.broadcast %428 : vector<1x32xf32> to vector<16x32xf32>
    %450 = arith.addf %448, %449 : vector<16x32xf32>
    %451 = arith.truncf %450 : vector<16x32xf32> to vector<16x32xbf16>
    %c1_215 = arith.constant 1 : index
    %c0_216 = arith.constant 0 : index
    %c0_217 = arith.constant 0 : index
    %c0_218 = arith.constant 0 : index
    %452 = vector.load %arg21[%c1_215, %c0_216, %c0_217, %c0_218] : memref<2x2x32x32xbf16, #tpu.memory_space<vmem>>, vector<1x1x32x32xbf16>
    %453 = vector.shape_cast %452 : vector<1x1x32x32xbf16> to vector<32x32xbf16>
    %cst_219 = arith.constant dense<0.000000e+00> : vector<16x32xf32>
    %454 = tpu.matmul %451, %453, %cst_219 {dimension_numbers = #tpu.dot_dimension_numbers<[1], [0], [0], [1], [0, 0, 1, 1], [], []>} : vector<16x32xbf16>, vector<32x32xbf16>, vector<16x32xf32> -> vector<16x32xf32>
    %c1_220 = arith.constant 1 : index
    %c0_221 = arith.constant 0 : index
    %c0_222 = arith.constant 0 : index
    %c0_223 = arith.constant 0 : index
    %455 = vector.load %arg22[%c1_220, %c0_221, %c0_222, %c0_223] : memref<2x2x1x32xf32, #tpu.memory_space<vmem>>, vector<1x1x1x32xf32>
    %456 = vector.shape_cast %455 : vector<1x1x1x32xf32> to vector<1x32xf32>
    %457 = vector.broadcast %456 : vector<1x32xf32> to vector<16x32xf32>
    %458 = arith.addf %454, %457 : vector<16x32xf32>
    %cst_224 = arith.constant 0.000000e+00 : f32
    %459 = vector.broadcast %cst_224 : f32 to vector<16x32xf32>
    %460 = arith.maximumf %458, %459 : vector<16x32xf32>
    %461 = arith.truncf %460 : vector<16x32xf32> to vector<16x32xbf16>
    %c1_225 = arith.constant 1 : index
    %c1_226 = arith.constant 1 : index
    %c0_227 = arith.constant 0 : index
    %c0_228 = arith.constant 0 : index
    %462 = vector.load %arg21[%c1_225, %c1_226, %c0_227, %c0_228] : memref<2x2x32x32xbf16, #tpu.memory_space<vmem>>, vector<1x1x32x32xbf16>
    %463 = vector.shape_cast %462 : vector<1x1x32x32xbf16> to vector<32x32xbf16>
    %cst_229 = arith.constant dense<0.000000e+00> : vector<16x32xf32>
    %464 = tpu.matmul %461, %463, %cst_229 {dimension_numbers = #tpu.dot_dimension_numbers<[1], [0], [0], [1], [0, 0, 1, 1], [], []>} : vector<16x32xbf16>, vector<32x32xbf16>, vector<16x32xf32> -> vector<16x32xf32>
    %c1_230 = arith.constant 1 : index
    %c1_231 = arith.constant 1 : index
    %c0_232 = arith.constant 0 : index
    %c0_233 = arith.constant 0 : index
    %465 = vector.load %arg22[%c1_230, %c1_231, %c0_232, %c0_233] : memref<2x2x1x32xf32, #tpu.memory_space<vmem>>, vector<1x1x1x32xf32>
    %466 = vector.shape_cast %465 : vector<1x1x1x32xf32> to vector<1x32xf32>
    %467 = vector.broadcast %466 : vector<1x32xf32> to vector<16x32xf32>
    %468 = arith.addf %464, %467 : vector<16x32xf32>
    %cst_234 = arith.constant 0.000000e+00 : f32
    %469 = vector.broadcast %cst_234 : f32 to vector<16x32xf32>
    %470 = arith.maximumf %468, %469 : vector<16x32xf32>
    %471 = arith.truncf %426 : vector<16x32xf32> to vector<16x32xbf16>
    %472 = arith.truncf %470 : vector<16x32xf32> to vector<16x32xbf16>
    %c1_235 = arith.constant 1 : index
    %c1_236 = arith.constant 1 : index
    %c0_237 = arith.constant 0 : index
    %c0_238 = arith.constant 0 : index
    %473 = vector.load %arg17[%c1_235, %c1_236, %c0_237, %c0_238] : memref<2x2x32x96xbf16, #tpu.memory_space<vmem>>, vector<1x1x32x96xbf16>
    %474 = vector.shape_cast %473 : vector<1x1x32x96xbf16> to vector<32x96xbf16>
    %cst_239 = arith.constant dense<0.000000e+00> : vector<16x96xf32>
    %475 = tpu.matmul %472, %474, %cst_239 {dimension_numbers = #tpu.dot_dimension_numbers<[1], [0], [0], [1], [0, 0, 1, 1], [], []>} : vector<16x32xbf16>, vector<32x96xbf16>, vector<16x96xf32> -> vector<16x96xf32>
    %c1_240 = arith.constant 1 : index
    %c1_241 = arith.constant 1 : index
    %c0_242 = arith.constant 0 : index
    %c0_243 = arith.constant 0 : index
    %476 = vector.load %arg18[%c1_240, %c1_241, %c0_242, %c0_243] : memref<2x2x32x64xbf16, #tpu.memory_space<vmem>>, vector<1x1x32x64xbf16>
    %477 = vector.shape_cast %476 : vector<1x1x32x64xbf16> to vector<32x64xbf16>
    %cst_244 = arith.constant dense<0.000000e+00> : vector<16x64xf32>
    %478 = tpu.matmul %471, %477, %cst_244 {dimension_numbers = #tpu.dot_dimension_numbers<[1], [0], [0], [1], [0, 0, 1, 1], [], []>} : vector<16x32xbf16>, vector<32x64xbf16>, vector<16x64xf32> -> vector<16x64xf32>
    %479 = vector.extract_strided_slice %475 {offsets = [0, 0], sizes = [16, 32], strides = [1, 1]} : vector<16x96xf32> to vector<16x32xf32>
    %480 = vector.extract_strided_slice %478 {offsets = [0, 0], sizes = [16, 32], strides = [1, 1]} : vector<16x64xf32> to vector<16x32xf32>
    %481 = arith.addf %479, %480 : vector<16x32xf32>
    %482 = arith.negf %481 : vector<16x32xf32>
    %483 = math.exp %482 : vector<16x32xf32>
    %cst_245 = arith.constant 1.000000e+00 : f32
    %484 = vector.broadcast %cst_245 : f32 to vector<16x32xf32>
    %485 = arith.addf %484, %483 : vector<16x32xf32>
    %486 = arith.divf %484, %485 : vector<16x32xf32>
    %487 = vector.extract_strided_slice %475 {offsets = [0, 32], sizes = [16, 32], strides = [1, 1]} : vector<16x96xf32> to vector<16x32xf32>
    %488 = vector.extract_strided_slice %478 {offsets = [0, 32], sizes = [16, 32], strides = [1, 1]} : vector<16x64xf32> to vector<16x32xf32>
    %489 = arith.addf %487, %488 : vector<16x32xf32>
    %c1_246 = arith.constant 1 : index
    %c1_247 = arith.constant 1 : index
    %c0_248 = arith.constant 0 : index
    %c0_249 = arith.constant 0 : index
    %490 = vector.load %arg20[%c1_246, %c1_247, %c0_248, %c0_249] : memref<2x2x1x32xf32, #tpu.memory_space<vmem>>, vector<1x1x1x32xf32>
    %491 = vector.shape_cast %490 : vector<1x1x1x32xf32> to vector<1x32xf32>
    %492 = vector.broadcast %491 : vector<1x32xf32> to vector<16x32xf32>
    %493 = arith.subf %489, %492 : vector<16x32xf32>
    %494 = arith.negf %493 : vector<16x32xf32>
    %495 = math.exp %494 : vector<16x32xf32>
    %cst_250 = arith.constant 1.000000e+00 : f32
    %496 = vector.broadcast %cst_250 : f32 to vector<16x32xf32>
    %497 = arith.addf %496, %495 : vector<16x32xf32>
    %498 = arith.divf %496, %497 : vector<16x32xf32>
    %499 = vector.extract_strided_slice %475 {offsets = [0, 64], sizes = [16, 32], strides = [1, 1]} : vector<16x96xf32> to vector<16x32xf32>
    %500 = arith.mulf %486, %426 : vector<16x32xf32>
    %501 = arith.truncf %500 : vector<16x32xf32> to vector<16x32xbf16>
    %c1_251 = arith.constant 1 : index
    %c1_252 = arith.constant 1 : index
    %c0_253 = arith.constant 0 : index
    %c0_254 = arith.constant 0 : index
    %502 = vector.load %arg19[%c1_251, %c1_252, %c0_253, %c0_254] : memref<2x2x32x32xbf16, #tpu.memory_space<vmem>>, vector<1x1x32x32xbf16>
    %503 = vector.shape_cast %502 : vector<1x1x32x32xbf16> to vector<32x32xbf16>
    %cst_255 = arith.constant dense<0.000000e+00> : vector<16x32xf32>
    %504 = tpu.matmul %501, %503, %cst_255 {dimension_numbers = #tpu.dot_dimension_numbers<[1], [0], [0], [1], [0, 0, 1, 1], [], []>} : vector<16x32xbf16>, vector<32x32xbf16>, vector<16x32xf32> -> vector<16x32xf32>
    %505 = arith.addf %499, %504 : vector<16x32xf32>
    %506 = math.tanh %505 : vector<16x32xf32>
    %cst_256 = arith.constant 1.000000e+00 : f32
    %507 = vector.broadcast %cst_256 : f32 to vector<16x32xf32>
    %508 = arith.subf %507, %498 : vector<16x32xf32>
    %509 = arith.mulf %508, %426 : vector<16x32xf32>
    %510 = arith.mulf %498, %506 : vector<16x32xf32>
    %511 = arith.addf %509, %510 : vector<16x32xf32>
    %c0_257 = arith.constant 0 : index
    %c0_258 = arith.constant 0 : index
    %512 = vector.load %arg23[%c0_257, %c0_258] : memref<16x32xf32, #tpu.memory_space<vmem>>, vector<16x32xf32>
    tpu.vector_store %arg23[%c0_257, %c0_258], %511 {strides = array<i32>} : memref<16x32xf32, #tpu.memory_space<vmem>>, vector<16x32xf32>,
    return
  }
  func.func @transform_0(%arg0: i32) -> (i32, i32) {
    %c0_i32 = arith.constant 0 : i32
    %c0_i32_0 = arith.constant 0 : i32
    %c0_i32_1 = arith.constant 0 : i32
    return %c0_i32, %c0_i32_0 : i32, i32
  }
  func.func @transform_1(%arg0: i32) -> (i32, i32, i32, i32) {
    %c0_i32 = arith.constant 0 : i32
    %c0_i32_0 = arith.constant 0 : i32
    %c0_i32_1 = arith.constant 0 : i32
    %c0_i32_2 = arith.constant 0 : i32
    %c0_i32_3 = arith.constant 0 : i32
    return %c0_i32, %c0_i32_0, %c0_i32_1, %c0_i32_2 : i32, i32, i32, i32
  }
  func.func @transform_2(%arg0: i32) -> (i32, i32) {
    %c0_i32 = arith.constant 0 : i32
    %c0_i32_0 = arith.constant 0 : i32
    %c0_i32_1 = arith.constant 0 : i32
    return %c0_i32, %c0_i32_0 : i32, i32
  }
  func.func @transform_3(%arg0: i32) -> (i32, i32) {
    %c0_i32 = arith.constant 0 : i32
    %c0_i32_0 = arith.constant 0 : i32
    %c0_i32_1 = arith.constant 0 : i32
    return %c0_i32, %c0_i32_0 : i32, i32
  }
  func.func @transform_4(%arg0: i32) -> (i32, i32) {
    %c0_i32 = arith.constant 0 : i32
    %c0_i32_0 = arith.constant 0 : i32
    %c0_i32_1 = arith.constant 0 : i32
    return %c0_i32, %c0_i32_0 : i32, i32
  }
  func.func @transform_5(%arg0: i32) -> (i32, i32) {
    %c0_i32 = arith.constant 0 : i32
    %c0_i32_0 = arith.constant 0 : i32
    %c0_i32_1 = arith.constant 0 : i32
    return %c0_i32, %c0_i32_0 : i32, i32
  }
  func.func @transform_6(%arg0: i32) -> (i32, i32, i32) {
    %c0_i32 = arith.constant 0 : i32
    %c0_i32_0 = arith.constant 0 : i32
    %c0_i32_1 = arith.constant 0 : i32
    %c0_i32_2 = arith.constant 0 : i32
    return %c0_i32, %c0_i32_0, %c0_i32_1 : i32, i32, i32
  }
  func.func @transform_7(%arg0: i32) -> (i32, i32, i32) {
    %c0_i32 = arith.constant 0 : i32
    %c0_i32_0 = arith.constant 0 : i32
    %c0_i32_1 = arith.constant 0 : i32
    %c0_i32_2 = arith.constant 0 : i32
    return %c0_i32, %c0_i32_0, %c0_i32_1 : i32, i32, i32
  }
  func.func @transform_8(%arg0: i32) -> (i32, i32, i32) {
    %c0_i32 = arith.constant 0 : i32
    %c0_i32_0 = arith.constant 0 : i32
    %c0_i32_1 = arith.constant 0 : i32
    %c0_i32_2 = arith.constant 0 : i32
    return %c0_i32, %c0_i32_0, %c0_i32_1 : i32, i32, i32
  }
  func.func @transform_9(%arg0: i32) -> (i32, i32, i32) {
    %c0_i32 = arith.constant 0 : i32
    %c0_i32_0 = arith.constant 0 : i32
    %c0_i32_1 = arith.constant 0 : i32
    %c0_i32_2 = arith.constant 0 : i32
    return %c0_i32, %c0_i32_0, %c0_i32_1 : i32, i32, i32
  }
  func.func @transform_10(%arg0: i32) -> (i32, i32, i32) {
    %c0_i32 = arith.constant 0 : i32
    %c0_i32_0 = arith.constant 0 : i32
    %c0_i32_1 = arith.constant 0 : i32
    %c0_i32_2 = arith.constant 0 : i32
    return %c0_i32, %c0_i32_0, %c0_i32_1 : i32, i32, i32
  }
  func.func @transform_11(%arg0: i32) -> (i32, i32, i32) {
    %c0_i32 = arith.constant 0 : i32
    %c0_i32_0 = arith.constant 0 : i32
    %c0_i32_1 = arith.constant 0 : i32
    %c0_i32_2 = arith.constant 0 : i32
    return %c0_i32, %c0_i32_0, %c0_i32_1 : i32, i32, i32
  }
  func.func @transform_12(%arg0: i32) -> (i32, i32, i32) {
    %c0_i32 = arith.constant 0 : i32
    %c0_i32_0 = arith.constant 0 : i32
    %c0_i32_1 = arith.constant 0 : i32
    %c0_i32_2 = arith.constant 0 : i32
    return %c0_i32, %c0_i32_0, %c0_i32_1 : i32, i32, i32
  }
  func.func @transform_13(%arg0: i32) -> (i32, i32) {
    %c0_i32 = arith.constant 0 : i32
    %c0_i32_0 = arith.constant 0 : i32
    %c0_i32_1 = arith.constant 0 : i32
    return %c0_i32, %c0_i32_0 : i32, i32
  }
  func.func @transform_14(%arg0: i32) -> (i32, i32, i32) {
    %c0_i32 = arith.constant 0 : i32
    %c0_i32_0 = arith.constant 0 : i32
    %c0_i32_1 = arith.constant 0 : i32
    %c0_i32_2 = arith.constant 0 : i32
    return %c0_i32, %c0_i32_0, %c0_i32_1 : i32, i32, i32
  }
  func.func @transform_15(%arg0: i32) -> (i32, i32, i32) {
    %c0_i32 = arith.constant 0 : i32
    %c0_i32_0 = arith.constant 0 : i32
    %c0_i32_1 = arith.constant 0 : i32
    %c0_i32_2 = arith.constant 0 : i32
    return %c0_i32, %c0_i32_0, %c0_i32_1 : i32, i32, i32
  }
  func.func @transform_16(%arg0: i32) -> (i32, i32, i32, i32) {
    %c0_i32 = arith.constant 0 : i32
    %c0_i32_0 = arith.constant 0 : i32
    %c0_i32_1 = arith.constant 0 : i32
    %c0_i32_2 = arith.constant 0 : i32
    %c0_i32_3 = arith.constant 0 : i32
    return %c0_i32, %c0_i32_0, %c0_i32_1, %c0_i32_2 : i32, i32, i32, i32
  }
  func.func @transform_17(%arg0: i32) -> (i32, i32, i32, i32) {
    %c0_i32 = arith.constant 0 : i32
    %c0_i32_0 = arith.constant 0 : i32
    %c0_i32_1 = arith.constant 0 : i32
    %c0_i32_2 = arith.constant 0 : i32
    %c0_i32_3 = arith.constant 0 : i32
    return %c0_i32, %c0_i32_0, %c0_i32_1, %c0_i32_2 : i32, i32, i32, i32
  }
  func.func @transform_18(%arg0: i32) -> (i32, i32, i32, i32) {
    %c0_i32 = arith.constant 0 : i32
    %c0_i32_0 = arith.constant 0 : i32
    %c0_i32_1 = arith.constant 0 : i32
    %c0_i32_2 = arith.constant 0 : i32
    %c0_i32_3 = arith.constant 0 : i32
    return %c0_i32, %c0_i32_0, %c0_i32_1, %c0_i32_2 : i32, i32, i32, i32
  }
  func.func @transform_19(%arg0: i32) -> (i32, i32, i32, i32) {
    %c0_i32 = arith.constant 0 : i32
    %c0_i32_0 = arith.constant 0 : i32
    %c0_i32_1 = arith.constant 0 : i32
    %c0_i32_2 = arith.constant 0 : i32
    %c0_i32_3 = arith.constant 0 : i32
    return %c0_i32, %c0_i32_0, %c0_i32_1, %c0_i32_2 : i32, i32, i32, i32
  }
  func.func @transform_20(%arg0: i32) -> (i32, i32, i32, i32) {
    %c0_i32 = arith.constant 0 : i32
    %c0_i32_0 = arith.constant 0 : i32
    %c0_i32_1 = arith.constant 0 : i32
    %c0_i32_2 = arith.constant 0 : i32
    %c0_i32_3 = arith.constant 0 : i32
    return %c0_i32, %c0_i32_0, %c0_i32_1, %c0_i32_2 : i32, i32, i32, i32
  }
  func.func @transform_21(%arg0: i32) -> (i32, i32, i32, i32) {
    %c0_i32 = arith.constant 0 : i32
    %c0_i32_0 = arith.constant 0 : i32
    %c0_i32_1 = arith.constant 0 : i32
    %c0_i32_2 = arith.constant 0 : i32
    %c0_i32_3 = arith.constant 0 : i32
    return %c0_i32, %c0_i32_0, %c0_i32_1, %c0_i32_2 : i32, i32, i32, i32
  }
  func.func @transform_22(%arg0: i32) -> (i32, i32) {
    %c0_i32 = arith.constant 0 : i32
    %c0_i32_0 = arith.constant 0 : i32
    %c0_i32_1 = arith.constant 0 : i32
    return %c0_i32, %c0_i32_0 : i32, i32
  }
}

</mosaic_0001>

<llo_original>
// kernel: gtrxl_forward.1
$region0: #{gtrxl_forward.1}
  #allocation0 [shape = 'u32[]', space=smem, size = 0x4, offset = 0x4, fixed_abs, tag = 'smem constant byte address 0x4 - core index']
  #allocation1 [shape = 'u32[72,128]{1,0:T(1,128)}', space=vmem, size = 0x9000, scoped, tag = 'internal scratch']
  %s0 = inlined_call_operand.vmem [shape: f32[16,16], index: 0, kind: input, shape index: {}]
  %s1 = inlined_call_operand.vmem [shape: f32[2,2,8,32], index: 1, kind: input, shape index: {}]
  %s2 = inlined_call_operand.vmem [shape: f32[16,32], index: 2, kind: input, shape index: {}]
  %s3 = inlined_call_operand.vmem [shape: f32[16,256], index: 3, kind: input, shape index: {}]
  %s4 = inlined_call_operand.vmem [shape: bf16[16,32], index: 4, kind: input, shape index: {}]
  %s5 = inlined_call_operand.vmem [shape: f32[1,32], index: 5, kind: input, shape index: {}]
  %s6 = inlined_call_operand.vmem [shape: f32[2,4,32], index: 6, kind: input, shape index: {}]
  %s7 = inlined_call_operand.vmem [shape: bf16[2,32,32], index: 7, kind: input, shape index: {}]
  %s8 = inlined_call_operand.vmem [shape: f32[2,1,32], index: 8, kind: input, shape index: {}]
  %s9 = inlined_call_operand.vmem [shape: f32[2,1,32], index: 9, kind: input, shape index: {}]
  %s10 = inlined_call_operand.vmem [shape: bf16[2,32,64], index: 10, kind: input, shape index: {}]
  %s11 = inlined_call_operand.vmem [shape: f32[2,1,64], index: 11, kind: input, shape index: {}]
  %s12 = inlined_call_operand.vmem [shape: bf16[2,32,256], index: 12, kind: input, shape index: {}]
  %s13 = inlined_call_operand.vmem [shape: f32[256,32], index: 13, kind: input, shape index: {}]
  %s14 = inlined_call_operand.vmem [shape: bf16[2,32,32], index: 14, kind: input, shape index: {}]
  %s15 = inlined_call_operand.vmem [shape: f32[2,1,32], index: 15, kind: input, shape index: {}]
  %s16 = inlined_call_operand.vmem [shape: bf16[2,2,32,96], index: 16, kind: input, shape index: {}]
  %s17 = inlined_call_operand.vmem [shape: bf16[2,2,32,64], index: 17, kind: input, shape index: {}]
  %s18 = inlined_call_operand.vmem [shape: bf16[2,2,32,32], index: 18, kind: input, shape index: {}]
  %s19 = inlined_call_operand.vmem [shape: f32[2,2,1,32], index: 19, kind: input, shape index: {}]
  %s20 = inlined_call_operand.vmem [shape: bf16[2,2,32,32], index: 20, kind: input, shape index: {}]
  %s21 = inlined_call_operand.vmem [shape: f32[2,2,1,32], index: 21, kind: input, shape index: {}]
  %s22 = inlined_call_operand.vmem [shape: f32[16,32], index: 22, kind: output, shape index: {}]
  %s23 = sld [smem:[#allocation0]]
  $region98: #{gtrxl_forward.1} parent=0
    _
  %s25 = ssub.s32 1, %s23
  %s26 = scalar_select 0, %s25, %s23
  // Predicated region
  $region2: #{gtrxl_forward.1} parent=0 // pred_check
    _
  $region3: #{gtrxl_forward.1} parent=0 // pred_check_branch
    %28 = sbr.rel (0) target = $region5
  $region4: #{gtrxl_forward.1} parent=0 // pred_region
    _
  $region5: #{gtrxl_forward.1} parent=0 // pred_fallthru
    _
  // Predicated region
  $region6: #{gtrxl_forward.1} parent=0 // pred_check
    _
  $region7: #{gtrxl_forward.1} parent=0 // pred_check_branch
    %30 = sbr.rel (0) target = $region9
  $region8: #{gtrxl_forward.1} parent=0 // pred_region
    _
  $region9: #{gtrxl_forward.1} parent=0 // pred_fallthru
    _
  // Predicated region
  $region10: #{gtrxl_forward.1} parent=0 // pred_check
    _
  $region11: #{gtrxl_forward.1} parent=0 // pred_check_branch
    %32 = sbr.rel (0) target = $region13
  $region12: #{gtrxl_forward.1} parent=0 // pred_region
    _
  $region13: #{gtrxl_forward.1} parent=0 // pred_fallthru
    _
  // Predicated region
  $region14: #{gtrxl_forward.1} parent=0 // pred_check
    _
  $region15: #{gtrxl_forward.1} parent=0 // pred_check_branch
    %34 = sbr.rel (0) target = $region17
  $region16: #{gtrxl_forward.1} parent=0 // pred_region
    _
  $region17: #{gtrxl_forward.1} parent=0 // pred_fallthru
    _
  // Predicated region
  $region18: #{gtrxl_forward.1} parent=0 // pred_check
    _
  $region19: #{gtrxl_forward.1} parent=0 // pred_check_branch
    %36 = sbr.rel (0) target = $region21
  $region20: #{gtrxl_forward.1} parent=0 // pred_region
    _
  $region21: #{gtrxl_forward.1} parent=0 // pred_fallthru
    _
  // Predicated region
  $region22: #{gtrxl_forward.1} parent=0 // pred_check
    _
  $region23: #{gtrxl_forward.1} parent=0 // pred_check_branch
    %38 = sbr.rel (0) target = $region25
  $region24: #{gtrxl_forward.1} parent=0 // pred_region
    _
  $region25: #{gtrxl_forward.1} parent=0 // pred_fallthru
    _
  // Predicated region
  $region26: #{gtrxl_forward.1} parent=0 // pred_check
    _
  $region27: #{gtrxl_forward.1} parent=0 // pred_check_branch
    %40 = sbr.rel (0) target = $region29
  $region28: #{gtrxl_forward.1} parent=0 // pred_region
    _
  $region29: #{gtrxl_forward.1} parent=0 // pred_fallthru
    _
  // Predicated region
  $region30: #{gtrxl_forward.1} parent=0 // pred_check
    _
  $region31: #{gtrxl_forward.1} parent=0 // pred_check_branch
    %42 = sbr.rel (0) target = $region33
  $region32: #{gtrxl_forward.1} parent=0 // pred_region
    _
  $region33: #{gtrxl_forward.1} parent=0 // pred_fallthru
    _
  // Predicated region
  $region34: #{gtrxl_forward.1} parent=0 // pred_check
    _
  $region35: #{gtrxl_forward.1} parent=0 // pred_check_branch
    %44 = sbr.rel (0) target = $region37
  $region36: #{gtrxl_forward.1} parent=0 // pred_region
    _
  $region37: #{gtrxl_forward.1} parent=0 // pred_fallthru
    _
  // Predicated region
  $region38: #{gtrxl_forward.1} parent=0 // pred_check
    _
  $region39: #{gtrxl_forward.1} parent=0 // pred_check_branch
    %46 = sbr.rel (0) target = $region41
  $region40: #{gtrxl_forward.1} parent=0 // pred_region
    _
  $region41: #{gtrxl_forward.1} parent=0 // pred_fallthru
    _
  // Predicated region
  $region42: #{gtrxl_forward.1} parent=0 // pred_check
    _
  $region43: #{gtrxl_forward.1} parent=0 // pred_check_branch
    %48 = sbr.rel (0) target = $region45
  $region44: #{gtrxl_forward.1} parent=0 // pred_region
    _
  $region45: #{gtrxl_forward.1} parent=0 // pred_fallthru
    _
  // Predicated region
  $region46: #{gtrxl_forward.1} parent=0 // pred_check
    _
  $region47: #{gtrxl_forward.1} parent=0 // pred_check_branch
    %50 = sbr.rel (0) target = $region49
  $region48: #{gtrxl_forward.1} parent=0 // pred_region
    _
  $region49: #{gtrxl_forward.1} parent=0 // pred_fallthru
    _
  // Predicated region
  $region50: #{gtrxl_forward.1} parent=0 // pred_check
    _
  $region51: #{gtrxl_forward.1} parent=0 // pred_check_branch
    %52 = sbr.rel (0) target = $region53
  $region52: #{gtrxl_forward.1} parent=0 // pred_region
    _
  $region53: #{gtrxl_forward.1} parent=0 // pred_fallthru
    _
  // Predicated region
  $region54: #{gtrxl_forward.1} parent=0 // pred_check
    _
  $region55: #{gtrxl_forward.1} parent=0 // pred_check_branch
    %54 = sbr.rel (0) target = $region57
  $region56: #{gtrxl_forward.1} parent=0 // pred_region
    _
  $region57: #{gtrxl_forward.1} parent=0 // pred_fallthru
    _
  // Predicated region
  $region58: #{gtrxl_forward.1} parent=0 // pred_check
    _
  $region59: #{gtrxl_forward.1} parent=0 // pred_check_branch
    %56 = sbr.rel (0) target = $region61
  $region60: #{gtrxl_forward.1} parent=0 // pred_region
    _
  $region61: #{gtrxl_forward.1} parent=0 // pred_fallthru
    _
  // Predicated region
  $region62: #{gtrxl_forward.1} parent=0 // pred_check
    _
  $region63: #{gtrxl_forward.1} parent=0 // pred_check_branch
    %58 = sbr.rel (0) target = $region65
  $region64: #{gtrxl_forward.1} parent=0 // pred_region
    _
  $region65: #{gtrxl_forward.1} parent=0 // pred_fallthru
    _
  // Predicated region
  $region66: #{gtrxl_forward.1} parent=0 // pred_check
    _
  $region67: #{gtrxl_forward.1} parent=0 // pred_check_branch
    %60 = sbr.rel (0) target = $region69
  $region68: #{gtrxl_forward.1} parent=0 // pred_region
    _
  $region69: #{gtrxl_forward.1} parent=0 // pred_fallthru
    _
  // Predicated region
  $region70: #{gtrxl_forward.1} parent=0 // pred_check
    _
  $region71: #{gtrxl_forward.1} parent=0 // pred_check_branch
    %62 = sbr.rel (0) target = $region73
  $region72: #{gtrxl_forward.1} parent=0 // pred_region
    _
  $region73: #{gtrxl_forward.1} parent=0 // pred_fallthru
    _
  // Predicated region
  $region74: #{gtrxl_forward.1} parent=0 // pred_check
    _
  $region75: #{gtrxl_forward.1} parent=0 // pred_check_branch
    %64 = sbr.rel (0) target = $region77
  $region76: #{gtrxl_forward.1} parent=0 // pred_region
    _
  $region77: #{gtrxl_forward.1} parent=0 // pred_fallthru
    _
  // Predicated region
  $region78: #{gtrxl_forward.1} parent=0 // pred_check
    _
  $region79: #{gtrxl_forward.1} parent=0 // pred_check_branch
    %66 = sbr.rel (0) target = $region81
  $region80: #{gtrxl_forward.1} parent=0 // pred_region
    _
  $region81: #{gtrxl_forward.1} parent=0 // pred_fallthru
    _
  // Predicated region
  $region82: #{gtrxl_forward.1} parent=0 // pred_check
    _
  $region83: #{gtrxl_forward.1} parent=0 // pred_check_branch
    %68 = sbr.rel (0) target = $region85
  $region84: #{gtrxl_forward.1} parent=0 // pred_region
    _
  $region85: #{gtrxl_forward.1} parent=0 // pred_fallthru
    _
  // Predicated region
  $region86: #{gtrxl_forward.1} parent=0 // pred_check
    _
  $region87: #{gtrxl_forward.1} parent=0 // pred_check_branch
    %70 = sbr.rel (0) target = $region89
  $region88: #{gtrxl_forward.1} parent=0 // pred_region
    _
  $region89: #{gtrxl_forward.1} parent=0 // pred_fallthru
    _
  %v72 = vld [vmem:[%s0] sm:$0xff]
  %v73 = vld [vmem:[%s0 + $0x8] sm:$0xff]
  %v74 = vpack.c.bf16 %v73, %v72
  %v75 = vld [vmem:[%s4] sm:$0xf]
  %v76 = vld [vmem:[%s4 + $0x4] sm:$0xf]
  %v77 = vld [vmem:[%s5] sm:$0x1]
  %v79 = vperm.slane %v77, 0
  %v83 = vunpack.c.l.b16 %v75
  %v84 = vunpack.c.l.b16 %v76
  %v85 = vpack.c.b16 %v84, %v83
  %vm87 = vcmask 130048
  %v89 = vsel %vm87, %v74, 0
  %91 = vmatpush.bf16.msra.mxu0 0
  %92 = vmatpush.bf16.msra.mxu0 0
  %93 = vmatpush.bf16.msra.mxu0 0
  %94 = vmatpush.bf16.msra.mxu0 0
  %95 = vmatpush.bf16.msra.mxu0 0
  %96 = vmatpush.bf16.msra.mxu0 0
  %97 = vmatpush.bf16.msra.mxu0 0
  %98 = vmatpush.bf16.msra.mxu0 %v85
  %99 = vmatmul.bf16.gmra.mxu0 %v89
  %v100 = vpop.f32.mrf.mxu0
  %v101 = vadd.f32 %v79, %v100
  %v102 = vpop.f32.mrf.mxu0
  %v103 = vadd.f32 %v79, %v102
  %104 = vdwg.mxu0
  %v105 = vmax.f32 %v101, 0.0
  %v106 = vmax.f32 %v103, 0.0
  %v107 = vld [vmem:[%s2] sm:$0xff]
  %v108 = vld [vmem:[%s2 + $0x8] sm:$0xff]
  %v109 = vld [vmem:[%s3] sm:$0xff]
  %v110 = vld [vmem:[%s3 + $0x8] sm:$0xff]
  %v111 = vld [vmem:[%s3 + $0x10] sm:$0xff]
  %v112 = vld [vmem:[%s3 + $0x18] sm:$0xff]
  %v113 = vld [vmem:[%s13] sm:$0xff]
  %v114 = vld [vmem:[%s13 + $0x8] sm:$0xff]
  %v115 = vld [vmem:[%s13 + $0x10] sm:$0xff]
  %v116 = vld [vmem:[%s13 + $0x18] sm:$0xff]
  %v117 = vld [vmem:[%s13 + $0x20] sm:$0xff]
  %v118 = vld [vmem:[%s13 + $0x28] sm:$0xff]
  %v119 = vld [vmem:[%s13 + $0x30] sm:$0xff]
  %v120 = vld [vmem:[%s13 + $0x38] sm:$0xff]
  %v121 = vld [vmem:[%s13 + $0x40] sm:$0xff]
  %v122 = vld [vmem:[%s13 + $0x48] sm:$0xff]
  %v123 = vld [vmem:[%s13 + $0x50] sm:$0xff]
  %v124 = vld [vmem:[%s13 + $0x58] sm:$0xff]
  %v125 = vld [vmem:[%s13 + $0x60] sm:$0xff]
  %v126 = vld [vmem:[%s13 + $0x68] sm:$0xff]
  %v127 = vld [vmem:[%s13 + $0x70] sm:$0xff]
  %v128 = vld [vmem:[%s13 + $0x78] sm:$0xff]
  %v129 = vld [vmem:[%s13 + $0x80] sm:$0xff]
  %v130 = vld [vmem:[%s13 + $0x88] sm:$0xff]
  %v131 = vld [vmem:[%s13 + $0x90] sm:$0xff]
  %v132 = vld [vmem:[%s13 + $0x98] sm:$0xff]
  %v133 = vld [vmem:[%s13 + $0xa0] sm:$0xff]
  %v134 = vld [vmem:[%s13 + $0xa8] sm:$0xff]
  %v135 = vld [vmem:[%s13 + $0xb0] sm:$0xff]
  %v136 = vld [vmem:[%s13 + $0xb8] sm:$0xff]
  %v137 = vld [vmem:[%s13 + $0xc0] sm:$0xff]
  %v138 = vld [vmem:[%s13 + $0xc8] sm:$0xff]
  %v139 = vld [vmem:[%s13 + $0xd0] sm:$0xff]
  %v140 = vld [vmem:[%s13 + $0xd8] sm:$0xff]
  %v141 = vld [vmem:[%s13 + $0xe0] sm:$0xff]
  %v142 = vld [vmem:[%s13 + $0xe8] sm:$0xff]
  %v143 = vld [vmem:[%s13 + $0xf0] sm:$0xff]
  %v144 = vld [vmem:[%s13 + $0xf8] sm:$0xff]
  %v145 = vld [vmem:[%s6] sm:$0xf]
  %v146 = vpack.c.bf16 %v106, %v105
  %v147 = vld [vmem:[%s1] sm:$0xff]
  %v148 = vld [vmem:[%s1 + $0x8] sm:$0xff]
  %vm149 = vcmask 261120
  %v150 = vsel %vm149, %v147, 0.0
  %151 = vadd.xlane.f32.xlu0 %v150
  %v152 = vpop.xlane.xlu0 %151
  %v153 = vsel %vm149, %v105, 0.0
  %154 = vadd.xlane.f32.xlu0 %v153
  %v155 = vpop.xlane.xlu0 %154
  %v156 = vsel %vm149, %v148, 0.0
  %157 = vadd.xlane.f32.xlu0 %v156
  %v158 = vpop.xlane.xlu0 %157
  %v159 = vsel %vm149, %v106, 0.0
  %160 = vadd.xlane.f32.xlu0 %v159
  %v161 = vpop.xlane.xlu0 %160
  %v162 = vrcp.pop 32.0
  %v163 = vmul.f32 32.0, %v162
  %v164 = vsub.f32 1.0, %v163
  %v165 = vmul.f32 %v162, %v164
  %v166 = vadd.f32 %v162, %v165
  %vm167 = vweird.f32 %v162
  %v168 = vsel %vm167, %v162, %v166
  %v169 = vmul.f32 %v152, %v168
  %v170 = vmul.f32 %v155, %v168
  %v171 = vmul.f32 %v158, %v168
  %v172 = vmul.f32 %v161, %v168
  %v173 = vsub.f32 %v147, %v169
  %v174 = vsub.f32 %v105, %v170
  %v175 = vsub.f32 %v148, %v171
  %v176 = vsub.f32 %v106, %v172
  %v177 = vmul.f32 %v173, %v173
  %v178 = vmul.f32 %v174, %v174
  %v179 = vmul.f32 %v175, %v175
  %v180 = vmul.f32 %v176, %v176
  %v181 = vsel %vm149, %v177, 0.0
  %182 = vadd.xlane.f32.xlu0 %v181
  %v183 = vpop.xlane.xlu0 %182
  %v184 = vsel %vm149, %v178, 0.0
  %185 = vadd.xlane.f32.xlu0 %v184
  %v186 = vpop.xlane.xlu0 %185
  %v187 = vsel %vm149, %v179, 0.0
  %188 = vadd.xlane.f32.xlu0 %v187
  %v189 = vpop.xlane.xlu0 %188
  %v190 = vsel %vm149, %v180, 0.0
  %191 = vadd.xlane.f32.xlu0 %v190
  %v192 = vpop.xlane.xlu0 %191
  %v193 = vmul.f32 %v183, %v168
  %v194 = vmul.f32 %v186, %v168
  %v195 = vmul.f32 %v189, %v168
  %v196 = vmul.f32 %v192, %v168
  %v197 = vadd.f32 %v193, 1e-05
  %v198 = vadd.f32 %v194, 1e-05
  %v199 = vadd.f32 %v195, 1e-05
  %v200 = vadd.f32 %v196, 1e-05
  %v201 = vrsqrt.pop %v197
  %v202 = vmul.f32 %v201, %v197
  %v203 = vmul.f32 %v202, %v201
  %v204 = vmul.f32 0.5, %v203
  %v205 = vsub.f32 1.5, %v204
  %v206 = vmul.f32 %v201, %v205
  %vm207 = vweird.f32 %v197
  %vm208 = vweird.f32 %v201
  %vm209 = vmor %vm207, %vm208
  %v210 = vsel %vm209, %v201, %v206
  %v211 = vrsqrt.pop %v198
  %v212 = vmul.f32 %v211, %v198
  %v213 = vmul.f32 %v212, %v211
  %v214 = vmul.f32 0.5, %v213
  %v215 = vsub.f32 1.5, %v214
  %v216 = vmul.f32 %v211, %v215
  %vm217 = vweird.f32 %v198
  %vm218 = vweird.f32 %v211
  %vm219 = vmor %vm217, %vm218
  %v220 = vsel %vm219, %v211, %v216
  %v221 = vrsqrt.pop %v199
  %v222 = vmul.f32 %v221, %v199
  %v223 = vmul.f32 %v222, %v221
  %v224 = vmul.f32 0.5, %v223
  %v225 = vsub.f32 1.5, %v224
  %v226 = vmul.f32 %v221, %v225
  %vm227 = vweird.f32 %v199
  %vm228 = vweird.f32 %v221
  %vm229 = vmor %vm227, %vm228
  %v230 = vsel %vm229, %v221, %v226
  %v231 = vrsqrt.pop %v200
  %v232 = vmul.f32 %v231, %v200
  %v233 = vmul.f32 %v232, %v231
  %v234 = vmul.f32 0.5, %v233
  %v235 = vsub.f32 1.5, %v234
  %v236 = vmul.f32 %v231, %v235
  %vm237 = vweird.f32 %v200
  %vm238 = vweird.f32 %v231
  %vm239 = vmor %vm237, %vm238
  %v240 = vsel %vm239, %v231, %v236
  %v241 = vmul.f32 %v173, %v210
  %v242 = vmul.f32 %v174, %v220
  %v243 = vmul.f32 %v175, %v230
  %v244 = vmul.f32 %v176, %v240
  %v245 = vperm.slane %v145, 0
  %v246 = vmul.f32 %v241, %v245
  %v247 = vmul.f32 %v242, %v245
  %v248 = vmul.f32 %v243, %v245
  %v249 = vmul.f32 %v244, %v245
  %v250 = vperm.slane %v145, 1
  %v251 = vadd.f32 %v246, %v250
  %v252 = vadd.f32 %v247, %v250
  %v253 = vadd.f32 %v248, %v250
  %v254 = vadd.f32 %v249, %v250
  %v255 = vpack.c.bf16 %v252, %v251
  %v256 = vpack.c.bf16 %v254, %v253
  %v257 = vld [vmem:[%s7] sm:$0xf]
  %v258 = vld [vmem:[%s7 + $0x4] sm:$0xf]
  %v259 = vld [vmem:[%s7 + $0x8] sm:$0xf]
  %v260 = vld [vmem:[%s7 + $0xc] sm:$0xf]
  %v265 = vunpack.c.l.b16 %v257
  %v266 = vunpack.c.l.b16 %v258
  %v267 = vunpack.c.l.b16 %v259
  %v268 = vunpack.c.l.b16 %v260
  %v269 = vpack.c.b16 %v266, %v265
  %v270 = vpack.c.b16 %v268, %v267
  %v274 = vsel %vm149, %v146, 0
  %276 = vmatpush.bf16.msra.mxu0 0
  %277 = vmatpush.bf16.msra.mxu0 0
  %278 = vmatpush.bf16.msra.mxu0 0
  %279 = vmatpush.bf16.msra.mxu0 0
  %280 = vmatpush.bf16.msra.mxu0 0
  %281 = vmatpush.bf16.msra.mxu0 0
  %282 = vmatpush.bf16.msra.mxu0 %v270
  %283 = vmatpush.bf16.msra.mxu0 %v269
  %284 = vmatmul.bf16.gmra.mxu0 %v274
  %v285 = vpop.f32.mrf.mxu0
  %v286 = vadd.f32 0.0, %v285
  %v287 = vpop.f32.mrf.mxu0
  %v288 = vadd.f32 0.0, %v287
  %289 = vdwg.mxu0
  %v290 = vld [vmem:[%s10] sm:$0xf]
  %v291 = vld [vmem:[%s10 + $0x4] sm:$0xf]
  %v292 = vld [vmem:[%s10 + $0x8] sm:$0xf]
  %v293 = vld [vmem:[%s10 + $0xc] sm:$0xf]
  %v294 = vld [vmem:[%s11] sm:$0x1]
  %v296 = vperm.slane %v294, 0
  %v302 = vunpack.c.l.b16 %v290
  %v303 = vunpack.c.l.b16 %v291
  %v304 = vunpack.c.l.b16 %v292
  %v305 = vunpack.c.l.b16 %v293
  %v306 = vpack.c.b16 %v303, %v302
  %v307 = vpack.c.b16 %v305, %v304
  %v311 = vsel %vm149, %v255, 0
  %v314 = vsel %vm149, %v256, 0
  %316 = vmatpush.bf16.msra.mxu0 0
  %317 = vmatpush.bf16.msra.mxu0 0
  %318 = vmatpush.bf16.msra.mxu0 0
  %319 = vmatpush.bf16.msra.mxu0 0
  %320 = vmatpush.bf16.msra.mxu0 0
  %321 = vmatpush.bf16.msra.mxu0 0
  %322 = vmatpush.bf16.msra.mxu0 %v307
  %323 = vmatpush.bf16.msra.mxu0 %v306
  %324 = vmatmul.bf16.gmra.mxu0 %v311
  %v325 = vpop.f32.mrf.mxu0
  %v326 = vadd.f32 %v296, %v325
  %v327 = vpop.f32.mrf.mxu0
  %v328 = vadd.f32 %v296, %v327
  %329 = vmatmul.bf16.gmra.mxu0 %v314
  %v330 = vpop.f32.mrf.mxu0
  %v331 = vadd.f32 %v296, %v330
  %v332 = vpop.f32.mrf.mxu0
  %v333 = vadd.f32 %v296, %v332
  %334 = vdwg.mxu0
  %v335 = vpack.c.bf16 %v326, %v326
  %v336 = vpack.c.bf16 %v328, %v328
  %v337 = vpack.c.bf16 %v331, %v331
  %v338 = vpack.c.bf16 %v333, %v333
  %v339 = vld [vmem:[%s8] sm:$0x1]
  %v341 = vperm.slane %v339, 0
  %v343 = vadd.f32 %v286, %v341
  %v344 = vadd.f32 %v288, %v341
  %v345 = vpack.c.bf16 %v343, %v343
  %v346 = vpack.c.bf16 %v344, %v344
  %v347 = vld [vmem:[%s9] sm:$0x1]
  %v349 = vperm.slane %v347, 0
  %v351 = vadd.f32 %v286, %v349
  %v352 = vadd.f32 %v288, %v349
  %v353 = vpack.c.bf16 %v352, %v351
  %v354 = vld [vmem:[%s12] sm:$0xff]
  %v355 = vld [vmem:[%s12 + $0x8] sm:$0xff]
  %v356 = vld [vmem:[%s12 + $0x10] sm:$0xff]
  %v357 = vld [vmem:[%s12 + $0x18] sm:$0xff]
  %v362 = vunpack.c.l.b16 %v354
  %v363 = vunpack.c.h.b16 %v354
  %v364 = vunpack.c.l.b16 %v355
  %v365 = vunpack.c.h.b16 %v355
  %v366 = vunpack.c.l.b16 %v356
  %v367 = vunpack.c.h.b16 %v356
  %v368 = vunpack.c.l.b16 %v357
  %v369 = vunpack.c.h.b16 %v357
  %v370 = vpack.c.b16 %v364, %v362
  %v371 = vpack.c.b16 %v365, %v363
  %v372 = vpack.c.b16 %v368, %v366
  %v373 = vpack.c.b16 %v369, %v367
  %v379 = vsel %vm149, %v353, 0
  %381 = vmatpush.bf16.msra.mxu0 0
  %382 = vmatpush.bf16.msra.mxu0 0
  %383 = vmatpush.bf16.msra.mxu0 0
  %384 = vmatpush.bf16.msra.mxu0 0
  %385 = vmatpush.bf16.msra.mxu0 0
  %386 = vmatpush.bf16.msra.mxu0 0
  %387 = vmatpush.bf16.msra.mxu0 %v372
  %388 = vmatpush.bf16.msra.mxu0 %v370
  %389 = vmatmul.bf16.gmra.mxu0 %v379
  %v390 = vpop.f32.mrf.mxu0
  %v391 = vadd.f32 0.0, %v390
  %v392 = vpop.f32.mrf.mxu0
  %v393 = vadd.f32 0.0, %v392
  %394 = vdwg.mxu0
  %395 = vmatpush.bf16.msra.mxu0 0
  %396 = vmatpush.bf16.msra.mxu0 0
  %397 = vmatpush.bf16.msra.mxu0 0
  %398 = vmatpush.bf16.msra.mxu0 0
  %399 = vmatpush.bf16.msra.mxu0 0
  %400 = vmatpush.bf16.msra.mxu0 0
  %401 = vmatpush.bf16.msra.mxu0 %v373
  %402 = vmatpush.bf16.msra.mxu0 %v371
  %403 = vmatmul.bf16.gmra.mxu0 %v379
  %v404 = vpop.f32.mrf.mxu0
  %v405 = vadd.f32 0.0, %v404
  %v406 = vpop.f32.mrf.mxu0
  %v407 = vadd.f32 0.0, %v406
  %408 = vdwg.mxu0
  %v409 = vmul.f32 %v391, %v109
  %v410 = vmul.f32 %v405, %v110
  %v411 = vmul.f32 %v393, %v111
  %v412 = vmul.f32 %v407, %v112
  %413 = vmatpush.msra.mxu0 %v128
  %414 = vmatpush.msra.mxu0 %v127
  %415 = vmatpush.msra.mxu0 %v126
  %416 = vmatpush.msra.mxu0 %v125
  %417 = vmatpush.msra.mxu0 %v124
  %418 = vmatpush.msra.mxu0 %v123
  %419 = vmatpush.msra.mxu0 %v122
  %420 = vmatpush.msra.mxu0 %v121
  %421 = vmatpush.msra.mxu0 %v120
  %422 = vmatpush.msra.mxu0 %v119
  %423 = vmatpush.msra.mxu0 %v118
  %424 = vmatpush.msra.mxu0 %v117
  %425 = vmatpush.msra.mxu0 %v116
  %426 = vmatpush.msra.mxu0 %v115
  %427 = vmatpush.msra.mxu0 %v114
  %428 = vmatpush.msra.mxu0 %v113
  %429 = vmatmul.f32.gmra.mxu0 %v409
  %v430 = vpop.f32.mrf.mxu0
  %v431 = vadd.f32 %v107, %v430
  %432 = vmatmul.f32.gmra.mxu0 %v411
  %v433 = vpop.f32.mrf.mxu0
  %v434 = vadd.f32 %v108, %v433
  %435 = vdwg.mxu0
  %436 = vmatpush.msra.mxu0 %v144
  %437 = vmatpush.msra.mxu0 %v143
  %438 = vmatpush.msra.mxu0 %v142
  %439 = vmatpush.msra.mxu0 %v141
  %440 = vmatpush.msra.mxu0 %v140
  %441 = vmatpush.msra.mxu0 %v139
  %442 = vmatpush.msra.mxu0 %v138
  %443 = vmatpush.msra.mxu0 %v137
  %444 = vmatpush.msra.mxu0 %v136
  %445 = vmatpush.msra.mxu0 %v135
  %446 = vmatpush.msra.mxu0 %v134
  %447 = vmatpush.msra.mxu0 %v133
  %448 = vmatpush.msra.mxu0 %v132
  %449 = vmatpush.msra.mxu0 %v131
  %450 = vmatpush.msra.mxu0 %v130
  %451 = vmatpush.msra.mxu0 %v129
  %452 = vmatmul.f32.gmra.mxu0 %v410
  %v453 = vpop.f32.mrf.mxu0
  %v454 = vadd.f32 %v431, %v453
  %455 = vmatmul.f32.gmra.mxu0 %v412
  %v456 = vpop.f32.mrf.mxu0
  %v457 = vadd.f32 %v434, %v456
  %458 = vdwg.mxu0
  %v459 = vld [vmem:[%s15] sm:$0x1]
  %v462 = vunpack.c.l.b16 %v335
  %v463 = vunpack.c.l.b16 %v336
  %v464 = vpack.c.b16 %v463, %v462
  %v466 = vsel %vm87, %v345, 0
  %v469 = vsel %vm87, %v464, 0
  %471 = vmatpush.bf16.xpose.msra.mxu0 0
  %472 = vmatpush.bf16.xpose.msra.mxu0 0
  %473 = vmatpush.bf16.xpose.msra.mxu0 0
  %474 = vmatpush.bf16.xpose.msra.mxu0 0
  %475 = vmatpush.bf16.xpose.msra.mxu0 0
  %476 = vmatpush.bf16.xpose.msra.mxu0 0
  %477 = vmatpush.bf16.xpose.msra.mxu0 0
  %478 = vmatpush.bf16.xpose.msra.mxu0 %v469
  %479 = vmatmul.bf16.gmra.mxu0 %v466
  %v480 = vpop.f32.mrf.mxu0
  %v481 = vadd.f32 %v454, %v480
  %v482 = vpop.f32.mrf.mxu0
  %483 = vdwg.mxu0
  %v486 = vunpack.c.l.b16 %v337
  %v487 = vunpack.c.l.b16 %v338
  %v488 = vpack.c.b16 %v487, %v486
  %v490 = vsel %vm87, %v346, 0
  %v493 = vsel %vm87, %v488, 0
  %495 = vmatpush.bf16.xpose.msra.mxu0 0
  %496 = vmatpush.bf16.xpose.msra.mxu0 0
  %497 = vmatpush.bf16.xpose.msra.mxu0 0
  %498 = vmatpush.bf16.xpose.msra.mxu0 0
  %499 = vmatpush.bf16.xpose.msra.mxu0 0
  %500 = vmatpush.bf16.xpose.msra.mxu0 0
  %501 = vmatpush.bf16.xpose.msra.mxu0 0
  %502 = vmatpush.bf16.xpose.msra.mxu0 %v493
  %503 = vmatmul.bf16.gmra.mxu0 %v490
  %v504 = vpop.f32.mrf.mxu0
  %v505 = vadd.f32 %v457, %v504
  %v506 = vpop.f32.mrf.mxu0
  %507 = vdwg.mxu0
  %v508 = vsel %vm87, %v481, -inf
  %509 = vmax.xlane.f32.xlu0 %v508
  %v510 = vpop.xlane.xlu0 %509
  %v511 = vsel %vm87, %v505, -inf
  %512 = vmax.xlane.f32.xlu0 %v511
  %v513 = vpop.xlane.xlu0 %512
  %v514 = vsub.f32 %v481, %v510
  %v515 = vsub.f32 %v505, %v513
  %v516 = vmul.f32 %v514, 1.442695
  %v517 = vpow.pop %v516
  %v518 = vmul.f32 %v515, 1.442695
  %v519 = vpow.pop %v518
  %v520 = vsel %vm87, %v517, 0.0
  %521 = vadd.xlane.f32.xlu0 %v520
  %v522 = vpop.xlane.xlu0 %521
  %v523 = vsel %vm87, %v519, 0.0
  %524 = vadd.xlane.f32.xlu0 %v523
  %v525 = vpop.xlane.xlu0 %524
  %v526 = vrcp.pop %v522
  %v527 = vrcp.pop %v525
  %v528 = vmul.f32 %v517, %v526
  %v529 = vmul.f32 %v519, %v527
  %v530 = vpack.c.bf16 %v528, %v528
  %v531 = vpack.c.bf16 %v529, %v529
  %532 = vrot.lane.b32.xlu0 %v464, 96
  %v533 = vpop.permute.xlu0 %532
  %v536 = vsel %vm87, %v530, 0
  %538 = vmatpush.bf16.msra.mxu0 0
  %539 = vmatpush.bf16.msra.mxu0 0
  %540 = vmatpush.bf16.msra.mxu0 0
  %541 = vmatpush.bf16.msra.mxu0 0
  %542 = vmatpush.bf16.msra.mxu0 0
  %543 = vmatpush.bf16.msra.mxu0 0
  %544 = vmatpush.bf16.msra.mxu0 0
  %545 = vmatpush.bf16.msra.mxu0 %v533
  %546 = vmatmul.bf16.gmra.mxu0 %v536
  %v547 = vpop.f32.mrf.mxu0
  %v548 = vadd.f32 0.0, %v547
  %v549 = vpop.f32.mrf.mxu0
  %550 = vdwg.mxu0
  %551 = vrot.lane.b32.xlu0 %v488, 96
  %v552 = vpop.permute.xlu0 %551
  %v555 = vsel %vm87, %v531, 0
  %557 = vmatpush.bf16.msra.mxu0 0
  %558 = vmatpush.bf16.msra.mxu0 0
  %559 = vmatpush.bf16.msra.mxu0 0
  %560 = vmatpush.bf16.msra.mxu0 0
  %561 = vmatpush.bf16.msra.mxu0 0
  %562 = vmatpush.bf16.msra.mxu0 0
  %563 = vmatpush.bf16.msra.mxu0 0
  %564 = vmatpush.bf16.msra.mxu0 %v552
  %565 = vmatmul.bf16.gmra.mxu0 %v555
  %v566 = vpop.f32.mrf.mxu0
  %v567 = vadd.f32 0.0, %v566
  %v568 = vpop.f32.mrf.mxu0
  %569 = vdwg.mxu0
  %v570 = vpack.c.bf16 %v567, %v548
  %v571 = vld [vmem:[%s14] sm:$0xf]
  %v572 = vld [vmem:[%s14 + $0x4] sm:$0xf]
  %v575 = vunpack.c.l.b16 %v571
  %v576 = vunpack.c.l.b16 %v572
  %v577 = vpack.c.b16 %v576, %v575
  %v580 = vsel %vm87, %v570, 0
  %582 = vmatpush.bf16.msra.mxu0 0
  %583 = vmatpush.bf16.msra.mxu0 0
  %584 = vmatpush.bf16.msra.mxu0 0
  %585 = vmatpush.bf16.msra.mxu0 0
  %586 = vmatpush.bf16.msra.mxu0 0
  %587 = vmatpush.bf16.msra.mxu0 0
  %588 = vmatpush.bf16.msra.mxu0 0
  %589 = vmatpush.bf16.msra.mxu0 %v577
  %590 = vmatmul.bf16.gmra.mxu0 %v580
  %v591 = vpop.f32.mrf.mxu0
  %v592 = vadd.f32 0.0, %v591
  %v593 = vpop.f32.mrf.mxu0
  %v594 = vadd.f32 0.0, %v593
  %595 = vdwg.mxu0
  %v597 = vperm.slane %v459, 0
  %v599 = vadd.f32 %v597, %v592
  %v600 = vadd.f32 %v597, %v594
  %v602 = vunpack.c.l.b16 %v345
  %v603 = vpack.c.b16 %v602, %v602
  %604 = vrot.lane.b32.xlu0 %v603, 112
  %v605 = vpop.permute.xlu0 %604
  %606 = vrot.lane.b32.xlu0 %v464, 112
  %v607 = vpop.permute.xlu0 %606
  %609 = vrot.lane.b32.xlu0 %v454, 112
  %v610 = vpop.permute.xlu0 %609
  %v613 = vsel %vm87, %v605, 0
  %v616 = vsel %vm87, %v607, 0
  %618 = vmatpush.bf16.xpose.msra.mxu0 0
  %619 = vmatpush.bf16.xpose.msra.mxu0 0
  %620 = vmatpush.bf16.xpose.msra.mxu0 0
  %621 = vmatpush.bf16.xpose.msra.mxu0 0
  %622 = vmatpush.bf16.xpose.msra.mxu0 0
  %623 = vmatpush.bf16.xpose.msra.mxu0 0
  %624 = vmatpush.bf16.xpose.msra.mxu0 0
  %625 = vmatpush.bf16.xpose.msra.mxu0 %v616
  %626 = vmatmul.bf16.gmra.mxu0 %v613
  %v627 = vpop.f32.mrf.mxu0
  %v628 = vadd.f32 %v610, %v627
  %v629 = vpop.f32.mrf.mxu0
  %630 = vdwg.mxu0
  %v632 = vunpack.c.l.b16 %v346
  %v633 = vpack.c.b16 %v632, %v632
  %634 = vrot.lane.b32.xlu0 %v633, 112
  %v635 = vpop.permute.xlu0 %634
  %636 = vrot.lane.b32.xlu0 %v488, 112
  %v637 = vpop.permute.xlu0 %636
  %639 = vrot.lane.b32.xlu0 %v457, 112
  %v640 = vpop.permute.xlu0 %639
  %v643 = vsel %vm87, %v635, 0
  %v646 = vsel %vm87, %v637, 0
  %648 = vmatpush.bf16.xpose.msra.mxu0 0
  %649 = vmatpush.bf16.xpose.msra.mxu0 0
  %650 = vmatpush.bf16.xpose.msra.mxu0 0
  %651 = vmatpush.bf16.xpose.msra.mxu0 0
  %652 = vmatpush.bf16.xpose.msra.mxu0 0
  %653 = vmatpush.bf16.xpose.msra.mxu0 0
  %654 = vmatpush.bf16.xpose.msra.mxu0 0
  %655 = vmatpush.bf16.xpose.msra.mxu0 %v646
  %656 = vmatmul.bf16.gmra.mxu0 %v643
  %v657 = vpop.f32.mrf.mxu0
  %v658 = vadd.f32 %v640, %v657
  %v659 = vpop.f32.mrf.mxu0
  %660 = vdwg.mxu0
  %v661 = vsel %vm87, %v628, -inf
  %662 = vmax.xlane.f32.xlu0 %v661
  %v663 = vpop.xlane.xlu0 %662
  %v664 = vsel %vm87, %v658, -inf
  %665 = vmax.xlane.f32.xlu0 %v664
  %v666 = vpop.xlane.xlu0 %665
  %v667 = vsub.f32 %v628, %v663
  %v668 = vsub.f32 %v658, %v666
  %v669 = vmul.f32 %v667, 1.442695
  %v670 = vpow.pop %v669
  %v671 = vmul.f32 %v668, 1.442695
  %v672 = vpow.pop %v671
  %v673 = vsel %vm87, %v670, 0.0
  %674 = vadd.xlane.f32.xlu0 %v673
  %v675 = vpop.xlane.xlu0 %674
  %v676 = vsel %vm87, %v672, 0.0
  %677 = vadd.xlane.f32.xlu0 %v676
  %v678 = vpop.xlane.xlu0 %677
  %v679 = vrcp.pop %v675
  %v680 = vrcp.pop %v678
  %v681 = vmul.f32 %v670, %v679
  %v682 = vmul.f32 %v672, %v680
  %v683 = vpack.c.bf16 %v681, %v681
  %v684 = vpack.c.bf16 %v682, %v682
  %685 = vrot.lane.b32.xlu0 %v464, 80
  %v686 = vpop.permute.xlu0 %685
  %v689 = vsel %vm87, %v683, 0
  %691 = vmatpush.bf16.msra.mxu0 0
  %692 = vmatpush.bf16.msra.mxu0 0
  %693 = vmatpush.bf16.msra.mxu0 0
  %694 = vmatpush.bf16.msra.mxu0 0
  %695 = vmatpush.bf16.msra.mxu0 0
  %696 = vmatpush.bf16.msra.mxu0 0
  %697 = vmatpush.bf16.msra.mxu0 0
  %698 = vmatpush.bf16.msra.mxu0 %v686
  %699 = vmatmul.bf16.gmra.mxu0 %v689
  %v700 = vpop.f32.mrf.mxu0
  %v701 = vadd.f32 0.0, %v700
  %v702 = vpop.f32.mrf.mxu0
  %703 = vdwg.mxu0
  %704 = vrot.lane.b32.xlu0 %v488, 80
  %v705 = vpop.permute.xlu0 %704
  %v708 = vsel %vm87, %v684, 0
  %710 = vmatpush.bf16.msra.mxu0 0
  %711 = vmatpush.bf16.msra.mxu0 0
  %712 = vmatpush.bf16.msra.mxu0 0
  %713 = vmatpush.bf16.msra.mxu0 0
  %714 = vmatpush.bf16.msra.mxu0 0
  %715 = vmatpush.bf16.msra.mxu0 0
  %716 = vmatpush.bf16.msra.mxu0 0
  %717 = vmatpush.bf16.msra.mxu0 %v705
  %718 = vmatmul.bf16.gmra.mxu0 %v708
  %v719 = vpop.f32.mrf.mxu0
  %v720 = vadd.f32 0.0, %v719
  %v721 = vpop.f32.mrf.mxu0
  %722 = vdwg.mxu0
  %v723 = vpack.c.bf16 %v720, %v701
  %v724 = vld [vmem:[%s14 + $0x8] sm:$0xf]
  %v725 = vld [vmem:[%s14 + $0xc] sm:$0xf]
  %v728 = vunpack.c.l.b16 %v724
  %v729 = vunpack.c.l.b16 %v725
  %v730 = vpack.c.b16 %v729, %v728
  %v733 = vsel %vm87, %v723, 0
  %735 = vmatpush.bf16.msra.mxu0 0
  %736 = vmatpush.bf16.msra.mxu0 0
  %737 = vmatpush.bf16.msra.mxu0 0
  %738 = vmatpush.bf16.msra.mxu0 0
  %739 = vmatpush.bf16.msra.mxu0 0
  %740 = vmatpush.bf16.msra.mxu0 0
  %741 = vmatpush.bf16.msra.mxu0 0
  %742 = vmatpush.bf16.msra.mxu0 %v730
  %743 = vmatmul.bf16.gmra.mxu0 %v733
  %v744 = vpop.f32.mrf.mxu0
  %v745 = vadd.f32 0.0, %v744
  %v746 = vpop.f32.mrf.mxu0
  %v747 = vadd.f32 0.0, %v746
  %748 = vdwg.mxu0
  %v749 = vadd.f32 %v599, %v745
  %v750 = vadd.f32 %v600, %v747
  %v751 = vmax.f32 %v749, 0.0
  %v752 = vmax.f32 %v750, 0.0
  %v753 = vpack.c.bf16 %v752, %v751
  %v754 = vld [vmem:[%s16] sm:$0xf]
  %v755 = vld [vmem:[%s16 + $0x4] sm:$0xf]
  %v756 = vld [vmem:[%s16 + $0x8] sm:$0xf]
  %v757 = vld [vmem:[%s16 + $0xc] sm:$0xf]
  %v762 = vunpack.c.l.b16 %v754
  %v763 = vunpack.c.l.b16 %v755
  %v764 = vunpack.c.l.b16 %v756
  %v765 = vunpack.c.l.b16 %v757
  %v766 = vpack.c.b16 %v763, %v762
  %v767 = vpack.c.b16 %v765, %v764
  %v771 = vsel %vm149, %v753, 0
  %773 = vmatpush.bf16.msra.mxu0 0
  %774 = vmatpush.bf16.msra.mxu0 0
  %775 = vmatpush.bf16.msra.mxu0 0
  %776 = vmatpush.bf16.msra.mxu0 0
  %777 = vmatpush.bf16.msra.mxu0 0
  %778 = vmatpush.bf16.msra.mxu0 0
  %779 = vmatpush.bf16.msra.mxu0 %v767
  %780 = vmatpush.bf16.msra.mxu0 %v766
  %781 = vmatmul.bf16.gmra.mxu0 %v771
  %v782 = vpop.f32.mrf.mxu0
  %v783 = vadd.f32 0.0, %v782
  %v784 = vpop.f32.mrf.mxu0
  %v785 = vadd.f32 0.0, %v784
  %786 = vdwg.mxu0
  %v787 = vld [vmem:[%s17] sm:$0xf]
  %v788 = vld [vmem:[%s17 + $0x4] sm:$0xf]
  %v789 = vld [vmem:[%s17 + $0x8] sm:$0xf]
  %v790 = vld [vmem:[%s17 + $0xc] sm:$0xf]
  %v795 = vunpack.c.l.b16 %v787
  %v796 = vunpack.c.l.b16 %v788
  %v797 = vunpack.c.l.b16 %v789
  %v798 = vunpack.c.l.b16 %v790
  %v799 = vpack.c.b16 %v796, %v795
  %v800 = vpack.c.b16 %v798, %v797
  %803 = vmatpush.bf16.msra.mxu0 0
  %804 = vmatpush.bf16.msra.mxu0 0
  %805 = vmatpush.bf16.msra.mxu0 0
  %806 = vmatpush.bf16.msra.mxu0 0
  %807 = vmatpush.bf16.msra.mxu0 0
  %808 = vmatpush.bf16.msra.mxu0 0
  %809 = vmatpush.bf16.msra.mxu0 %v800
  %810 = vmatpush.bf16.msra.mxu0 %v799
  %811 = vmatmul.bf16.gmra.mxu0 %v274
  %v812 = vpop.f32.mrf.mxu0
  %v813 = vadd.f32 0.0, %v812
  %v814 = vpop.f32.mrf.mxu0
  %v815 = vadd.f32 0.0, %v814
  %816 = vdwg.mxu0
  %v817 = vadd.f32 %v783, %v813
  %v818 = vadd.f32 %v785, %v815
  %v819 = vxor.u32 %v817, 2147483648
  %v820 = vxor.u32 %v818, 2147483648
  %v821 = vmul.f32 %v819, 1.442695
  %v822 = vpow.pop %v821
  %v823 = vmul.f32 %v820, 1.442695
  %v824 = vpow.pop %v823
  %v825 = vadd.f32 %v822, 1.0
  %v826 = vadd.f32 %v824, 1.0
  %v827 = vrcp.pop %v825
  %v828 = vmul.f32 %v825, %v827
  %v829 = vsub.f32 1.0, %v828
  %v830 = vmul.f32 %v827, %v829
  %v831 = vadd.f32 %v827, %v830
  %vm832 = vweird.f32 %v825
  %vm833 = vweird.f32 %v827
  %vm834 = vmor %vm832, %vm833
  %v835 = vsel %vm834, %v827, %v831
  %v836 = vand.u32 2147483647, %v825
  %vm837 = vcmp.eq.f32.partialorder %v836, 8.507059e+37
  %v838 = vand.u32 %v825, 2147483648
  %v839 = vor.u32 1.1754944e-38, %v838
  %v840 = vsel %vm837, %v839, %v835
  %v841 = vmul.f32 1.0, %v840
  %v842 = vrcp.pop %v826
  %v843 = vmul.f32 %v826, %v842
  %v844 = vsub.f32 1.0, %v843
  %v845 = vmul.f32 %v842, %v844
  %v846 = vadd.f32 %v842, %v845
  %vm847 = vweird.f32 %v826
  %vm848 = vweird.f32 %v842
  %vm849 = vmor %vm847, %vm848
  %v850 = vsel %vm849, %v842, %v846
  %v851 = vand.u32 2147483647, %v826
  %vm852 = vcmp.eq.f32.partialorder %v851, 8.507059e+37
  %v853 = vand.u32 %v826, 2147483648
  %v854 = vor.u32 1.1754944e-38, %v853
  %v855 = vsel %vm852, %v854, %v850
  %v856 = vmul.f32 1.0, %v855
  %v857 = vld [vmem:[%s19] sm:$0x1]
  %v859 = vperm.slane %v857, 0
  %860 = vrot.lane.b32.xlu0 %v859, 32
  %v861 = vpop.permute.xlu0 %860
  %v863 = vsub.f32 %v817, %v861
  %v864 = vsub.f32 %v818, %v861
  %v865 = vxor.u32 %v863, 2147483648
  %v866 = vxor.u32 %v864, 2147483648
  %v867 = vmul.f32 %v865, 1.442695
  %v868 = vpow.pop %v867
  %v869 = vmul.f32 %v866, 1.442695
  %v870 = vpow.pop %v869
  %v871 = vadd.f32 %v868, 1.0
  %v872 = vadd.f32 %v870, 1.0
  %v873 = vrcp.pop %v871
  %v874 = vmul.f32 %v871, %v873
  %v875 = vsub.f32 1.0, %v874
  %v876 = vmul.f32 %v873, %v875
  %v877 = vadd.f32 %v873, %v876
  %vm878 = vweird.f32 %v871
  %vm879 = vweird.f32 %v873
  %vm880 = vmor %vm878, %vm879
  %v881 = vsel %vm880, %v873, %v877
  %v882 = vand.u32 2147483647, %v871
  %vm883 = vcmp.eq.f32.partialorder %v882, 8.507059e+37
  %v884 = vand.u32 %v871, 2147483648
  %v885 = vor.u32 1.1754944e-38, %v884
  %v886 = vsel %vm883, %v885, %v881
  %v887 = vmul.f32 1.0, %v886
  %v888 = vrcp.pop %v872
  %v889 = vmul.f32 %v872, %v888
  %v890 = vsub.f32 1.0, %v889
  %v891 = vmul.f32 %v888, %v890
  %v892 = vadd.f32 %v888, %v891
  %vm893 = vweird.f32 %v872
  %vm894 = vweird.f32 %v888
  %vm895 = vmor %vm893, %vm894
  %v896 = vsel %vm895, %v888, %v892
  %v897 = vand.u32 2147483647, %v872
  %vm898 = vcmp.eq.f32.partialorder %v897, 8.507059e+37
  %v899 = vand.u32 %v872, 2147483648
  %v900 = vor.u32 1.1754944e-38, %v899
  %v901 = vsel %vm898, %v900, %v896
  %v902 = vmul.f32 1.0, %v901
  %v903 = vmul.f32 %v841, %v105
  %v904 = vmul.f32 %v856, %v106
  %v905 = vpack.c.bf16 %v904, %v903
  %v906 = vld [vmem:[%s18] sm:$0xf]
  %v907 = vld [vmem:[%s18 + $0x4] sm:$0xf]
  %v908 = vld [vmem:[%s18 + $0x8] sm:$0xf]
  %v909 = vld [vmem:[%s18 + $0xc] sm:$0xf]
  %v914 = vunpack.c.l.b16 %v906
  %v915 = vunpack.c.l.b16 %v907
  %v916 = vunpack.c.l.b16 %v908
  %v917 = vunpack.c.l.b16 %v909
  %v918 = vpack.c.b16 %v915, %v914
  %v919 = vpack.c.b16 %v917, %v916
  %v923 = vsel %vm149, %v905, 0
  %925 = vmatpush.bf16.msra.mxu0 0
  %926 = vmatpush.bf16.msra.mxu0 0
  %927 = vmatpush.bf16.msra.mxu0 0
  %928 = vmatpush.bf16.msra.mxu0 0
  %929 = vmatpush.bf16.msra.mxu0 0
  %930 = vmatpush.bf16.msra.mxu0 0
  %931 = vmatpush.bf16.msra.mxu0 %v919
  %932 = vmatpush.bf16.msra.mxu0 %v918
  %933 = vmatmul.bf16.gmra.mxu0 %v923
  %v934 = vpop.f32.mrf.mxu0
  %v935 = vadd.f32 0.0, %v934
  %v936 = vpop.f32.mrf.mxu0
  %v937 = vadd.f32 0.0, %v936
  %938 = vdwg.mxu0
  %941 = vrot.lane.b32.xlu0 %v935, 64
  %v942 = vpop.permute.xlu0 %941
  %943 = vrot.lane.b32.xlu0 %v937, 64
  %v944 = vpop.permute.xlu0 %943
  %v947 = vadd.f32 %v783, %v942
  %v948 = vadd.f32 %v785, %v944
  %v949 = vtanh.pop %v947
  %v950 = vtanh.pop %v948
  %v951 = vsub.f32 1.0, %v887
  %v952 = vsub.f32 1.0, %v902
  %955 = vrot.lane.b32.xlu0 %v105, 32
  %v956 = vpop.permute.xlu0 %955
  %957 = vrot.lane.b32.xlu0 %v106, 32
  %v958 = vpop.permute.xlu0 %957
  %v961 = vmul.f32 %v951, %v956
  %v962 = vmul.f32 %v952, %v958
  %965 = vrot.lane.b32.xlu0 %v949, 96
  %v966 = vpop.permute.xlu0 %965
  %967 = vrot.lane.b32.xlu0 %v950, 96
  %v968 = vpop.permute.xlu0 %967
  %v971 = vmul.f32 %v887, %v966
  %v972 = vmul.f32 %v902, %v968
  %v973 = vadd.f32 %v961, %v971
  %v974 = vadd.f32 %v962, %v972
  %977 = vrot.lane.b32.xlu0 %v973, 96
  %v978 = vpop.permute.xlu0 %977
  %979 = vrot.lane.b32.xlu0 %v974, 96
  %v980 = vpop.permute.xlu0 %979
  %v983 = vsel %vm149, %v978, 0.0
  %984 = vadd.xlane.f32.xlu0 %v983
  %v985 = vpop.xlane.xlu0 %984
  %v986 = vsel %vm149, %v980, 0.0
  %987 = vadd.xlane.f32.xlu0 %v986
  %v988 = vpop.xlane.xlu0 %987
  %v989 = vmul.f32 %v985, %v168
  %v990 = vmul.f32 %v988, %v168
  %v991 = vsub.f32 %v973, %v989
  %v992 = vsub.f32 %v974, %v990
  %v993 = vmul.f32 %v991, %v991
  %v994 = vmul.f32 %v992, %v992
  %997 = vrot.lane.b32.xlu0 %v993, 96
  %v998 = vpop.permute.xlu0 %997
  %999 = vrot.lane.b32.xlu0 %v994, 96
  %v1000 = vpop.permute.xlu0 %999
  %v1003 = vsel %vm149, %v998, 0.0
  %1004 = vadd.xlane.f32.xlu0 %v1003
  %v1005 = vpop.xlane.xlu0 %1004
  %v1006 = vsel %vm149, %v1000, 0.0
  %1007 = vadd.xlane.f32.xlu0 %v1006
  %v1008 = vpop.xlane.xlu0 %1007
  %v1009 = vmul.f32 %v1005, %v168
  %v1010 = vmul.f32 %v1008, %v168
  %v1011 = vadd.f32 %v1009, 1e-05
  %v1012 = vadd.f32 %v1010, 1e-05
  %v1013 = vrsqrt.pop %v1011
  %v1014 = vmul.f32 %v1013, %v1011
  %v1015 = vmul.f32 %v1014, %v1013
  %v1016 = vmul.f32 0.5, %v1015
  %v1017 = vsub.f32 1.5, %v1016
  %v1018 = vmul.f32 %v1013, %v1017
  %vm1019 = vweird.f32 %v1011
  %vm1020 = vweird.f32 %v1013
  %vm1021 = vmor %vm1019, %vm1020
  %v1022 = vsel %vm1021, %v1013, %v1018
  %v1023 = vrsqrt.pop %v1012
  %v1024 = vmul.f32 %v1023, %v1012
  %v1025 = vmul.f32 %v1024, %v1023
  %v1026 = vmul.f32 0.5, %v1025
  %v1027 = vsub.f32 1.5, %v1026
  %v1028 = vmul.f32 %v1023, %v1027
  %vm1029 = vweird.f32 %v1012
  %vm1030 = vweird.f32 %v1023
  %vm1031 = vmor %vm1029, %vm1030
  %v1032 = vsel %vm1031, %v1023, %v1028
  %v1033 = vmul.f32 %v991, %v1022
  %v1034 = vmul.f32 %v992, %v1032
  %v1035 = vperm.slane %v145, 2
  %1037 = vrot.lane.b32.xlu0 %v1035, 32
  %v1038 = vpop.permute.xlu0 %1037
  %v1040 = vmul.f32 %v1033, %v1038
  %v1041 = vmul.f32 %v1034, %v1038
  %v1042 = vperm.slane %v145, 3
  %1044 = vrot.lane.b32.xlu0 %v1042, 32
  %v1045 = vpop.permute.xlu0 %1044
  %v1047 = vadd.f32 %v1040, %v1045
  %v1048 = vadd.f32 %v1041, %v1045
  %v1049 = vpack.c.bf16 %v1048, %v1047
  %v1050 = vld [vmem:[%s20] sm:$0xf]
  %v1051 = vld [vmem:[%s20 + $0x4] sm:$0xf]
  %v1052 = vld [vmem:[%s20 + $0x8] sm:$0xf]
  %v1053 = vld [vmem:[%s20 + $0xc] sm:$0xf]
  %v1054 = vld [vmem:[%s21] sm:$0x1]
  %v1056 = vperm.slane %v1054, 0
  %1059 = vrot.lane.b32.xlu0 %v1049, 96
  %v1060 = vpop.permute.xlu0 %1059
  %v1065 = vunpack.c.l.b16 %v1050
  %v1066 = vunpack.c.l.b16 %v1051
  %v1067 = vunpack.c.l.b16 %v1052
  %v1068 = vunpack.c.l.b16 %v1053
  %v1069 = vpack.c.b16 %v1066, %v1065
  %v1070 = vpack.c.b16 %v1068, %v1067
  %v1074 = vsel %vm149, %v1060, 0
  %1076 = vmatpush.bf16.msra.mxu0 0
  %1077 = vmatpush.bf16.msra.mxu0 0
  %1078 = vmatpush.bf16.msra.mxu0 0
  %1079 = vmatpush.bf16.msra.mxu0 0
  %1080 = vmatpush.bf16.msra.mxu0 0
  %1081 = vmatpush.bf16.msra.mxu0 0
  %1082 = vmatpush.bf16.msra.mxu0 %v1070
  %1083 = vmatpush.bf16.msra.mxu0 %v1069
  %1084 = vmatmul.bf16.gmra.mxu0 %v1074
  %v1085 = vpop.f32.mrf.mxu0
  %v1086 = vadd.f32 %v1056, %v1085
  %v1087 = vpop.f32.mrf.mxu0
  %v1088 = vadd.f32 %v1056, %v1087
  %1089 = vdwg.mxu0
  %v1090 = vmax.f32 %v1086, 0.0
  %v1091 = vmax.f32 %v1088, 0.0
  %v1092 = vpack.c.bf16 %v1091, %v1090
  %s1093 = scalar_lea.vmem %s20, 16
  %v1094 = vld [vmem:[%s1093] sm:$0xf]
  %v1095 = vld [vmem:[%s1093 + $0x4] sm:$0xf]
  %v1096 = vld [vmem:[%s1093 + $0x8] sm:$0xf]
  %v1097 = vld [vmem:[%s1093 + $0xc] sm:$0xf]
  %s1098 = scalar_lea.vmem %s21, 1
  %v1099 = vld [vmem:[%s1098] sm:$0x1]
  %v1101 = vperm.slane %v1099, 0
  %v1107 = vunpack.c.l.b16 %v1094
  %v1108 = vunpack.c.l.b16 %v1095
  %v1109 = vunpack.c.l.b16 %v1096
  %v1110 = vunpack.c.l.b16 %v1097
  %v1111 = vpack.c.b16 %v1108, %v1107
  %v1112 = vpack.c.b16 %v1110, %v1109
  %v1116 = vsel %vm149, %v1092, 0
  %1118 = vmatpush.bf16.msra.mxu0 0
  %1119 = vmatpush.bf16.msra.mxu0 0
  %1120 = vmatpush.bf16.msra.mxu0 0
  %1121 = vmatpush.bf16.msra.mxu0 0
  %1122 = vmatpush.bf16.msra.mxu0 0
  %1123 = vmatpush.bf16.msra.mxu0 0
  %1124 = vmatpush.bf16.msra.mxu0 %v1112
  %1125 = vmatpush.bf16.msra.mxu0 %v1111
  %1126 = vmatmul.bf16.gmra.mxu0 %v1116
  %v1127 = vpop.f32.mrf.mxu0
  %v1128 = vadd.f32 %v1101, %v1127
  %v1129 = vpop.f32.mrf.mxu0
  %v1130 = vadd.f32 %v1101, %v1129
  %1131 = vdwg.mxu0
  %v1132 = vmax.f32 %v1128, 0.0
  %v1133 = vmax.f32 %v1130, 0.0
  %v1134 = vpack.c.bf16 %v974, %v973
  %v1135 = vpack.c.bf16 %v1133, %v1132
  %s1136 = scalar_lea.vmem %s16, 16
  %v1137 = vld [vmem:[%s1136] sm:$0xf]
  %v1138 = vld [vmem:[%s1136 + $0x4] sm:$0xf]
  %v1139 = vld [vmem:[%s1136 + $0x8] sm:$0xf]
  %v1140 = vld [vmem:[%s1136 + $0xc] sm:$0xf]
  %v1145 = vunpack.c.l.b16 %v1137
  %v1146 = vunpack.c.l.b16 %v1138
  %v1147 = vunpack.c.l.b16 %v1139
  %v1148 = vunpack.c.l.b16 %v1140
  %v1149 = vpack.c.b16 %v1146, %v1145
  %v1150 = vpack.c.b16 %v1148, %v1147
  %v1154 = vsel %vm149, %v1135, 0
  %1156 = vmatpush.bf16.msra.mxu0 0
  %1157 = vmatpush.bf16.msra.mxu0 0
  %1158 = vmatpush.bf16.msra.mxu0 0
  %1159 = vmatpush.bf16.msra.mxu0 0
  %1160 = vmatpush.bf16.msra.mxu0 0
  %1161 = vmatpush.bf16.msra.mxu0 0
  %1162 = vmatpush.bf16.msra.mxu0 %v1150
  %1163 = vmatpush.bf16.msra.mxu0 %v1149
  %1164 = vmatmul.bf16.gmra.mxu0 %v1154
  %v1165 = vpop.f32.mrf.mxu0
  %v1166 = vadd.f32 0.0, %v1165
  %v1167 = vpop.f32.mrf.mxu0
  %v1168 = vadd.f32 0.0, %v1167
  %1169 = vdwg.mxu0
  %s1170 = scalar_lea.vmem %s17, 16
  %v1171 = vld [vmem:[%s1170] sm:$0xf]
  %v1172 = vld [vmem:[%s1170 + $0x4] sm:$0xf]
  %v1173 = vld [vmem:[%s1170 + $0x8] sm:$0xf]
  %v1174 = vld [vmem:[%s1170 + $0xc] sm:$0xf]
  %1176 = vrot.lane.b32.xlu0 %v1134, 96
  %v1177 = vpop.permute.xlu0 %1176
  %v1182 = vunpack.c.l.b16 %v1171
  %v1183 = vunpack.c.l.b16 %v1172
  %v1184 = vunpack.c.l.b16 %v1173
  %v1185 = vunpack.c.l.b16 %v1174
  %v1186 = vpack.c.b16 %v1183, %v1182
  %v1187 = vpack.c.b16 %v1185, %v1184
  %v1191 = vsel %vm149, %v1177, 0
  %1193 = vmatpush.bf16.msra.mxu0 0
  %1194 = vmatpush.bf16.msra.mxu0 0
  %1195 = vmatpush.bf16.msra.mxu0 0
  %1196 = vmatpush.bf16.msra.mxu0 0
  %1197 = vmatpush.bf16.msra.mxu0 0
  %1198 = vmatpush.bf16.msra.mxu0 0
  %1199 = vmatpush.bf16.msra.mxu0 %v1187
  %1200 = vmatpush.bf16.msra.mxu0 %v1186
  %1201 = vmatmul.bf16.gmra.mxu0 %v1191
  %v1202 = vpop.f32.mrf.mxu0
  %v1203 = vadd.f32 0.0, %v1202
  %v1204 = vpop.f32.mrf.mxu0
  %v1205 = vadd.f32 0.0, %v1204
  %1206 = vdwg.mxu0
  %v1207 = vadd.f32 %v1166, %v1203
  %v1208 = vadd.f32 %v1168, %v1205
  %v1209 = vxor.u32 %v1207, 2147483648
  %v1210 = vxor.u32 %v1208, 2147483648
  %v1211 = vmul.f32 %v1209, 1.442695
  %v1212 = vpow.pop %v1211
  %v1213 = vmul.f32 %v1210, 1.442695
  %v1214 = vpow.pop %v1213
  %v1215 = vadd.f32 %v1212, 1.0
  %v1216 = vadd.f32 %v1214, 1.0
  %v1217 = vrcp.pop %v1215
  %v1218 = vmul.f32 %v1215, %v1217
  %v1219 = vsub.f32 1.0, %v1218
  %v1220 = vmul.f32 %v1217, %v1219
  %v1221 = vadd.f32 %v1217, %v1220
  %vm1222 = vweird.f32 %v1215
  %vm1223 = vweird.f32 %v1217
  %vm1224 = vmor %vm1222, %vm1223
  %v1225 = vsel %vm1224, %v1217, %v1221
  %v1226 = vand.u32 2147483647, %v1215
  %vm1227 = vcmp.eq.f32.partialorder %v1226, 8.507059e+37
  %v1228 = vand.u32 %v1215, 2147483648
  %v1229 = vor.u32 1.1754944e-38, %v1228
  %v1230 = vsel %vm1227, %v1229, %v1225
  %v1231 = vmul.f32 1.0, %v1230
  %v1232 = vrcp.pop %v1216
  %v1233 = vmul.f32 %v1216, %v1232
  %v1234 = vsub.f32 1.0, %v1233
  %v1235 = vmul.f32 %v1232, %v1234
  %v1236 = vadd.f32 %v1232, %v1235
  %vm1237 = vweird.f32 %v1216
  %vm1238 = vweird.f32 %v1232
  %vm1239 = vmor %vm1237, %vm1238
  %v1240 = vsel %vm1239, %v1232, %v1236
  %v1241 = vand.u32 2147483647, %v1216
  %vm1242 = vcmp.eq.f32.partialorder %v1241, 8.507059e+37
  %v1243 = vand.u32 %v1216, 2147483648
  %v1244 = vor.u32 1.1754944e-38, %v1243
  %v1245 = vsel %vm1242, %v1244, %v1240
  %v1246 = vmul.f32 1.0, %v1245
  %s1247 = scalar_lea.vmem %s19, 1
  %v1248 = vld [vmem:[%s1247] sm:$0x1]
  %v1250 = vperm.slane %v1248, 0
  %1251 = vrot.lane.b32.xlu0 %v1250, 32
  %v1252 = vpop.permute.xlu0 %1251
  %v1254 = vsub.f32 %v1207, %v1252
  %v1255 = vsub.f32 %v1208, %v1252
  %v1256 = vxor.u32 %v1254, 2147483648
  %v1257 = vxor.u32 %v1255, 2147483648
  %v1258 = vmul.f32 %v1256, 1.442695
  %v1259 = vpow.pop %v1258
  %v1260 = vmul.f32 %v1257, 1.442695
  %v1261 = vpow.pop %v1260
  %v1262 = vadd.f32 %v1259, 1.0
  %v1263 = vadd.f32 %v1261, 1.0
  %v1264 = vrcp.pop %v1262
  %v1265 = vmul.f32 %v1262, %v1264
  %v1266 = vsub.f32 1.0, %v1265
  %v1267 = vmul.f32 %v1264, %v1266
  %v1268 = vadd.f32 %v1264, %v1267
  %vm1269 = vweird.f32 %v1262
  %vm1270 = vweird.f32 %v1264
  %vm1271 = vmor %vm1269, %vm1270
  %v1272 = vsel %vm1271, %v1264, %v1268
  %v1273 = vand.u32 2147483647, %v1262
  %vm1274 = vcmp.eq.f32.partialorder %v1273, 8.507059e+37
  %v1275 = vand.u32 %v1262, 2147483648
  %v1276 = vor.u32 1.1754944e-38, %v1275
  %v1277 = vsel %vm1274, %v1276, %v1272
  %v1278 = vmul.f32 1.0, %v1277
  %v1279 = vrcp.pop %v1263
  %v1280 = vmul.f32 %v1263, %v1279
  %v1281 = vsub.f32 1.0, %v1280
  %v1282 = vmul.f32 %v1279, %v1281
  %v1283 = vadd.f32 %v1279, %v1282
  %vm1284 = vweird.f32 %v1263
  %vm1285 = vweird.f32 %v1279
  %vm1286 = vmor %vm1284, %vm1285
  %v1287 = vsel %vm1286, %v1279, %v1283
  %v1288 = vand.u32 2147483647, %v1263
  %vm1289 = vcmp.eq.f32.partialorder %v1288, 8.507059e+37
  %v1290 = vand.u32 %v1263, 2147483648
  %v1291 = vor.u32 1.1754944e-38, %v1290
  %v1292 = vsel %vm1289, %v1291, %v1287
  %v1293 = vmul.f32 1.0, %v1292
  %v1294 = vmul.f32 %v1231, %v978
  %v1295 = vmul.f32 %v1246, %v980
  %v1296 = vpack.c.bf16 %v1295, %v1294
  %s1297 = scalar_lea.vmem %s18, 16
  %v1298 = vld [vmem:[%s1297] sm:$0xf]
  %v1299 = vld [vmem:[%s1297 + $0x4] sm:$0xf]
  %v1300 = vld [vmem:[%s1297 + $0x8] sm:$0xf]
  %v1301 = vld [vmem:[%s1297 + $0xc] sm:$0xf]
  %v1306 = vunpack.c.l.b16 %v1298
  %v1307 = vunpack.c.l.b16 %v1299
  %v1308 = vunpack.c.l.b16 %v1300
  %v1309 = vunpack.c.l.b16 %v1301
  %v1310 = vpack.c.b16 %v1307, %v1306
  %v1311 = vpack.c.b16 %v1309, %v1308
  %v1315 = vsel %vm149, %v1296, 0
  %1317 = vmatpush.bf16.msra.mxu0 0
  %1318 = vmatpush.bf16.msra.mxu0 0
  %1319 = vmatpush.bf16.msra.mxu0 0
  %1320 = vmatpush.bf16.msra.mxu0 0
  %1321 = vmatpush.bf16.msra.mxu0 0
  %1322 = vmatpush.bf16.msra.mxu0 0
  %1323 = vmatpush.bf16.msra.mxu0 %v1311
  %1324 = vmatpush.bf16.msra.mxu0 %v1310
  %1325 = vmatmul.bf16.gmra.mxu0 %v1315
  %v1326 = vpop.f32.mrf.mxu0
  %v1327 = vadd.f32 0.0, %v1326
  %v1328 = vpop.f32.mrf.mxu0
  %v1329 = vadd.f32 0.0, %v1328
  %1330 = vdwg.mxu0
  %1333 = vrot.lane.b32.xlu0 %v1327, 64
  %v1334 = vpop.permute.xlu0 %1333
  %1335 = vrot.lane.b32.xlu0 %v1329, 64
  %v1336 = vpop.permute.xlu0 %1335
  %v1339 = vadd.f32 %v1166, %v1334
  %v1340 = vadd.f32 %v1168, %v1336
  %v1341 = vtanh.pop %v1339
  %v1342 = vtanh.pop %v1340
  %v1343 = vsub.f32 1.0, %v1278
  %v1344 = vsub.f32 1.0, %v1293
  %v1345 = vmul.f32 %v1343, %v973
  %v1346 = vmul.f32 %v1344, %v974
  %1349 = vrot.lane.b32.xlu0 %v1341, 96
  %v1350 = vpop.permute.xlu0 %1349
  %1351 = vrot.lane.b32.xlu0 %v1342, 96
  %v1352 = vpop.permute.xlu0 %1351
  %v1355 = vmul.f32 %v1278, %v1350
  %v1356 = vmul.f32 %v1293, %v1352
  %v1357 = vadd.f32 %v1345, %v1355
  %v1358 = vadd.f32 %v1346, %v1356
  %s1359 = scalar_lea.vmem %s6, 4
  %v1360 = vld [vmem:[%s1359] sm:$0xf]
  %v1361 = vpack.c.bf16 %v1358, %v1357
  %s1362 = scalar_lea.vmem %s1, 16
  %v1363 = vld [vmem:[%s1362] sm:$0xff]
  %v1364 = vld [vmem:[%s1362 + $0x8] sm:$0xff]
  %1367 = vrot.lane.b32.xlu0 %v1357, 96
  %v1368 = vpop.permute.xlu0 %1367
  %1369 = vrot.lane.b32.xlu0 %v1358, 96
  %v1370 = vpop.permute.xlu0 %1369
  %v1373 = vsel %vm149, %v1363, 0.0
  %1374 = vadd.xlane.f32.xlu0 %v1373
  %v1375 = vpop.xlane.xlu0 %1374
  %v1376 = vsel %vm149, %v1368, 0.0
  %1377 = vadd.xlane.f32.xlu0 %v1376
  %v1378 = vpop.xlane.xlu0 %1377
  %v1379 = vsel %vm149, %v1364, 0.0
  %1380 = vadd.xlane.f32.xlu0 %v1379
  %v1381 = vpop.xlane.xlu0 %1380
  %v1382 = vsel %vm149, %v1370, 0.0
  %1383 = vadd.xlane.f32.xlu0 %v1382
  %v1384 = vpop.xlane.xlu0 %1383
  %v1385 = vmul.f32 %v1375, %v168
  %v1386 = vmul.f32 %v1378, %v168
  %v1387 = vmul.f32 %v1381, %v168
  %v1388 = vmul.f32 %v1384, %v168
  %v1389 = vsub.f32 %v1363, %v1385
  %v1390 = vsub.f32 %v1368, %v1386
  %v1391 = vsub.f32 %v1364, %v1387
  %v1392 = vsub.f32 %v1370, %v1388
  %v1393 = vmul.f32 %v1389, %v1389
  %v1394 = vmul.f32 %v1390, %v1390
  %v1395 = vmul.f32 %v1391, %v1391
  %v1396 = vmul.f32 %v1392, %v1392
  %v1397 = vsel %vm149, %v1393, 0.0
  %1398 = vadd.xlane.f32.xlu0 %v1397
  %v1399 = vpop.xlane.xlu0 %1398
  %v1400 = vsel %vm149, %v1394, 0.0
  %1401 = vadd.xlane.f32.xlu0 %v1400
  %v1402 = vpop.xlane.xlu0 %1401
  %v1403 = vsel %vm149, %v1395, 0.0
  %1404 = vadd.xlane.f32.xlu0 %v1403
  %v1405 = vpop.xlane.xlu0 %1404
  %v1406 = vsel %vm149, %v1396, 0.0
  %1407 = vadd.xlane.f32.xlu0 %v1406
  %v1408 = vpop.xlane.xlu0 %1407
  %v1409 = vmul.f32 %v1399, %v168
  %v1410 = vmul.f32 %v1402, %v168
  %v1411 = vmul.f32 %v1405, %v168
  %v1412 = vmul.f32 %v1408, %v168
  %v1413 = vadd.f32 %v1409, 1e-05
  %v1414 = vadd.f32 %v1410, 1e-05
  %v1415 = vadd.f32 %v1411, 1e-05
  %v1416 = vadd.f32 %v1412, 1e-05
  %v1417 = vrsqrt.pop %v1413
  %v1418 = vmul.f32 %v1417, %v1413
  %v1419 = vmul.f32 %v1418, %v1417
  %v1420 = vmul.f32 0.5, %v1419
  %v1421 = vsub.f32 1.5, %v1420
  %v1422 = vmul.f32 %v1417, %v1421
  %vm1423 = vweird.f32 %v1413
  %vm1424 = vweird.f32 %v1417
  %vm1425 = vmor %vm1423, %vm1424
  %v1426 = vsel %vm1425, %v1417, %v1422
  %v1427 = vrsqrt.pop %v1414
  %v1428 = vmul.f32 %v1427, %v1414
  %v1429 = vmul.f32 %v1428, %v1427
  %v1430 = vmul.f32 0.5, %v1429
  %v1431 = vsub.f32 1.5, %v1430
  %v1432 = vmul.f32 %v1427, %v1431
  %vm1433 = vweird.f32 %v1414
  %vm1434 = vweird.f32 %v1427
  %vm1435 = vmor %vm1433, %vm1434
  %v1436 = vsel %vm1435, %v1427, %v1432
  %v1437 = vrsqrt.pop %v1415
  %v1438 = vmul.f32 %v1437, %v1415
  %v1439 = vmul.f32 %v1438, %v1437
  %v1440 = vmul.f32 0.5, %v1439
  %v1441 = vsub.f32 1.5, %v1440
  %v1442 = vmul.f32 %v1437, %v1441
  %vm1443 = vweird.f32 %v1415
  %vm1444 = vweird.f32 %v1437
  %vm1445 = vmor %vm1443, %vm1444
  %v1446 = vsel %vm1445, %v1437, %v1442
  %v1447 = vrsqrt.pop %v1416
  %v1448 = vmul.f32 %v1447, %v1416
  %v1449 = vmul.f32 %v1448, %v1447
  %v1450 = vmul.f32 0.5, %v1449
  %v1451 = vsub.f32 1.5, %v1450
  %v1452 = vmul.f32 %v1447, %v1451
  %vm1453 = vweird.f32 %v1416
  %vm1454 = vweird.f32 %v1447
  %vm1455 = vmor %vm1453, %vm1454
  %v1456 = vsel %vm1455, %v1447, %v1452
  %v1457 = vmul.f32 %v1389, %v1426
  %v1458 = vmul.f32 %v1390, %v1436
  %v1459 = vmul.f32 %v1391, %v1446
  %v1460 = vmul.f32 %v1392, %v1456
  %v1461 = vperm.slane %v1360, 0
  %v1462 = vmul.f32 %v1457, %v1461
  %v1463 = vmul.f32 %v1458, %v1461
  %v1464 = vmul.f32 %v1459, %v1461
  %v1465 = vmul.f32 %v1460, %v1461
  %v1466 = vperm.slane %v1360, 1
  %v1467 = vadd.f32 %v1462, %v1466
  %v1468 = vadd.f32 %v1463, %v1466
  %v1469 = vadd.f32 %v1464, %v1466
  %v1470 = vadd.f32 %v1465, %v1466
  %v1471 = vpack.c.bf16 %v1468, %v1467
  %v1472 = vpack.c.bf16 %v1470, %v1469
  %s1473 = scalar_lea.vmem %s7, 16
  %v1474 = vld [vmem:[%s1473] sm:$0xf]
  %v1475 = vld [vmem:[%s1473 + $0x4] sm:$0xf]
  %v1476 = vld [vmem:[%s1473 + $0x8] sm:$0xf]
  %v1477 = vld [vmem:[%s1473 + $0xc] sm:$0xf]
  %1479 = vrot.lane.b32.xlu0 %v1361, 96
  %v1480 = vpop.permute.xlu0 %1479
  %v1485 = vunpack.c.l.b16 %v1474
  %v1486 = vunpack.c.l.b16 %v1475
  %v1487 = vunpack.c.l.b16 %v1476
  %v1488 = vunpack.c.l.b16 %v1477
  %v1489 = vpack.c.b16 %v1486, %v1485
  %v1490 = vpack.c.b16 %v1488, %v1487
  %v1494 = vsel %vm149, %v1480, 0
  %1496 = vmatpush.bf16.msra.mxu0 0
  %1497 = vmatpush.bf16.msra.mxu0 0
  %1498 = vmatpush.bf16.msra.mxu0 0
  %1499 = vmatpush.bf16.msra.mxu0 0
  %1500 = vmatpush.bf16.msra.mxu0 0
  %1501 = vmatpush.bf16.msra.mxu0 0
  %1502 = vmatpush.bf16.msra.mxu0 %v1490
  %1503 = vmatpush.bf16.msra.mxu0 %v1489
  %1504 = vmatmul.bf16.gmra.mxu0 %v1494
  %v1505 = vpop.f32.mrf.mxu0
  %v1506 = vadd.f32 0.0, %v1505
  %v1507 = vpop.f32.mrf.mxu0
  %v1508 = vadd.f32 0.0, %v1507
  %1509 = vdwg.mxu0
  %s1510 = scalar_lea.vmem %s10, 16
  %v1511 = vld [vmem:[%s1510] sm:$0xf]
  %v1512 = vld [vmem:[%s1510 + $0x4] sm:$0xf]
  %v1513 = vld [vmem:[%s1510 + $0x8] sm:$0xf]
  %v1514 = vld [vmem:[%s1510 + $0xc] sm:$0xf]
  %s1515 = scalar_lea.vmem %s11, 1
  %v1516 = vld [vmem:[%s1515] sm:$0x1]
  %v1518 = vperm.slane %v1516, 0
  %v1524 = vunpack.c.l.b16 %v1511
  %v1525 = vunpack.c.l.b16 %v1512
  %v1526 = vunpack.c.l.b16 %v1513
  %v1527 = vunpack.c.l.b16 %v1514
  %v1528 = vpack.c.b16 %v1525, %v1524
  %v1529 = vpack.c.b16 %v1527, %v1526
  %v1533 = vsel %vm149, %v1471, 0
  %v1536 = vsel %vm149, %v1472, 0
  %1538 = vmatpush.bf16.msra.mxu0 0
  %1539 = vmatpush.bf16.msra.mxu0 0
  %1540 = vmatpush.bf16.msra.mxu0 0
  %1541 = vmatpush.bf16.msra.mxu0 0
  %1542 = vmatpush.bf16.msra.mxu0 0
  %1543 = vmatpush.bf16.msra.mxu0 0
  %1544 = vmatpush.bf16.msra.mxu0 %v1529
  %1545 = vmatpush.bf16.msra.mxu0 %v1528
  %1546 = vmatmul.bf16.gmra.mxu0 %v1533
  %v1547 = vpop.f32.mrf.mxu0
  %v1548 = vadd.f32 %v1518, %v1547
  %v1549 = vpop.f32.mrf.mxu0
  %v1550 = vadd.f32 %v1518, %v1549
  %1551 = vmatmul.bf16.gmra.mxu0 %v1536
  %v1552 = vpop.f32.mrf.mxu0
  %v1553 = vadd.f32 %v1518, %v1552
  %v1554 = vpop.f32.mrf.mxu0
  %v1555 = vadd.f32 %v1518, %v1554
  %1556 = vdwg.mxu0
  %v1557 = vpack.c.bf16 %v1548, %v1548
  %v1558 = vpack.c.bf16 %v1550, %v1550
  %v1559 = vpack.c.bf16 %v1553, %v1553
  %v1560 = vpack.c.bf16 %v1555, %v1555
  %s1561 = scalar_lea.vmem %s8, 1
  %v1562 = vld [vmem:[%s1561] sm:$0x1]
  %v1564 = vperm.slane %v1562, 0
  %v1566 = vadd.f32 %v1506, %v1564
  %v1567 = vadd.f32 %v1508, %v1564
  %v1568 = vpack.c.bf16 %v1566, %v1566
  %v1569 = vpack.c.bf16 %v1567, %v1567
  %s1570 = scalar_lea.vmem %s9, 1
  %v1571 = vld [vmem:[%s1570] sm:$0x1]
  %v1573 = vperm.slane %v1571, 0
  %v1575 = vadd.f32 %v1506, %v1573
  %v1576 = vadd.f32 %v1508, %v1573
  %v1577 = vpack.c.bf16 %v1576, %v1575
  %s1578 = scalar_lea.vmem %s12, 32
  %v1579 = vld [vmem:[%s1578] sm:$0xff]
  %v1580 = vld [vmem:[%s1578 + $0x8] sm:$0xff]
  %v1581 = vld [vmem:[%s1578 + $0x10] sm:$0xff]
  %v1582 = vld [vmem:[%s1578 + $0x18] sm:$0xff]
  %v1587 = vunpack.c.l.b16 %v1579
  %v1588 = vunpack.c.h.b16 %v1579
  %v1589 = vunpack.c.l.b16 %v1580
  %v1590 = vunpack.c.h.b16 %v1580
  %v1591 = vunpack.c.l.b16 %v1581
  %v1592 = vunpack.c.h.b16 %v1581
  %v1593 = vunpack.c.l.b16 %v1582
  %v1594 = vunpack.c.h.b16 %v1582
  %v1595 = vpack.c.b16 %v1589, %v1587
  %v1596 = vpack.c.b16 %v1590, %v1588
  %v1597 = vpack.c.b16 %v1593, %v1591
  %v1598 = vpack.c.b16 %v1594, %v1592
  %v1604 = vsel %vm149, %v1577, 0
  %1606 = vmatpush.bf16.msra.mxu0 0
  %1607 = vmatpush.bf16.msra.mxu0 0
  %1608 = vmatpush.bf16.msra.mxu0 0
  %1609 = vmatpush.bf16.msra.mxu0 0
  %1610 = vmatpush.bf16.msra.mxu0 0
  %1611 = vmatpush.bf16.msra.mxu0 0
  %1612 = vmatpush.bf16.msra.mxu0 %v1597
  %1613 = vmatpush.bf16.msra.mxu0 %v1595
  %1614 = vmatmul.bf16.gmra.mxu0 %v1604
  %v1615 = vpop.f32.mrf.mxu0
  %v1616 = vadd.f32 0.0, %v1615
  %v1617 = vpop.f32.mrf.mxu0
  %v1618 = vadd.f32 0.0, %v1617
  %1619 = vdwg.mxu0
  %1620 = vmatpush.bf16.msra.mxu0 0
  %1621 = vmatpush.bf16.msra.mxu0 0
  %1622 = vmatpush.bf16.msra.mxu0 0
  %1623 = vmatpush.bf16.msra.mxu0 0
  %1624 = vmatpush.bf16.msra.mxu0 0
  %1625 = vmatpush.bf16.msra.mxu0 0
  %1626 = vmatpush.bf16.msra.mxu0 %v1598
  %1627 = vmatpush.bf16.msra.mxu0 %v1596
  %1628 = vmatmul.bf16.gmra.mxu0 %v1604
  %v1629 = vpop.f32.mrf.mxu0
  %v1630 = vadd.f32 0.0, %v1629
  %v1631 = vpop.f32.mrf.mxu0
  %v1632 = vadd.f32 0.0, %v1631
  %1633 = vdwg.mxu0
  %v1634 = vmul.f32 %v1616, %v109
  %v1635 = vmul.f32 %v1630, %v110
  %v1636 = vmul.f32 %v1618, %v111
  %v1637 = vmul.f32 %v1632, %v112
  %1638 = vmatpush.msra.mxu0 %v128
  %1639 = vmatpush.msra.mxu0 %v127
  %1640 = vmatpush.msra.mxu0 %v126
  %1641 = vmatpush.msra.mxu0 %v125
  %1642 = vmatpush.msra.mxu0 %v124
  %1643 = vmatpush.msra.mxu0 %v123
  %1644 = vmatpush.msra.mxu0 %v122
  %1645 = vmatpush.msra.mxu0 %v121
  %1646 = vmatpush.msra.mxu0 %v120
  %1647 = vmatpush.msra.mxu0 %v119
  %1648 = vmatpush.msra.mxu0 %v118
  %1649 = vmatpush.msra.mxu0 %v117
  %1650 = vmatpush.msra.mxu0 %v116
  %1651 = vmatpush.msra.mxu0 %v115
  %1652 = vmatpush.msra.mxu0 %v114
  %1653 = vmatpush.msra.mxu0 %v113
  %1654 = vmatmul.f32.gmra.mxu0 %v1634
  %v1655 = vpop.f32.mrf.mxu0
  %v1656 = vadd.f32 %v107, %v1655
  %1657 = vmatmul.f32.gmra.mxu0 %v1636
  %v1658 = vpop.f32.mrf.mxu0
  %v1659 = vadd.f32 %v108, %v1658
  %1660 = vdwg.mxu0
  %1661 = vmatpush.msra.mxu0 %v144
  %1662 = vmatpush.msra.mxu0 %v143
  %1663 = vmatpush.msra.mxu0 %v142
  %1664 = vmatpush.msra.mxu0 %v141
  %1665 = vmatpush.msra.mxu0 %v140
  %1666 = vmatpush.msra.mxu0 %v139
  %1667 = vmatpush.msra.mxu0 %v138
  %1668 = vmatpush.msra.mxu0 %v137
  %1669 = vmatpush.msra.mxu0 %v136
  %1670 = vmatpush.msra.mxu0 %v135
  %1671 = vmatpush.msra.mxu0 %v134
  %1672 = vmatpush.msra.mxu0 %v133
  %1673 = vmatpush.msra.mxu0 %v132
  %1674 = vmatpush.msra.mxu0 %v131
  %1675 = vmatpush.msra.mxu0 %v130
  %1676 = vmatpush.msra.mxu0 %v129
  %1677 = vmatmul.f32.gmra.mxu0 %v1635
  %v1678 = vpop.f32.mrf.mxu0
  %v1679 = vadd.f32 %v1656, %v1678
  %1680 = vmatmul.f32.gmra.mxu0 %v1637
  %v1681 = vpop.f32.mrf.mxu0
  %v1682 = vadd.f32 %v1659, %v1681
  %1683 = vdwg.mxu0
  %s1684 = scalar_lea.vmem %s15, 1
  %v1685 = vld [vmem:[%s1684] sm:$0x1]
  %v1688 = vunpack.c.l.b16 %v1557
  %v1689 = vunpack.c.l.b16 %v1558
  %v1690 = vpack.c.b16 %v1689, %v1688
  %v1692 = vsel %vm87, %v1568, 0
  %v1695 = vsel %vm87, %v1690, 0
  %1697 = vmatpush.bf16.xpose.msra.mxu0 0
  %1698 = vmatpush.bf16.xpose.msra.mxu0 0
  %1699 = vmatpush.bf16.xpose.msra.mxu0 0
  %1700 = vmatpush.bf16.xpose.msra.mxu0 0
  %1701 = vmatpush.bf16.xpose.msra.mxu0 0
  %1702 = vmatpush.bf16.xpose.msra.mxu0 0
  %1703 = vmatpush.bf16.xpose.msra.mxu0 0
  %1704 = vmatpush.bf16.xpose.msra.mxu0 %v1695
  %1705 = vmatmul.bf16.gmra.mxu0 %v1692
  %v1706 = vpop.f32.mrf.mxu0
  %v1707 = vadd.f32 %v1679, %v1706
  %v1708 = vpop.f32.mrf.mxu0
  %1709 = vdwg.mxu0
  %v1712 = vunpack.c.l.b16 %v1559
  %v1713 = vunpack.c.l.b16 %v1560
  %v1714 = vpack.c.b16 %v1713, %v1712
  %v1716 = vsel %vm87, %v1569, 0
  %v1719 = vsel %vm87, %v1714, 0
  %1721 = vmatpush.bf16.xpose.msra.mxu0 0
  %1722 = vmatpush.bf16.xpose.msra.mxu0 0
  %1723 = vmatpush.bf16.xpose.msra.mxu0 0
  %1724 = vmatpush.bf16.xpose.msra.mxu0 0
  %1725 = vmatpush.bf16.xpose.msra.mxu0 0
  %1726 = vmatpush.bf16.xpose.msra.mxu0 0
  %1727 = vmatpush.bf16.xpose.msra.mxu0 0
  %1728 = vmatpush.bf16.xpose.msra.mxu0 %v1719
  %1729 = vmatmul.bf16.gmra.mxu0 %v1716
  %v1730 = vpop.f32.mrf.mxu0
  %v1731 = vadd.f32 %v1682, %v1730
  %v1732 = vpop.f32.mrf.mxu0
  %1733 = vdwg.mxu0
  %v1734 = vsel %vm87, %v1707, -inf
  %1735 = vmax.xlane.f32.xlu0 %v1734
  %v1736 = vpop.xlane.xlu0 %1735
  %v1737 = vsel %vm87, %v1731, -inf
  %1738 = vmax.xlane.f32.xlu0 %v1737
  %v1739 = vpop.xlane.xlu0 %1738
  %v1740 = vsub.f32 %v1707, %v1736
  %v1741 = vsub.f32 %v1731, %v1739
  %v1742 = vmul.f32 %v1740, 1.442695
  %v1743 = vpow.pop %v1742
  %v1744 = vmul.f32 %v1741, 1.442695
  %v1745 = vpow.pop %v1744
  %v1746 = vsel %vm87, %v1743, 0.0
  %1747 = vadd.xlane.f32.xlu0 %v1746
  %v1748 = vpop.xlane.xlu0 %1747
  %v1749 = vsel %vm87, %v1745, 0.0
  %1750 = vadd.xlane.f32.xlu0 %v1749
  %v1751 = vpop.xlane.xlu0 %1750
  %v1752 = vrcp.pop %v1748
  %v1753 = vrcp.pop %v1751
  %v1754 = vmul.f32 %v1743, %v1752
  %v1755 = vmul.f32 %v1745, %v1753
  %v1756 = vpack.c.bf16 %v1754, %v1754
  %v1757 = vpack.c.bf16 %v1755, %v1755
  %1758 = vrot.lane.b32.xlu0 %v1690, 96
  %v1759 = vpop.permute.xlu0 %1758
  %v1762 = vsel %vm87, %v1756, 0
  %1764 = vmatpush.bf16.msra.mxu0 0
  %1765 = vmatpush.bf16.msra.mxu0 0
  %1766 = vmatpush.bf16.msra.mxu0 0
  %1767 = vmatpush.bf16.msra.mxu0 0
  %1768 = vmatpush.bf16.msra.mxu0 0
  %1769 = vmatpush.bf16.msra.mxu0 0
  %1770 = vmatpush.bf16.msra.mxu0 0
  %1771 = vmatpush.bf16.msra.mxu0 %v1759
  %1772 = vmatmul.bf16.gmra.mxu0 %v1762
  %v1773 = vpop.f32.mrf.mxu0
  %v1774 = vadd.f32 0.0, %v1773
  %v1775 = vpop.f32.mrf.mxu0
  %1776 = vdwg.mxu0
  %1777 = vrot.lane.b32.xlu0 %v1714, 96
  %v1778 = vpop.permute.xlu0 %1777
  %v1781 = vsel %vm87, %v1757, 0
  %1783 = vmatpush.bf16.msra.mxu0 0
  %1784 = vmatpush.bf16.msra.mxu0 0
  %1785 = vmatpush.bf16.msra.mxu0 0
  %1786 = vmatpush.bf16.msra.mxu0 0
  %1787 = vmatpush.bf16.msra.mxu0 0
  %1788 = vmatpush.bf16.msra.mxu0 0
  %1789 = vmatpush.bf16.msra.mxu0 0
  %1790 = vmatpush.bf16.msra.mxu0 %v1778
  %1791 = vmatmul.bf16.gmra.mxu0 %v1781
  %v1792 = vpop.f32.mrf.mxu0
  %v1793 = vadd.f32 0.0, %v1792
  %v1794 = vpop.f32.mrf.mxu0
  %1795 = vdwg.mxu0
  %v1796 = vpack.c.bf16 %v1793, %v1774
  %s1797 = scalar_lea.vmem %s14, 16
  %v1798 = vld [vmem:[%s1797] sm:$0xf]
  %v1799 = vld [vmem:[%s1797 + $0x4] sm:$0xf]
  %v1802 = vunpack.c.l.b16 %v1798
  %v1803 = vunpack.c.l.b16 %v1799
  %v1804 = vpack.c.b16 %v1803, %v1802
  %v1807 = vsel %vm87, %v1796, 0
  %1809 = vmatpush.bf16.msra.mxu0 0
  %1810 = vmatpush.bf16.msra.mxu0 0
  %1811 = vmatpush.bf16.msra.mxu0 0
  %1812 = vmatpush.bf16.msra.mxu0 0
  %1813 = vmatpush.bf16.msra.mxu0 0
  %1814 = vmatpush.bf16.msra.mxu0 0
  %1815 = vmatpush.bf16.msra.mxu0 0
  %1816 = vmatpush.bf16.msra.mxu0 %v1804
  %1817 = vmatmul.bf16.gmra.mxu0 %v1807
  %v1818 = vpop.f32.mrf.mxu0
  %v1819 = vadd.f32 0.0, %v1818
  %v1820 = vpop.f32.mrf.mxu0
  %v1821 = vadd.f32 0.0, %v1820
  %1822 = vdwg.mxu0
  %v1824 = vperm.slane %v1685, 0
  %v1826 = vadd.f32 %v1824, %v1819
  %v1827 = vadd.f32 %v1824, %v1821
  %v1829 = vunpack.c.l.b16 %v1568
  %v1830 = vpack.c.b16 %v1829, %v1829
  %1831 = vrot.lane.b32.xlu0 %v1830, 112
  %v1832 = vpop.permute.xlu0 %1831
  %1833 = vrot.lane.b32.xlu0 %v1690, 112
  %v1834 = vpop.permute.xlu0 %1833
  %1836 = vrot.lane.b32.xlu0 %v1679, 112
  %v1837 = vpop.permute.xlu0 %1836
  %v1840 = vsel %vm87, %v1832, 0
  %v1843 = vsel %vm87, %v1834, 0
  %1845 = vmatpush.bf16.xpose.msra.mxu0 0
  %1846 = vmatpush.bf16.xpose.msra.mxu0 0
  %1847 = vmatpush.bf16.xpose.msra.mxu0 0
  %1848 = vmatpush.bf16.xpose.msra.mxu0 0
  %1849 = vmatpush.bf16.xpose.msra.mxu0 0
  %1850 = vmatpush.bf16.xpose.msra.mxu0 0
  %1851 = vmatpush.bf16.xpose.msra.mxu0 0
  %1852 = vmatpush.bf16.xpose.msra.mxu0 %v1843
  %1853 = vmatmul.bf16.gmra.mxu0 %v1840
  %v1854 = vpop.f32.mrf.mxu0
  %v1855 = vadd.f32 %v1837, %v1854
  %v1856 = vpop.f32.mrf.mxu0
  %1857 = vdwg.mxu0
  %v1859 = vunpack.c.l.b16 %v1569
  %v1860 = vpack.c.b16 %v1859, %v1859
  %1861 = vrot.lane.b32.xlu0 %v1860, 112
  %v1862 = vpop.permute.xlu0 %1861
  %1863 = vrot.lane.b32.xlu0 %v1714, 112
  %v1864 = vpop.permute.xlu0 %1863
  %1866 = vrot.lane.b32.xlu0 %v1682, 112
  %v1867 = vpop.permute.xlu0 %1866
  %v1870 = vsel %vm87, %v1862, 0
  %v1873 = vsel %vm87, %v1864, 0
  %1875 = vmatpush.bf16.xpose.msra.mxu0 0
  %1876 = vmatpush.bf16.xpose.msra.mxu0 0
  %1877 = vmatpush.bf16.xpose.msra.mxu0 0
  %1878 = vmatpush.bf16.xpose.msra.mxu0 0
  %1879 = vmatpush.bf16.xpose.msra.mxu0 0
  %1880 = vmatpush.bf16.xpose.msra.mxu0 0
  %1881 = vmatpush.bf16.xpose.msra.mxu0 0
  %1882 = vmatpush.bf16.xpose.msra.mxu0 %v1873
  %1883 = vmatmul.bf16.gmra.mxu0 %v1870
  %v1884 = vpop.f32.mrf.mxu0
  %v1885 = vadd.f32 %v1867, %v1884
  %v1886 = vpop.f32.mrf.mxu0
  %1887 = vdwg.mxu0
  %v1888 = vsel %vm87, %v1855, -inf
  %1889 = vmax.xlane.f32.xlu0 %v1888
  %v1890 = vpop.xlane.xlu0 %1889
  %v1891 = vsel %vm87, %v1885, -inf
  %1892 = vmax.xlane.f32.xlu0 %v1891
  %v1893 = vpop.xlane.xlu0 %1892
  %v1894 = vsub.f32 %v1855, %v1890
  %v1895 = vsub.f32 %v1885, %v1893
  %v1896 = vmul.f32 %v1894, 1.442695
  %v1897 = vpow.pop %v1896
  %v1898 = vmul.f32 %v1895, 1.442695
  %v1899 = vpow.pop %v1898
  %v1900 = vsel %vm87, %v1897, 0.0
  %1901 = vadd.xlane.f32.xlu0 %v1900
  %v1902 = vpop.xlane.xlu0 %1901
  %v1903 = vsel %vm87, %v1899, 0.0
  %1904 = vadd.xlane.f32.xlu0 %v1903
  %v1905 = vpop.xlane.xlu0 %1904
  %v1906 = vrcp.pop %v1902
  %v1907 = vrcp.pop %v1905
  %v1908 = vmul.f32 %v1897, %v1906
  %v1909 = vmul.f32 %v1899, %v1907
  %v1910 = vpack.c.bf16 %v1908, %v1908
  %v1911 = vpack.c.bf16 %v1909, %v1909
  %1912 = vrot.lane.b32.xlu0 %v1690, 80
  %v1913 = vpop.permute.xlu0 %1912
  %v1916 = vsel %vm87, %v1910, 0
  %1918 = vmatpush.bf16.msra.mxu0 0
  %1919 = vmatpush.bf16.msra.mxu0 0
  %1920 = vmatpush.bf16.msra.mxu0 0
  %1921 = vmatpush.bf16.msra.mxu0 0
  %1922 = vmatpush.bf16.msra.mxu0 0
  %1923 = vmatpush.bf16.msra.mxu0 0
  %1924 = vmatpush.bf16.msra.mxu0 0
  %1925 = vmatpush.bf16.msra.mxu0 %v1913
  %1926 = vmatmul.bf16.gmra.mxu0 %v1916
  %v1927 = vpop.f32.mrf.mxu0
  %v1928 = vadd.f32 0.0, %v1927
  %v1929 = vpop.f32.mrf.mxu0
  %1930 = vdwg.mxu0
  %1931 = vrot.lane.b32.xlu0 %v1714, 80
  %v1932 = vpop.permute.xlu0 %1931
  %v1935 = vsel %vm87, %v1911, 0
  %1937 = vmatpush.bf16.msra.mxu0 0
  %1938 = vmatpush.bf16.msra.mxu0 0
  %1939 = vmatpush.bf16.msra.mxu0 0
  %1940 = vmatpush.bf16.msra.mxu0 0
  %1941 = vmatpush.bf16.msra.mxu0 0
  %1942 = vmatpush.bf16.msra.mxu0 0
  %1943 = vmatpush.bf16.msra.mxu0 0
  %1944 = vmatpush.bf16.msra.mxu0 %v1932
  %1945 = vmatmul.bf16.gmra.mxu0 %v1935
  %v1946 = vpop.f32.mrf.mxu0
  %v1947 = vadd.f32 0.0, %v1946
  %v1948 = vpop.f32.mrf.mxu0
  %1949 = vdwg.mxu0
  %v1950 = vpack.c.bf16 %v1947, %v1928
  %v1951 = vld [vmem:[%s1797 + $0x8] sm:$0xf]
  %v1952 = vld [vmem:[%s1797 + $0xc] sm:$0xf]
  %v1955 = vunpack.c.l.b16 %v1951
  %v1956 = vunpack.c.l.b16 %v1952
  %v1957 = vpack.c.b16 %v1956, %v1955
  %v1960 = vsel %vm87, %v1950, 0
  %1962 = vmatpush.bf16.msra.mxu0 0
  %1963 = vmatpush.bf16.msra.mxu0 0
  %1964 = vmatpush.bf16.msra.mxu0 0
  %1965 = vmatpush.bf16.msra.mxu0 0
  %1966 = vmatpush.bf16.msra.mxu0 0
  %1967 = vmatpush.bf16.msra.mxu0 0
  %1968 = vmatpush.bf16.msra.mxu0 0
  %1969 = vmatpush.bf16.msra.mxu0 %v1957
  %1970 = vmatmul.bf16.gmra.mxu0 %v1960
  %v1971 = vpop.f32.mrf.mxu0
  %v1972 = vadd.f32 0.0, %v1971
  %v1973 = vpop.f32.mrf.mxu0
  %v1974 = vadd.f32 0.0, %v1973
  %1975 = vdwg.mxu0
  %v1976 = vadd.f32 %v1826, %v1972
  %v1977 = vadd.f32 %v1827, %v1974
  %v1978 = vmax.f32 %v1976, 0.0
  %v1979 = vmax.f32 %v1977, 0.0
  %v1980 = vpack.c.bf16 %v1979, %v1978
  %s1981 = scalar_lea.vmem %s16, 32
  %v1982 = vld [vmem:[%s1981] sm:$0xf]
  %v1983 = vld [vmem:[%s1981 + $0x4] sm:$0xf]
  %v1984 = vld [vmem:[%s1981 + $0x8] sm:$0xf]
  %v1985 = vld [vmem:[%s1981 + $0xc] sm:$0xf]
  %v1990 = vunpack.c.l.b16 %v1982
  %v1991 = vunpack.c.l.b16 %v1983
  %v1992 = vunpack.c.l.b16 %v1984
  %v1993 = vunpack.c.l.b16 %v1985
  %v1994 = vpack.c.b16 %v1991, %v1990
  %v1995 = vpack.c.b16 %v1993, %v1992
  %v1999 = vsel %vm149, %v1980, 0
  %2001 = vmatpush.bf16.msra.mxu0 0
  %2002 = vmatpush.bf16.msra.mxu0 0
  %2003 = vmatpush.bf16.msra.mxu0 0
  %2004 = vmatpush.bf16.msra.mxu0 0
  %2005 = vmatpush.bf16.msra.mxu0 0
  %2006 = vmatpush.bf16.msra.mxu0 0
  %2007 = vmatpush.bf16.msra.mxu0 %v1995
  %2008 = vmatpush.bf16.msra.mxu0 %v1994
  %2009 = vmatmul.bf16.gmra.mxu0 %v1999
  %v2010 = vpop.f32.mrf.mxu0
  %v2011 = vadd.f32 0.0, %v2010
  %v2012 = vpop.f32.mrf.mxu0
  %v2013 = vadd.f32 0.0, %v2012
  %2014 = vdwg.mxu0
  %s2015 = scalar_lea.vmem %s17, 32
  %v2016 = vld [vmem:[%s2015] sm:$0xf]
  %v2017 = vld [vmem:[%s2015 + $0x4] sm:$0xf]
  %v2018 = vld [vmem:[%s2015 + $0x8] sm:$0xf]
  %v2019 = vld [vmem:[%s2015 + $0xc] sm:$0xf]
  %v2024 = vunpack.c.l.b16 %v2016
  %v2025 = vunpack.c.l.b16 %v2017
  %v2026 = vunpack.c.l.b16 %v2018
  %v2027 = vunpack.c.l.b16 %v2019
  %v2028 = vpack.c.b16 %v2025, %v2024
  %v2029 = vpack.c.b16 %v2027, %v2026
  %2032 = vmatpush.bf16.msra.mxu0 0
  %2033 = vmatpush.bf16.msra.mxu0 0
  %2034 = vmatpush.bf16.msra.mxu0 0
  %2035 = vmatpush.bf16.msra.mxu0 0
  %2036 = vmatpush.bf16.msra.mxu0 0
  %2037 = vmatpush.bf16.msra.mxu0 0
  %2038 = vmatpush.bf16.msra.mxu0 %v2029
  %2039 = vmatpush.bf16.msra.mxu0 %v2028
  %2040 = vmatmul.bf16.gmra.mxu0 %v1494
  %v2041 = vpop.f32.mrf.mxu0
  %v2042 = vadd.f32 0.0, %v2041
  %v2043 = vpop.f32.mrf.mxu0
  %v2044 = vadd.f32 0.0, %v2043
  %2045 = vdwg.mxu0
  %v2046 = vadd.f32 %v2011, %v2042
  %v2047 = vadd.f32 %v2013, %v2044
  %v2048 = vxor.u32 %v2046, 2147483648
  %v2049 = vxor.u32 %v2047, 2147483648
  %v2050 = vmul.f32 %v2048, 1.442695
  %v2051 = vpow.pop %v2050
  %v2052 = vmul.f32 %v2049, 1.442695
  %v2053 = vpow.pop %v2052
  %v2054 = vadd.f32 %v2051, 1.0
  %v2055 = vadd.f32 %v2053, 1.0
  %v2056 = vrcp.pop %v2054
  %v2057 = vmul.f32 %v2054, %v2056
  %v2058 = vsub.f32 1.0, %v2057
  %v2059 = vmul.f32 %v2056, %v2058
  %v2060 = vadd.f32 %v2056, %v2059
  %vm2061 = vweird.f32 %v2054
  %vm2062 = vweird.f32 %v2056
  %vm2063 = vmor %vm2061, %vm2062
  %v2064 = vsel %vm2063, %v2056, %v2060
  %v2065 = vand.u32 2147483647, %v2054
  %vm2066 = vcmp.eq.f32.partialorder %v2065, 8.507059e+37
  %v2067 = vand.u32 %v2054, 2147483648
  %v2068 = vor.u32 1.1754944e-38, %v2067
  %v2069 = vsel %vm2066, %v2068, %v2064
  %v2070 = vmul.f32 1.0, %v2069
  %v2071 = vrcp.pop %v2055
  %v2072 = vmul.f32 %v2055, %v2071
  %v2073 = vsub.f32 1.0, %v2072
  %v2074 = vmul.f32 %v2071, %v2073
  %v2075 = vadd.f32 %v2071, %v2074
  %vm2076 = vweird.f32 %v2055
  %vm2077 = vweird.f32 %v2071
  %vm2078 = vmor %vm2076, %vm2077
  %v2079 = vsel %vm2078, %v2071, %v2075
  %v2080 = vand.u32 2147483647, %v2055
  %vm2081 = vcmp.eq.f32.partialorder %v2080, 8.507059e+37
  %v2082 = vand.u32 %v2055, 2147483648
  %v2083 = vor.u32 1.1754944e-38, %v2082
  %v2084 = vsel %vm2081, %v2083, %v2079
  %v2085 = vmul.f32 1.0, %v2084
  %s2086 = scalar_lea.vmem %s19, 2
  %v2087 = vld [vmem:[%s2086] sm:$0x1]
  %v2089 = vperm.slane %v2087, 0
  %2090 = vrot.lane.b32.xlu0 %v2089, 32
  %v2091 = vpop.permute.xlu0 %2090
  %v2093 = vsub.f32 %v2046, %v2091
  %v2094 = vsub.f32 %v2047, %v2091
  %v2095 = vxor.u32 %v2093, 2147483648
  %v2096 = vxor.u32 %v2094, 2147483648
  %v2097 = vmul.f32 %v2095, 1.442695
  %v2098 = vpow.pop %v2097
  %v2099 = vmul.f32 %v2096, 1.442695
  %v2100 = vpow.pop %v2099
  %v2101 = vadd.f32 %v2098, 1.0
  %v2102 = vadd.f32 %v2100, 1.0
  %v2103 = vrcp.pop %v2101
  %v2104 = vmul.f32 %v2101, %v2103
  %v2105 = vsub.f32 1.0, %v2104
  %v2106 = vmul.f32 %v2103, %v2105
  %v2107 = vadd.f32 %v2103, %v2106
  %vm2108 = vweird.f32 %v2101
  %vm2109 = vweird.f32 %v2103
  %vm2110 = vmor %vm2108, %vm2109
  %v2111 = vsel %vm2110, %v2103, %v2107
  %v2112 = vand.u32 2147483647, %v2101
  %vm2113 = vcmp.eq.f32.partialorder %v2112, 8.507059e+37
  %v2114 = vand.u32 %v2101, 2147483648
  %v2115 = vor.u32 1.1754944e-38, %v2114
  %v2116 = vsel %vm2113, %v2115, %v2111
  %v2117 = vmul.f32 1.0, %v2116
  %v2118 = vrcp.pop %v2102
  %v2119 = vmul.f32 %v2102, %v2118
  %v2120 = vsub.f32 1.0, %v2119
  %v2121 = vmul.f32 %v2118, %v2120
  %v2122 = vadd.f32 %v2118, %v2121
  %vm2123 = vweird.f32 %v2102
  %vm2124 = vweird.f32 %v2118
  %vm2125 = vmor %vm2123, %vm2124
  %v2126 = vsel %vm2125, %v2118, %v2122
  %v2127 = vand.u32 2147483647, %v2102
  %vm2128 = vcmp.eq.f32.partialorder %v2127, 8.507059e+37
  %v2129 = vand.u32 %v2102, 2147483648
  %v2130 = vor.u32 1.1754944e-38, %v2129
  %v2131 = vsel %vm2128, %v2130, %v2126
  %v2132 = vmul.f32 1.0, %v2131
  %v2133 = vmul.f32 %v2070, %v1368
  %v2134 = vmul.f32 %v2085, %v1370
  %v2135 = vpack.c.bf16 %v2134, %v2133
  %s2136 = scalar_lea.vmem %s18, 32
  %v2137 = vld [vmem:[%s2136] sm:$0xf]
  %v2138 = vld [vmem:[%s2136 + $0x4] sm:$0xf]
  %v2139 = vld [vmem:[%s2136 + $0x8] sm:$0xf]
  %v2140 = vld [vmem:[%s2136 + $0xc] sm:$0xf]
  %v2145 = vunpack.c.l.b16 %v2137
  %v2146 = vunpack.c.l.b16 %v2138
  %v2147 = vunpack.c.l.b16 %v2139
  %v2148 = vunpack.c.l.b16 %v2140
  %v2149 = vpack.c.b16 %v2146, %v2145
  %v2150 = vpack.c.b16 %v2148, %v2147
  %v2154 = vsel %vm149, %v2135, 0
  %2156 = vmatpush.bf16.msra.mxu0 0
  %2157 = vmatpush.bf16.msra.mxu0 0
  %2158 = vmatpush.bf16.msra.mxu0 0
  %2159 = vmatpush.bf16.msra.mxu0 0
  %2160 = vmatpush.bf16.msra.mxu0 0
  %2161 = vmatpush.bf16.msra.mxu0 0
  %2162 = vmatpush.bf16.msra.mxu0 %v2150
  %2163 = vmatpush.bf16.msra.mxu0 %v2149
  %2164 = vmatmul.bf16.gmra.mxu0 %v2154
  %v2165 = vpop.f32.mrf.mxu0
  %v2166 = vadd.f32 0.0, %v2165
  %v2167 = vpop.f32.mrf.mxu0
  %v2168 = vadd.f32 0.0, %v2167
  %2169 = vdwg.mxu0
  %2172 = vrot.lane.b32.xlu0 %v2166, 64
  %v2173 = vpop.permute.xlu0 %2172
  %2174 = vrot.lane.b32.xlu0 %v2168, 64
  %v2175 = vpop.permute.xlu0 %2174
  %v2178 = vadd.f32 %v2011, %v2173
  %v2179 = vadd.f32 %v2013, %v2175
  %v2180 = vtanh.pop %v2178
  %v2181 = vtanh.pop %v2179
  %v2182 = vsub.f32 1.0, %v2117
  %v2183 = vsub.f32 1.0, %v2132
  %v2184 = vmul.f32 %v2182, %v1357
  %v2185 = vmul.f32 %v2183, %v1358
  %2188 = vrot.lane.b32.xlu0 %v2180, 96
  %v2189 = vpop.permute.xlu0 %2188
  %2190 = vrot.lane.b32.xlu0 %v2181, 96
  %v2191 = vpop.permute.xlu0 %2190
  %v2194 = vmul.f32 %v2117, %v2189
  %v2195 = vmul.f32 %v2132, %v2191
  %v2196 = vadd.f32 %v2184, %v2194
  %v2197 = vadd.f32 %v2185, %v2195
  %2200 = vrot.lane.b32.xlu0 %v2196, 96
  %v2201 = vpop.permute.xlu0 %2200
  %2202 = vrot.lane.b32.xlu0 %v2197, 96
  %v2203 = vpop.permute.xlu0 %2202
  %v2206 = vsel %vm149, %v2201, 0.0
  %2207 = vadd.xlane.f32.xlu0 %v2206
  %v2208 = vpop.xlane.xlu0 %2207
  %v2209 = vsel %vm149, %v2203, 0.0
  %2210 = vadd.xlane.f32.xlu0 %v2209
  %v2211 = vpop.xlane.xlu0 %2210
  %v2212 = vmul.f32 %v2208, %v168
  %v2213 = vmul.f32 %v2211, %v168
  %v2214 = vsub.f32 %v2196, %v2212
  %v2215 = vsub.f32 %v2197, %v2213
  %v2216 = vmul.f32 %v2214, %v2214
  %v2217 = vmul.f32 %v2215, %v2215
  %2220 = vrot.lane.b32.xlu0 %v2216, 96
  %v2221 = vpop.permute.xlu0 %2220
  %2222 = vrot.lane.b32.xlu0 %v2217, 96
  %v2223 = vpop.permute.xlu0 %2222
  %v2226 = vsel %vm149, %v2221, 0.0
  %2227 = vadd.xlane.f32.xlu0 %v2226
  %v2228 = vpop.xlane.xlu0 %2227
  %v2229 = vsel %vm149, %v2223, 0.0
  %2230 = vadd.xlane.f32.xlu0 %v2229
  %v2231 = vpop.xlane.xlu0 %2230
  %v2232 = vmul.f32 %v2228, %v168
  %v2233 = vmul.f32 %v2231, %v168
  %v2234 = vadd.f32 %v2232, 1e-05
  %v2235 = vadd.f32 %v2233, 1e-05
  %v2236 = vrsqrt.pop %v2234
  %v2237 = vmul.f32 %v2236, %v2234
  %v2238 = vmul.f32 %v2237, %v2236
  %v2239 = vmul.f32 0.5, %v2238
  %v2240 = vsub.f32 1.5, %v2239
  %v2241 = vmul.f32 %v2236, %v2240
  %vm2242 = vweird.f32 %v2234
  %vm2243 = vweird.f32 %v2236
  %vm2244 = vmor %vm2242, %vm2243
  %v2245 = vsel %vm2244, %v2236, %v2241
  %v2246 = vrsqrt.pop %v2235
  %v2247 = vmul.f32 %v2246, %v2235
  %v2248 = vmul.f32 %v2247, %v2246
  %v2249 = vmul.f32 0.5, %v2248
  %v2250 = vsub.f32 1.5, %v2249
  %v2251 = vmul.f32 %v2246, %v2250
  %vm2252 = vweird.f32 %v2235
  %vm2253 = vweird.f32 %v2246
  %vm2254 = vmor %vm2252, %vm2253
  %v2255 = vsel %vm2254, %v2246, %v2251
  %v2256 = vmul.f32 %v2214, %v2245
  %v2257 = vmul.f32 %v2215, %v2255
  %v2258 = vperm.slane %v1360, 2
  %2260 = vrot.lane.b32.xlu0 %v2258, 32
  %v2261 = vpop.permute.xlu0 %2260
  %v2263 = vmul.f32 %v2256, %v2261
  %v2264 = vmul.f32 %v2257, %v2261
  %v2265 = vperm.slane %v1360, 3
  %2267 = vrot.lane.b32.xlu0 %v2265, 32
  %v2268 = vpop.permute.xlu0 %2267
  %v2270 = vadd.f32 %v2263, %v2268
  %v2271 = vadd.f32 %v2264, %v2268
  %v2272 = vpack.c.bf16 %v2271, %v2270
  %s2273 = scalar_lea.vmem %s20, 32
  %v2274 = vld [vmem:[%s2273] sm:$0xf]
  %v2275 = vld [vmem:[%s2273 + $0x4] sm:$0xf]
  %v2276 = vld [vmem:[%s2273 + $0x8] sm:$0xf]
  %v2277 = vld [vmem:[%s2273 + $0xc] sm:$0xf]
  %s2278 = scalar_lea.vmem %s21, 2
  %v2279 = vld [vmem:[%s2278] sm:$0x1]
  %v2281 = vperm.slane %v2279, 0
  %2284 = vrot.lane.b32.xlu0 %v2272, 96
  %v2285 = vpop.permute.xlu0 %2284
  %v2290 = vunpack.c.l.b16 %v2274
  %v2291 = vunpack.c.l.b16 %v2275
  %v2292 = vunpack.c.l.b16 %v2276
  %v2293 = vunpack.c.l.b16 %v2277
  %v2294 = vpack.c.b16 %v2291, %v2290
  %v2295 = vpack.c.b16 %v2293, %v2292
  %v2299 = vsel %vm149, %v2285, 0
  %2301 = vmatpush.bf16.msra.mxu0 0
  %2302 = vmatpush.bf16.msra.mxu0 0
  %2303 = vmatpush.bf16.msra.mxu0 0
  %2304 = vmatpush.bf16.msra.mxu0 0
  %2305 = vmatpush.bf16.msra.mxu0 0
  %2306 = vmatpush.bf16.msra.mxu0 0
  %2307 = vmatpush.bf16.msra.mxu0 %v2295
  %2308 = vmatpush.bf16.msra.mxu0 %v2294
  %2309 = vmatmul.bf16.gmra.mxu0 %v2299
  %v2310 = vpop.f32.mrf.mxu0
  %v2311 = vadd.f32 %v2281, %v2310
  %v2312 = vpop.f32.mrf.mxu0
  %v2313 = vadd.f32 %v2281, %v2312
  %2314 = vdwg.mxu0
  %v2315 = vmax.f32 %v2311, 0.0
  %v2316 = vmax.f32 %v2313, 0.0
  %v2317 = vpack.c.bf16 %v2316, %v2315
  %s2318 = scalar_lea.vmem %s20, 48
  %v2319 = vld [vmem:[%s2318] sm:$0xf]
  %v2320 = vld [vmem:[%s2318 + $0x4] sm:$0xf]
  %v2321 = vld [vmem:[%s2318 + $0x8] sm:$0xf]
  %v2322 = vld [vmem:[%s2318 + $0xc] sm:$0xf]
  %s2323 = scalar_lea.vmem %s21, 3
  %v2324 = vld [vmem:[%s2323] sm:$0x1]
  %v2326 = vperm.slane %v2324, 0
  %v2332 = vunpack.c.l.b16 %v2319
  %v2333 = vunpack.c.l.b16 %v2320
  %v2334 = vunpack.c.l.b16 %v2321
  %v2335 = vunpack.c.l.b16 %v2322
  %v2336 = vpack.c.b16 %v2333, %v2332
  %v2337 = vpack.c.b16 %v2335, %v2334
  %v2341 = vsel %vm149, %v2317, 0
  %2343 = vmatpush.bf16.msra.mxu0 0
  %2344 = vmatpush.bf16.msra.mxu0 0
  %2345 = vmatpush.bf16.msra.mxu0 0
  %2346 = vmatpush.bf16.msra.mxu0 0
  %2347 = vmatpush.bf16.msra.mxu0 0
  %2348 = vmatpush.bf16.msra.mxu0 0
  %2349 = vmatpush.bf16.msra.mxu0 %v2337
  %2350 = vmatpush.bf16.msra.mxu0 %v2336
  %2351 = vmatmul.bf16.gmra.mxu0 %v2341
  %v2352 = vpop.f32.mrf.mxu0
  %v2353 = vadd.f32 %v2326, %v2352
  %v2354 = vpop.f32.mrf.mxu0
  %v2355 = vadd.f32 %v2326, %v2354
  %2356 = vdwg.mxu0
  %v2357 = vmax.f32 %v2353, 0.0
  %v2358 = vmax.f32 %v2355, 0.0
  %v2359 = vpack.c.bf16 %v2197, %v2196
  %v2360 = vpack.c.bf16 %v2358, %v2357
  %s2361 = scalar_lea.vmem %s16, 48
  %v2362 = vld [vmem:[%s2361] sm:$0xf]
  %v2363 = vld [vmem:[%s2361 + $0x4] sm:$0xf]
  %v2364 = vld [vmem:[%s2361 + $0x8] sm:$0xf]
  %v2365 = vld [vmem:[%s2361 + $0xc] sm:$0xf]
  %v2370 = vunpack.c.l.b16 %v2362
  %v2371 = vunpack.c.l.b16 %v2363
  %v2372 = vunpack.c.l.b16 %v2364
  %v2373 = vunpack.c.l.b16 %v2365
  %v2374 = vpack.c.b16 %v2371, %v2370
  %v2375 = vpack.c.b16 %v2373, %v2372
  %v2379 = vsel %vm149, %v2360, 0
  %2381 = vmatpush.bf16.msra.mxu0 0
  %2382 = vmatpush.bf16.msra.mxu0 0
  %2383 = vmatpush.bf16.msra.mxu0 0
  %2384 = vmatpush.bf16.msra.mxu0 0
  %2385 = vmatpush.bf16.msra.mxu0 0
  %2386 = vmatpush.bf16.msra.mxu0 0
  %2387 = vmatpush.bf16.msra.mxu0 %v2375
  %2388 = vmatpush.bf16.msra.mxu0 %v2374
  %2389 = vmatmul.bf16.gmra.mxu0 %v2379
  %v2390 = vpop.f32.mrf.mxu0
  %v2391 = vadd.f32 0.0, %v2390
  %v2392 = vpop.f32.mrf.mxu0
  %v2393 = vadd.f32 0.0, %v2392
  %2394 = vdwg.mxu0
  %s2395 = scalar_lea.vmem %s17, 48
  %v2396 = vld [vmem:[%s2395] sm:$0xf]
  %v2397 = vld [vmem:[%s2395 + $0x4] sm:$0xf]
  %v2398 = vld [vmem:[%s2395 + $0x8] sm:$0xf]
  %v2399 = vld [vmem:[%s2395 + $0xc] sm:$0xf]
  %2401 = vrot.lane.b32.xlu0 %v2359, 96
  %v2402 = vpop.permute.xlu0 %2401
  %v2407 = vunpack.c.l.b16 %v2396
  %v2408 = vunpack.c.l.b16 %v2397
  %v2409 = vunpack.c.l.b16 %v2398
  %v2410 = vunpack.c.l.b16 %v2399
  %v2411 = vpack.c.b16 %v2408, %v2407
  %v2412 = vpack.c.b16 %v2410, %v2409
  %v2416 = vsel %vm149, %v2402, 0
  %2418 = vmatpush.bf16.msra.mxu0 0
  %2419 = vmatpush.bf16.msra.mxu0 0
  %2420 = vmatpush.bf16.msra.mxu0 0
  %2421 = vmatpush.bf16.msra.mxu0 0
  %2422 = vmatpush.bf16.msra.mxu0 0
  %2423 = vmatpush.bf16.msra.mxu0 0
  %2424 = vmatpush.bf16.msra.mxu0 %v2412
  %2425 = vmatpush.bf16.msra.mxu0 %v2411
  %2426 = vmatmul.bf16.gmra.mxu0 %v2416
  %v2427 = vpop.f32.mrf.mxu0
  %v2428 = vadd.f32 0.0, %v2427
  %v2429 = vpop.f32.mrf.mxu0
  %v2430 = vadd.f32 0.0, %v2429
  %2431 = vdwg.mxu0
  %v2432 = vadd.f32 %v2391, %v2428
  %v2433 = vadd.f32 %v2393, %v2430
  %v2434 = vxor.u32 %v2432, 2147483648
  %v2435 = vxor.u32 %v2433, 2147483648
  %v2436 = vmul.f32 %v2434, 1.442695
  %v2437 = vpow.pop %v2436
  %v2438 = vmul.f32 %v2435, 1.442695
  %v2439 = vpow.pop %v2438
  %v2440 = vadd.f32 %v2437, 1.0
  %v2441 = vadd.f32 %v2439, 1.0
  %v2442 = vrcp.pop %v2440
  %v2443 = vmul.f32 %v2440, %v2442
  %v2444 = vsub.f32 1.0, %v2443
  %v2445 = vmul.f32 %v2442, %v2444
  %v2446 = vadd.f32 %v2442, %v2445
  %vm2447 = vweird.f32 %v2440
  %vm2448 = vweird.f32 %v2442
  %vm2449 = vmor %vm2447, %vm2448
  %v2450 = vsel %vm2449, %v2442, %v2446
  %v2451 = vand.u32 2147483647, %v2440
  %vm2452 = vcmp.eq.f32.partialorder %v2451, 8.507059e+37
  %v2453 = vand.u32 %v2440, 2147483648
  %v2454 = vor.u32 1.1754944e-38, %v2453
  %v2455 = vsel %vm2452, %v2454, %v2450
  %v2456 = vmul.f32 1.0, %v2455
  %v2457 = vrcp.pop %v2441
  %v2458 = vmul.f32 %v2441, %v2457
  %v2459 = vsub.f32 1.0, %v2458
  %v2460 = vmul.f32 %v2457, %v2459
  %v2461 = vadd.f32 %v2457, %v2460
  %vm2462 = vweird.f32 %v2441
  %vm2463 = vweird.f32 %v2457
  %vm2464 = vmor %vm2462, %vm2463
  %v2465 = vsel %vm2464, %v2457, %v2461
  %v2466 = vand.u32 2147483647, %v2441
  %vm2467 = vcmp.eq.f32.partialorder %v2466, 8.507059e+37
  %v2468 = vand.u32 %v2441, 2147483648
  %v2469 = vor.u32 1.1754944e-38, %v2468
  %v2470 = vsel %vm2467, %v2469, %v2465
  %v2471 = vmul.f32 1.0, %v2470
  %s2472 = scalar_lea.vmem %s19, 3
  %v2473 = vld [vmem:[%s2472] sm:$0x1]
  %v2475 = vperm.slane %v2473, 0
  %2476 = vrot.lane.b32.xlu0 %v2475, 32
  %v2477 = vpop.permute.xlu0 %2476
  %v2479 = vsub.f32 %v2432, %v2477
  %v2480 = vsub.f32 %v2433, %v2477
  %v2481 = vxor.u32 %v2479, 2147483648
  %v2482 = vxor.u32 %v2480, 2147483648
  %v2483 = vmul.f32 %v2481, 1.442695
  %v2484 = vpow.pop %v2483
  %v2485 = vmul.f32 %v2482, 1.442695
  %v2486 = vpow.pop %v2485
  %v2487 = vadd.f32 %v2484, 1.0
  %v2488 = vadd.f32 %v2486, 1.0
  %v2489 = vrcp.pop %v2487
  %v2490 = vmul.f32 %v2487, %v2489
  %v2491 = vsub.f32 1.0, %v2490
  %v2492 = vmul.f32 %v2489, %v2491
  %v2493 = vadd.f32 %v2489, %v2492
  %vm2494 = vweird.f32 %v2487
  %vm2495 = vweird.f32 %v2489
  %vm2496 = vmor %vm2494, %vm2495
  %v2497 = vsel %vm2496, %v2489, %v2493
  %v2498 = vand.u32 2147483647, %v2487
  %vm2499 = vcmp.eq.f32.partialorder %v2498, 8.507059e+37
  %v2500 = vand.u32 %v2487, 2147483648
  %v2501 = vor.u32 1.1754944e-38, %v2500
  %v2502 = vsel %vm2499, %v2501, %v2497
  %v2503 = vmul.f32 1.0, %v2502
  %v2504 = vrcp.pop %v2488
  %v2505 = vmul.f32 %v2488, %v2504
  %v2506 = vsub.f32 1.0, %v2505
  %v2507 = vmul.f32 %v2504, %v2506
  %v2508 = vadd.f32 %v2504, %v2507
  %vm2509 = vweird.f32 %v2488
  %vm2510 = vweird.f32 %v2504
  %vm2511 = vmor %vm2509, %vm2510
  %v2512 = vsel %vm2511, %v2504, %v2508
  %v2513 = vand.u32 2147483647, %v2488
  %vm2514 = vcmp.eq.f32.partialorder %v2513, 8.507059e+37
  %v2515 = vand.u32 %v2488, 2147483648
  %v2516 = vor.u32 1.1754944e-38, %v2515
  %v2517 = vsel %vm2514, %v2516, %v2512
  %v2518 = vmul.f32 1.0, %v2517
  %v2519 = vmul.f32 %v2456, %v2201
  %v2520 = vmul.f32 %v2471, %v2203
  %v2521 = vpack.c.bf16 %v2520, %v2519
  %s2522 = scalar_lea.vmem %s18, 48
  %v2523 = vld [vmem:[%s2522] sm:$0xf]
  %v2524 = vld [vmem:[%s2522 + $0x4] sm:$0xf]
  %v2525 = vld [vmem:[%s2522 + $0x8] sm:$0xf]
  %v2526 = vld [vmem:[%s2522 + $0xc] sm:$0xf]
  %v2531 = vunpack.c.l.b16 %v2523
  %v2532 = vunpack.c.l.b16 %v2524
  %v2533 = vunpack.c.l.b16 %v2525
  %v2534 = vunpack.c.l.b16 %v2526
  %v2535 = vpack.c.b16 %v2532, %v2531
  %v2536 = vpack.c.b16 %v2534, %v2533
  %v2540 = vsel %vm149, %v2521, 0
  %2542 = vmatpush.bf16.msra.mxu0 0
  %2543 = vmatpush.bf16.msra.mxu0 0
  %2544 = vmatpush.bf16.msra.mxu0 0
  %2545 = vmatpush.bf16.msra.mxu0 0
  %2546 = vmatpush.bf16.msra.mxu0 0
  %2547 = vmatpush.bf16.msra.mxu0 0
  %2548 = vmatpush.bf16.msra.mxu0 %v2536
  %2549 = vmatpush.bf16.msra.mxu0 %v2535
  %2550 = vmatmul.bf16.gmra.mxu0 %v2540
  %v2551 = vpop.f32.mrf.mxu0
  %v2552 = vadd.f32 0.0, %v2551
  %v2553 = vpop.f32.mrf.mxu0
  %v2554 = vadd.f32 0.0, %v2553
  %2555 = vdwg.mxu0
  %2558 = vrot.lane.b32.xlu0 %v2552, 64
  %v2559 = vpop.permute.xlu0 %2558
  %2560 = vrot.lane.b32.xlu0 %v2554, 64
  %v2561 = vpop.permute.xlu0 %2560
  %v2564 = vadd.f32 %v2391, %v2559
  %v2565 = vadd.f32 %v2393, %v2561
  %v2566 = vtanh.pop %v2564
  %v2567 = vtanh.pop %v2565
  %v2568 = vsub.f32 1.0, %v2503
  %v2569 = vsub.f32 1.0, %v2518
  %v2570 = vmul.f32 %v2568, %v2196
  %v2571 = vmul.f32 %v2569, %v2197
  %2574 = vrot.lane.b32.xlu0 %v2566, 96
  %v2575 = vpop.permute.xlu0 %2574
  %2576 = vrot.lane.b32.xlu0 %v2567, 96
  %v2577 = vpop.permute.xlu0 %2576
  %v2580 = vmul.f32 %v2503, %v2575
  %v2581 = vmul.f32 %v2518, %v2577
  %v2582 = vadd.f32 %v2570, %v2580
  %v2583 = vadd.f32 %v2571, %v2581
  %2586 = vrot.lane.b32.xlu0 %v2582, 96
  %v2587 = vpop.permute.xlu0 %2586
  %2588 = vrot.lane.b32.xlu0 %v2583, 96
  %v2589 = vpop.permute.xlu0 %2588
  %2592 = vst.msk [vmem:[%s22] sm:$0xff] %vm149, %v2587
  %2593 = vst.msk [vmem:[%s22 + $0x8] sm:$0xff] %vm149, %v2589
  // Predicated region
  $region90: #{gtrxl_forward.1} parent=0 // pred_check
    _
  $region91: #{gtrxl_forward.1} parent=0 // pred_check_branch
    %2595 = sbr.rel (0) target = $region93
  $region92: #{gtrxl_forward.1} parent=0 // pred_region
    _
  $region93: #{gtrxl_forward.1} parent=0 // pred_fallthru
    _
  // Predicated region
  $region94: #{gtrxl_forward.1} parent=0 // pred_check
    _
  $region95: #{gtrxl_forward.1} parent=0 // pred_check_branch
    %2597 = sbr.rel (0) target = $region97
  $region96: #{gtrxl_forward.1} parent=0 // pred_region
    _
  $region97: #{gtrxl_forward.1} parent=0 // pred_fallthru
    _

</llo_original>
